<compile_context>
chip_gen: v5e
topology: v5e:2x2
jax: 0.10.0
libtpu: 0.0.40
codegen_flags: <defaults>
</compile_context>

<pallas_src>
import functools

import jax
import jax.numpy as jnp
import numpy as np
from jax.experimental import pallas as pl
from jax.experimental.pallas import tpu as pltpu


def _round_up(a, m):
    return (a + m - 1) // m * m


def _conv_film_silu_kernel(x0_ref, x1_ref, x2_ref, w_ref, scale_ref, shift_ref,
                           o_ref, *scratch, tap_slots, group_size, cin, sub_n,
                           n_sub, staged):
    # x0/x1/x2: (Np, Cin) bf16  -- padded depth planes d, d+1, d+2, flat rows
    #                              p = h*Wpad + w.
    # w:        (n_groups, Kg, cp) bf16 -- tap-grouped weights, Kg = G*Cin.
    # scale/shift: (1, cp) f32  -- folded FiLM affine (conv bias folded in).
    # o:        (No, cp) bf16.
    # scratch:  optional (sub_n, Kg) bf16 staging buffer (grouped contraction).
    planes = (x0_ref, x1_ref, x2_ref)
    cp = o_ref.shape[-1]
    n_groups = w_ref.shape[0]
    scale = scale_ref[...]                       # hoisted out of the sub-tile loop
    shift = shift_ref[...]

    for t in range(n_sub):                       # sub-tile loop: acc stays in vregs
        p0 = t * sub_n
        acc = jnp.zeros((sub_n, cp), jnp.float32)
        if staged:
            xcol_ref = scratch[0]
            for g in range(n_groups):
                # Stage G row-shifted slices into one contiguous bf16 buffer so
                # the matmul contraction depth is ~128 instead of Cin.
                for j in range(group_size):
                    kd, off = tap_slots[g * group_size + j]
                    xcol_ref[:, j * cin:(j + 1) * cin] = (
                        planes[kd][p0 + off:p0 + off + sub_n, :])
                acc += jnp.dot(xcol_ref[...], w_ref[g],
                               preferred_element_type=jnp.float32)
        else:                                    # Cin >= 128: per-tap K already deep
            for k, (kd, off) in enumerate(tap_slots):
                acc += jnp.dot(planes[kd][p0 + off:p0 + off + sub_n, :], w_ref[k],
                               preferred_element_type=jnp.float32)

        y = acc * scale + shift                  # folded bias + FiLM (f32)
        o_ref[p0:p0 + sub_n, :] = (y * jax.nn.sigmoid(y)).astype(o_ref.dtype)


def block_me_scale_shift(x, weight, bias, scale=None, shift=None, *,
                         sub_n=128, k_target=128):
    """x: [B, D, H, W, Cin]; weight: [27, Cin, Cout] (Minkowski layout, kd-major,
    kw-minor); bias: [Cout]; scale/shift: [B, Cout] or None.
    Returns [B, D, H, W, Cout] in x.dtype."""
    B, D, H, W, Cin = x.shape
    K, Cin_w, Cout = weight.shape
    assert K == 27 and Cin_w == Cin

    if scale is None:                        # scale_shift=None path: identity FiLM
        scale = jnp.zeros((B, Cout), jnp.float32)
    if shift is None:
        shift = jnp.zeros((B, Cout), jnp.float32)

    Hp = H + 2
    Wpad = _round_up(W + 2, 8)               # sublane-aligned padded row stride
    cp = _round_up(Cout, 128)                # lane-dense output / full MXU columns

    n_keep = H * Wpad                        # rows needed for the final crop
    sub_n = min(sub_n, _round_up(n_keep, 128))
    No = _round_up(n_keep, sub_n)            # output rows computed per plane
    n_sub = No // sub_n
    s_max = 2 * Wpad + 2                     # largest in-plane tap offset
    Np = max(Hp * Wpad, _round_up(No + s_max, 8))   # input rows per padded plane

    # Tap (kd, kh, kw) -> (plane kd, flat in-plane row offset kh*Wpad + kw).
    taps = [(kd, kh * Wpad + kw)
            for kd in range(3) for kh in range(3) for kw in range(3)]

    # Group taps along the contraction axis: K per matmul = G*Cin ~= k_target
    # (128; set ~256 on v6e/v7x if desired).
    G = max(1, k_target // Cin)
    staged = G >= 2
    n_groups = -(-27 // G) if staged else 27
    group_size = G if staged else 1
    total_slots = n_groups * group_size
    tap_slots = tuple(taps + [taps[0]] * (total_slots - 27))  # dummies: zero weight
    Kg = group_size * Cin

    # Weights: (slots, Cin, cp) with zeros for dummy slots / padded Cout, grouped.
    w_full = jnp.zeros((total_slots, Cin, cp), jnp.float32)
    w_full = w_full.at[:27, :, :Cout].set(weight.astype(jnp.float32))
    w_g = w_full.reshape(n_groups, Kg, cp).astype(jnp.bfloat16)

    # Input: cast to bf16 first, then pad/flatten (halves wrapper HBM traffic).
    xb = x.astype(jnp.bfloat16)
    xp = jnp.pad(xb, ((0, 0), (1, 1), (1, 1), (1, Wpad - W - 1), (0, 0)))
    xf = xp.reshape(B, D + 2, Hp * Wpad, Cin)
    xf = jnp.pad(xf, ((0, 0), (0, 0), (0, Np - Hp * Wpad), (0, 0)))

    # Fold conv bias into FiLM: y = dot*(scale+1) + (bias*(scale+1) + shift).
    scale_p = scale.astype(jnp.float32) + 1.0
    shift_p = bias.astype(jnp.float32)[None, :] * scale_p + shift.astype(jnp.float32)
    scale_p = jnp.pad(scale_p, ((0, 0), (0, cp - Cout))).reshape(B, 1, cp)
    shift_p = jnp.pad(shift_p, ((0, 0), (0, cp - Cout))).reshape(B, 1, cp)

    kernel = functools.partial(
        _conv_film_silu_kernel, tap_slots=tap_slots, group_size=group_size,
        cin=Cin, sub_n=sub_n, n_sub=n_sub, staged=staged)

    cost = pl.CostEstimate(
        flops=2 * B * D * No * 27 * Cin * cp,
        transcendentals=B * D * No * cp,
        bytes_accessed=(3 * B * D * Np * Cin * 2       # 3 bf16 planes read per step
                        + n_groups * Kg * cp * 2       # weights (resident)
                        + B * D * No * cp * 2          # bf16 output
                        + 2 * B * cp * 4))             # FiLM params

    out_p = pl.pallas_call(
        kernel,
        out_shape=jax.ShapeDtypeStruct((B, D, No, cp), jnp.bfloat16),
        grid=(B, D),
        in_specs=[
            pl.BlockSpec((None, None, Np, Cin), lambda b, d: (b, d, 0, 0)),
            pl.BlockSpec((None, None, Np, Cin), lambda b, d: (b, d + 1, 0, 0)),
            pl.BlockSpec((None, None, Np, Cin), lambda b, d: (b, d + 2, 0, 0)),
            # Constant-index block: stays VMEM-resident across the grid.
            pl.BlockSpec((n_groups, Kg, cp), lambda b, d: (0, 0, 0)),
            pl.BlockSpec((None, 1, cp), lambda b, d: (b, 0, 0)),
            pl.BlockSpec((None, 1, cp), lambda b, d: (b, 0, 0)),
        ],
        out_specs=pl.BlockSpec((None, None, No, cp), lambda b, d: (b, d, 0, 0)),
        scratch_shapes=(
            [pltpu.VMEM((sub_n, Kg), jnp.bfloat16)] if staged else []),
        compiler_params=pltpu.CompilerParams(
            dimension_semantics=("parallel", "parallel"),
            vmem_limit_bytes=32 * 1024 * 1024),
        cost_estimate=cost,
    )(xf, xf, xf, w_g, scale_p, shift_p)

    # Crop: valid rows decode as p = h*Wpad + w with h < H, w < W.
    out = out_p[:, :, :n_keep, :Cout].reshape(B, D, H, Wpad, Cout)[:, :, :, :W, :]
    return out.astype(x.dtype)


def _reference(x, weight, bias, scale, shift):
    """Pure-JAX reference (dense 3D conv + FiLM + SiLU), full f32 precision."""
    B, D, H, W, Cin = x.shape
    Cout = weight.shape[-1]
    w = weight.reshape(3, 3, 3, Cin, Cout)
    y = jax.lax.conv_general_dilated(
        x, w, window_strides=(1, 1, 1), padding="SAME",
        dimension_numbers=("NDHWC", "DHWIO", "NDHWC"),
        precision=jax.lax.Precision.HIGHEST)
    y = y + bias
    y = y * (scale[:, None, None, None, :] + 1.0) + shift[:, None, None, None, :]
    return y * jax.nn.sigmoid(y)


if __name__ == "__main__":
    key = jax.random.PRNGKey(0)
    B, S, Cin, Cout = 2, 8, 4, 8        # dim=4, dim_out=8, 8^3 = 512 points/batch
    k1, k2, k3, k4, k5 = jax.random.split(key, 5)

    x = jax.random.normal(k1, (B, S, S, S, Cin), jnp.float32)
    # deterministic "proj" parameters: Minkowski conv weight (kernel_volume, in, out)
    weight = jax.random.normal(k2, (27, Cin, Cout), jnp.float32) / jnp.sqrt(27.0 * Cin)
    bias = 0.1 * jax.random.normal(k3, (Cout,), jnp.float32)
    # scale_shift from a (synthetic) time embedding: per-(batch, channel)
    scale = 0.5 * jax.random.normal(k4, (B, Cout), jnp.float32)
    shift = 0.5 * jax.random.normal(k5, (B, Cout), jnp.float32)

    out = block_me_scale_shift(x, weight, bias, scale, shift)
    out = jax.block_until_ready(out)

    ref = _reference(x, weight, bias, scale, shift)
    # bf16 MXU operands + bf16 kernel writeback -> loose tolerance vs f32 ref.
    np.testing.assert_allclose(np.asarray(out), np.asarray(ref),
                               rtol=3e-2, atol=3e-2)
    print("KERNEL_OK")
</pallas_src>

<mosaic_0001>
module attributes {stable_mosaic.version = 11 : i64} {
  func.func @_conv_film_silu_kernel(%arg0: i32, %arg1: i32, %arg2: memref<1x1x168x4xbf16, #tpu.memory_space<vmem>>, %arg3: memref<1x1x168x4xbf16, #tpu.memory_space<vmem>>, %arg4: memref<1x1x168x4xbf16, #tpu.memory_space<vmem>>, %arg5: memref<1x128x128xbf16, #tpu.memory_space<vmem>>, %arg6: memref<1x1x128xf32, #tpu.memory_space<vmem>>, %arg7: memref<1x1x128xf32, #tpu.memory_space<vmem>>, %arg8: memref<1x1x128x128xbf16, #tpu.memory_space<vmem>>, %arg9: memref<128x128xbf16, #tpu.memory_space<vmem>>) attributes {dimension_semantics = [#tpu.dimension_semantics<parallel>, #tpu.dimension_semantics<parallel>], iteration_bounds = array<i64: 2, 8>, scalar_prefetch = 0 : i64, scratch_operands = 1 : i64, tpu.core_type = #tpu.core_type<tc>, window_params = [{transform_indices = @transform_0, window_bounds = array<i64: 1, 1, 168, 4>}, {transform_indices = @transform_1, window_bounds = array<i64: 1, 1, 168, 4>}, {transform_indices = @transform_2, window_bounds = array<i64: 1, 1, 168, 4>}, {pipeline_mode = #tpu.pipeline_mode<synchronous>, transform_indices = @transform_3, window_bounds = array<i64: 1, 128, 128>}, {transform_indices = @transform_4, window_bounds = array<i64: 1, 1, 128>}, {transform_indices = @transform_5, window_bounds = array<i64: 1, 1, 128>}, {transform_indices = @transform_6, window_bounds = array<i64: 1, 1, 128, 128>}]} {
    %c0 = arith.constant 0 : index
    %c0_0 = arith.constant 0 : index
    %c0_1 = arith.constant 0 : index
    %0 = vector.load %arg6[%c0, %c0_0, %c0_1] : memref<1x1x128xf32, #tpu.memory_space<vmem>>, vector<1x1x128xf32>
    %1 = vector.shape_cast %0 : vector<1x1x128xf32> to vector<1x128xf32>
    %c0_2 = arith.constant 0 : index
    %c0_3 = arith.constant 0 : index
    %c0_4 = arith.constant 0 : index
    %2 = vector.load %arg7[%c0_2, %c0_3, %c0_4] : memref<1x1x128xf32, #tpu.memory_space<vmem>>, vector<1x1x128xf32>
    %3 = vector.shape_cast %2 : vector<1x1x128xf32> to vector<1x128xf32>
    %cst = arith.constant 0.000000e+00 : f32
    %4 = vector.broadcast %cst : f32 to vector<128x128xf32>
    %c0_5 = arith.constant 0 : index
    %c0_6 = arith.constant 0 : index
    %c0_7 = arith.constant 0 : index
    %c0_8 = arith.constant 0 : index
    %5 = vector.load %arg2[%c0_5, %c0_6, %c0_7, %c0_8] : memref<1x1x168x4xbf16, #tpu.memory_space<vmem>>, vector<1x1x128x4xbf16>
    %6 = vector.shape_cast %5 : vector<1x1x128x4xbf16> to vector<128x4xbf16>
    %c0_9 = arith.constant 0 : index
    %c0_10 = arith.constant 0 : index
    %7 = vector.load %arg9[%c0_9, %c0_10] : memref<128x128xbf16, #tpu.memory_space<vmem>>, vector<128x4xbf16>
    tpu.vector_store %arg9[%c0_9, %c0_10], %6 {strides = array<i32>} : memref<128x128xbf16, #tpu.memory_space<vmem>>, vector<128x4xbf16>,
    %c0_11 = arith.constant 0 : index
    %c0_12 = arith.constant 0 : index
    %c1 = arith.constant 1 : index
    %c0_13 = arith.constant 0 : index
    %8 = vector.load %arg2[%c0_11, %c0_12, %c1, %c0_13] : memref<1x1x168x4xbf16, #tpu.memory_space<vmem>>, vector<1x1x128x4xbf16>
    %9 = vector.shape_cast %8 : vector<1x1x128x4xbf16> to vector<128x4xbf16>
    %c0_14 = arith.constant 0 : index
    %c4 = arith.constant 4 : index
    %10 = vector.load %arg9[%c0_14, %c4] : memref<128x128xbf16, #tpu.memory_space<vmem>>, vector<128x4xbf16>
    tpu.vector_store %arg9[%c0_14, %c4], %9 {strides = array<i32>} : memref<128x128xbf16, #tpu.memory_space<vmem>>, vector<128x4xbf16>,
    %c0_15 = arith.constant 0 : index
    %c0_16 = arith.constant 0 : index
    %c2 = arith.constant 2 : index
    %c0_17 = arith.constant 0 : index
    %11 = vector.load %arg2[%c0_15, %c0_16, %c2, %c0_17] : memref<1x1x168x4xbf16, #tpu.memory_space<vmem>>, vector<1x1x128x4xbf16>
    %12 = vector.shape_cast %11 : vector<1x1x128x4xbf16> to vector<128x4xbf16>
    %c0_18 = arith.constant 0 : index
    %c8 = arith.constant 8 : index
    %13 = vector.load %arg9[%c0_18, %c8] : memref<128x128xbf16, #tpu.memory_space<vmem>>, vector<128x4xbf16>
    tpu.vector_store %arg9[%c0_18, %c8], %12 {strides = array<i32>} : memref<128x128xbf16, #tpu.memory_space<vmem>>, vector<128x4xbf16>,
    %c0_19 = arith.constant 0 : index
    %c0_20 = arith.constant 0 : index
    %c16 = arith.constant 16 : index
    %c0_21 = arith.constant 0 : index
    %14 = vector.load %arg2[%c0_19, %c0_20, %c16, %c0_21] : memref<1x1x168x4xbf16, #tpu.memory_space<vmem>>, vector<1x1x128x4xbf16>
    %15 = vector.shape_cast %14 : vector<1x1x128x4xbf16> to vector<128x4xbf16>
    %c0_22 = arith.constant 0 : index
    %c12 = arith.constant 12 : index
    %16 = vector.load %arg9[%c0_22, %c12] : memref<128x128xbf16, #tpu.memory_space<vmem>>, vector<128x4xbf16>
    tpu.vector_store %arg9[%c0_22, %c12], %15 {strides = array<i32>} : memref<128x128xbf16, #tpu.memory_space<vmem>>, vector<128x4xbf16>,
    %c0_23 = arith.constant 0 : index
    %c0_24 = arith.constant 0 : index
    %c17 = arith.constant 17 : index
    %c0_25 = arith.constant 0 : index
    %17 = vector.load %arg2[%c0_23, %c0_24, %c17, %c0_25] : memref<1x1x168x4xbf16, #tpu.memory_space<vmem>>, vector<1x1x128x4xbf16>
    %18 = vector.shape_cast %17 : vector<1x1x128x4xbf16> to vector<128x4xbf16>
    %c0_26 = arith.constant 0 : index
    %c16_27 = arith.constant 16 : index
    %19 = vector.load %arg9[%c0_26, %c16_27] : memref<128x128xbf16, #tpu.memory_space<vmem>>, vector<128x4xbf16>
    tpu.vector_store %arg9[%c0_26, %c16_27], %18 {strides = array<i32>} : memref<128x128xbf16, #tpu.memory_space<vmem>>, vector<128x4xbf16>,
    %c0_28 = arith.constant 0 : index
    %c0_29 = arith.constant 0 : index
    %c18 = arith.constant 18 : index
    %c0_30 = arith.constant 0 : index
    %20 = vector.load %arg2[%c0_28, %c0_29, %c18, %c0_30] : memref<1x1x168x4xbf16, #tpu.memory_space<vmem>>, vector<1x1x128x4xbf16>
    %21 = vector.shape_cast %20 : vector<1x1x128x4xbf16> to vector<128x4xbf16>
    %c0_31 = arith.constant 0 : index
    %c20 = arith.constant 20 : index
    %22 = vector.load %arg9[%c0_31, %c20] : memref<128x128xbf16, #tpu.memory_space<vmem>>, vector<128x4xbf16>
    tpu.vector_store %arg9[%c0_31, %c20], %21 {strides = array<i32>} : memref<128x128xbf16, #tpu.memory_space<vmem>>, vector<128x4xbf16>,
    %c0_32 = arith.constant 0 : index
    %c0_33 = arith.constant 0 : index
    %c32 = arith.constant 32 : index
    %c0_34 = arith.constant 0 : index
    %23 = vector.load %arg2[%c0_32, %c0_33, %c32, %c0_34] : memref<1x1x168x4xbf16, #tpu.memory_space<vmem>>, vector<1x1x128x4xbf16>
    %24 = vector.shape_cast %23 : vector<1x1x128x4xbf16> to vector<128x4xbf16>
    %c0_35 = arith.constant 0 : index
    %c24 = arith.constant 24 : index
    %25 = vector.load %arg9[%c0_35, %c24] : memref<128x128xbf16, #tpu.memory_space<vmem>>, vector<128x4xbf16>
    tpu.vector_store %arg9[%c0_35, %c24], %24 {strides = array<i32>} : memref<128x128xbf16, #tpu.memory_space<vmem>>, vector<128x4xbf16>,
    %c0_36 = arith.constant 0 : index
    %c0_37 = arith.constant 0 : index
    %c33 = arith.constant 33 : index
    %c0_38 = arith.constant 0 : index
    %26 = vector.load %arg2[%c0_36, %c0_37, %c33, %c0_38] : memref<1x1x168x4xbf16, #tpu.memory_space<vmem>>, vector<1x1x128x4xbf16>
    %27 = vector.shape_cast %26 : vector<1x1x128x4xbf16> to vector<128x4xbf16>
    %c0_39 = arith.constant 0 : index
    %c28 = arith.constant 28 : index
    %28 = vector.load %arg9[%c0_39, %c28] : memref<128x128xbf16, #tpu.memory_space<vmem>>, vector<128x4xbf16>
    tpu.vector_store %arg9[%c0_39, %c28], %27 {strides = array<i32>} : memref<128x128xbf16, #tpu.memory_space<vmem>>, vector<128x4xbf16>,
    %c0_40 = arith.constant 0 : index
    %c0_41 = arith.constant 0 : index
    %c34 = arith.constant 34 : index
    %c0_42 = arith.constant 0 : index
    %29 = vector.load %arg2[%c0_40, %c0_41, %c34, %c0_42] : memref<1x1x168x4xbf16, #tpu.memory_space<vmem>>, vector<1x1x128x4xbf16>
    %30 = vector.shape_cast %29 : vector<1x1x128x4xbf16> to vector<128x4xbf16>
    %c0_43 = arith.constant 0 : index
    %c32_44 = arith.constant 32 : index
    %31 = vector.load %arg9[%c0_43, %c32_44] : memref<128x128xbf16, #tpu.memory_space<vmem>>, vector<128x4xbf16>
    tpu.vector_store %arg9[%c0_43, %c32_44], %30 {strides = array<i32>} : memref<128x128xbf16, #tpu.memory_space<vmem>>, vector<128x4xbf16>,
    %c0_45 = arith.constant 0 : index
    %c0_46 = arith.constant 0 : index
    %c0_47 = arith.constant 0 : index
    %c0_48 = arith.constant 0 : index
    %32 = vector.load %arg3[%c0_45, %c0_46, %c0_47, %c0_48] : memref<1x1x168x4xbf16, #tpu.memory_space<vmem>>, vector<1x1x128x4xbf16>
    %33 = vector.shape_cast %32 : vector<1x1x128x4xbf16> to vector<128x4xbf16>
    %c0_49 = arith.constant 0 : index
    %c36 = arith.constant 36 : index
    %34 = vector.load %arg9[%c0_49, %c36] : memref<128x128xbf16, #tpu.memory_space<vmem>>, vector<128x4xbf16>
    tpu.vector_store %arg9[%c0_49, %c36], %33 {strides = array<i32>} : memref<128x128xbf16, #tpu.memory_space<vmem>>, vector<128x4xbf16>,
    %c0_50 = arith.constant 0 : index
    %c0_51 = arith.constant 0 : index
    %c1_52 = arith.constant 1 : index
    %c0_53 = arith.constant 0 : index
    %35 = vector.load %arg3[%c0_50, %c0_51, %c1_52, %c0_53] : memref<1x1x168x4xbf16, #tpu.memory_space<vmem>>, vector<1x1x128x4xbf16>
    %36 = vector.shape_cast %35 : vector<1x1x128x4xbf16> to vector<128x4xbf16>
    %c0_54 = arith.constant 0 : index
    %c40 = arith.constant 40 : index
    %37 = vector.load %arg9[%c0_54, %c40] : memref<128x128xbf16, #tpu.memory_space<vmem>>, vector<128x4xbf16>
    tpu.vector_store %arg9[%c0_54, %c40], %36 {strides = array<i32>} : memref<128x128xbf16, #tpu.memory_space<vmem>>, vector<128x4xbf16>,
    %c0_55 = arith.constant 0 : index
    %c0_56 = arith.constant 0 : index
    %c2_57 = arith.constant 2 : index
    %c0_58 = arith.constant 0 : index
    %38 = vector.load %arg3[%c0_55, %c0_56, %c2_57, %c0_58] : memref<1x1x168x4xbf16, #tpu.memory_space<vmem>>, vector<1x1x128x4xbf16>
    %39 = vector.shape_cast %38 : vector<1x1x128x4xbf16> to vector<128x4xbf16>
    %c0_59 = arith.constant 0 : index
    %c44 = arith.constant 44 : index
    %40 = vector.load %arg9[%c0_59, %c44] : memref<128x128xbf16, #tpu.memory_space<vmem>>, vector<128x4xbf16>
    tpu.vector_store %arg9[%c0_59, %c44], %39 {strides = array<i32>} : memref<128x128xbf16, #tpu.memory_space<vmem>>, vector<128x4xbf16>,
    %c0_60 = arith.constant 0 : index
    %c0_61 = arith.constant 0 : index
    %c16_62 = arith.constant 16 : index
    %c0_63 = arith.constant 0 : index
    %41 = vector.load %arg3[%c0_60, %c0_61, %c16_62, %c0_63] : memref<1x1x168x4xbf16, #tpu.memory_space<vmem>>, vector<1x1x128x4xbf16>
    %42 = vector.shape_cast %41 : vector<1x1x128x4xbf16> to vector<128x4xbf16>
    %c0_64 = arith.constant 0 : index
    %c48 = arith.constant 48 : index
    %43 = vector.load %arg9[%c0_64, %c48] : memref<128x128xbf16, #tpu.memory_space<vmem>>, vector<128x4xbf16>
    tpu.vector_store %arg9[%c0_64, %c48], %42 {strides = array<i32>} : memref<128x128xbf16, #tpu.memory_space<vmem>>, vector<128x4xbf16>,
    %c0_65 = arith.constant 0 : index
    %c0_66 = arith.constant 0 : index
    %c17_67 = arith.constant 17 : index
    %c0_68 = arith.constant 0 : index
    %44 = vector.load %arg3[%c0_65, %c0_66, %c17_67, %c0_68] : memref<1x1x168x4xbf16, #tpu.memory_space<vmem>>, vector<1x1x128x4xbf16>
    %45 = vector.shape_cast %44 : vector<1x1x128x4xbf16> to vector<128x4xbf16>
    %c0_69 = arith.constant 0 : index
    %c52 = arith.constant 52 : index
    %46 = vector.load %arg9[%c0_69, %c52] : memref<128x128xbf16, #tpu.memory_space<vmem>>, vector<128x4xbf16>
    tpu.vector_store %arg9[%c0_69, %c52], %45 {strides = array<i32>} : memref<128x128xbf16, #tpu.memory_space<vmem>>, vector<128x4xbf16>,
    %c0_70 = arith.constant 0 : index
    %c0_71 = arith.constant 0 : index
    %c18_72 = arith.constant 18 : index
    %c0_73 = arith.constant 0 : index
    %47 = vector.load %arg3[%c0_70, %c0_71, %c18_72, %c0_73] : memref<1x1x168x4xbf16, #tpu.memory_space<vmem>>, vector<1x1x128x4xbf16>
    %48 = vector.shape_cast %47 : vector<1x1x128x4xbf16> to vector<128x4xbf16>
    %c0_74 = arith.constant 0 : index
    %c56 = arith.constant 56 : index
    %49 = vector.load %arg9[%c0_74, %c56] : memref<128x128xbf16, #tpu.memory_space<vmem>>, vector<128x4xbf16>
    tpu.vector_store %arg9[%c0_74, %c56], %48 {strides = array<i32>} : memref<128x128xbf16, #tpu.memory_space<vmem>>, vector<128x4xbf16>,
    %c0_75 = arith.constant 0 : index
    %c0_76 = arith.constant 0 : index
    %c32_77 = arith.constant 32 : index
    %c0_78 = arith.constant 0 : index
    %50 = vector.load %arg3[%c0_75, %c0_76, %c32_77, %c0_78] : memref<1x1x168x4xbf16, #tpu.memory_space<vmem>>, vector<1x1x128x4xbf16>
    %51 = vector.shape_cast %50 : vector<1x1x128x4xbf16> to vector<128x4xbf16>
    %c0_79 = arith.constant 0 : index
    %c60 = arith.constant 60 : index
    %52 = vector.load %arg9[%c0_79, %c60] : memref<128x128xbf16, #tpu.memory_space<vmem>>, vector<128x4xbf16>
    tpu.vector_store %arg9[%c0_79, %c60], %51 {strides = array<i32>} : memref<128x128xbf16, #tpu.memory_space<vmem>>, vector<128x4xbf16>,
    %c0_80 = arith.constant 0 : index
    %c0_81 = arith.constant 0 : index
    %c33_82 = arith.constant 33 : index
    %c0_83 = arith.constant 0 : index
    %53 = vector.load %arg3[%c0_80, %c0_81, %c33_82, %c0_83] : memref<1x1x168x4xbf16, #tpu.memory_space<vmem>>, vector<1x1x128x4xbf16>
    %54 = vector.shape_cast %53 : vector<1x1x128x4xbf16> to vector<128x4xbf16>
    %c0_84 = arith.constant 0 : index
    %c64 = arith.constant 64 : index
    %55 = vector.load %arg9[%c0_84, %c64] : memref<128x128xbf16, #tpu.memory_space<vmem>>, vector<128x4xbf16>
    tpu.vector_store %arg9[%c0_84, %c64], %54 {strides = array<i32>} : memref<128x128xbf16, #tpu.memory_space<vmem>>, vector<128x4xbf16>,
    %c0_85 = arith.constant 0 : index
    %c0_86 = arith.constant 0 : index
    %c34_87 = arith.constant 34 : index
    %c0_88 = arith.constant 0 : index
    %56 = vector.load %arg3[%c0_85, %c0_86, %c34_87, %c0_88] : memref<1x1x168x4xbf16, #tpu.memory_space<vmem>>, vector<1x1x128x4xbf16>
    %57 = vector.shape_cast %56 : vector<1x1x128x4xbf16> to vector<128x4xbf16>
    %c0_89 = arith.constant 0 : index
    %c68 = arith.constant 68 : index
    %58 = vector.load %arg9[%c0_89, %c68] : memref<128x128xbf16, #tpu.memory_space<vmem>>, vector<128x4xbf16>
    tpu.vector_store %arg9[%c0_89, %c68], %57 {strides = array<i32>} : memref<128x128xbf16, #tpu.memory_space<vmem>>, vector<128x4xbf16>,
    %c0_90 = arith.constant 0 : index
    %c0_91 = arith.constant 0 : index
    %c0_92 = arith.constant 0 : index
    %c0_93 = arith.constant 0 : index
    %59 = vector.load %arg4[%c0_90, %c0_91, %c0_92, %c0_93] : memref<1x1x168x4xbf16, #tpu.memory_space<vmem>>, vector<1x1x128x4xbf16>
    %60 = vector.shape_cast %59 : vector<1x1x128x4xbf16> to vector<128x4xbf16>
    %c0_94 = arith.constant 0 : index
    %c72 = arith.constant 72 : index
    %61 = vector.load %arg9[%c0_94, %c72] : memref<128x128xbf16, #tpu.memory_space<vmem>>, vector<128x4xbf16>
    tpu.vector_store %arg9[%c0_94, %c72], %60 {strides = array<i32>} : memref<128x128xbf16, #tpu.memory_space<vmem>>, vector<128x4xbf16>,
    %c0_95 = arith.constant 0 : index
    %c0_96 = arith.constant 0 : index
    %c1_97 = arith.constant 1 : index
    %c0_98 = arith.constant 0 : index
    %62 = vector.load %arg4[%c0_95, %c0_96, %c1_97, %c0_98] : memref<1x1x168x4xbf16, #tpu.memory_space<vmem>>, vector<1x1x128x4xbf16>
    %63 = vector.shape_cast %62 : vector<1x1x128x4xbf16> to vector<128x4xbf16>
    %c0_99 = arith.constant 0 : index
    %c76 = arith.constant 76 : index
    %64 = vector.load %arg9[%c0_99, %c76] : memref<128x128xbf16, #tpu.memory_space<vmem>>, vector<128x4xbf16>
    tpu.vector_store %arg9[%c0_99, %c76], %63 {strides = array<i32>} : memref<128x128xbf16, #tpu.memory_space<vmem>>, vector<128x4xbf16>,
    %c0_100 = arith.constant 0 : index
    %c0_101 = arith.constant 0 : index
    %c2_102 = arith.constant 2 : index
    %c0_103 = arith.constant 0 : index
    %65 = vector.load %arg4[%c0_100, %c0_101, %c2_102, %c0_103] : memref<1x1x168x4xbf16, #tpu.memory_space<vmem>>, vector<1x1x128x4xbf16>
    %66 = vector.shape_cast %65 : vector<1x1x128x4xbf16> to vector<128x4xbf16>
    %c0_104 = arith.constant 0 : index
    %c80 = arith.constant 80 : index
    %67 = vector.load %arg9[%c0_104, %c80] : memref<128x128xbf16, #tpu.memory_space<vmem>>, vector<128x4xbf16>
    tpu.vector_store %arg9[%c0_104, %c80], %66 {strides = array<i32>} : memref<128x128xbf16, #tpu.memory_space<vmem>>, vector<128x4xbf16>,
    %c0_105 = arith.constant 0 : index
    %c0_106 = arith.constant 0 : index
    %c16_107 = arith.constant 16 : index
    %c0_108 = arith.constant 0 : index
    %68 = vector.load %arg4[%c0_105, %c0_106, %c16_107, %c0_108] : memref<1x1x168x4xbf16, #tpu.memory_space<vmem>>, vector<1x1x128x4xbf16>
    %69 = vector.shape_cast %68 : vector<1x1x128x4xbf16> to vector<128x4xbf16>
    %c0_109 = arith.constant 0 : index
    %c84 = arith.constant 84 : index
    %70 = vector.load %arg9[%c0_109, %c84] : memref<128x128xbf16, #tpu.memory_space<vmem>>, vector<128x4xbf16>
    tpu.vector_store %arg9[%c0_109, %c84], %69 {strides = array<i32>} : memref<128x128xbf16, #tpu.memory_space<vmem>>, vector<128x4xbf16>,
    %c0_110 = arith.constant 0 : index
    %c0_111 = arith.constant 0 : index
    %c17_112 = arith.constant 17 : index
    %c0_113 = arith.constant 0 : index
    %71 = vector.load %arg4[%c0_110, %c0_111, %c17_112, %c0_113] : memref<1x1x168x4xbf16, #tpu.memory_space<vmem>>, vector<1x1x128x4xbf16>
    %72 = vector.shape_cast %71 : vector<1x1x128x4xbf16> to vector<128x4xbf16>
    %c0_114 = arith.constant 0 : index
    %c88 = arith.constant 88 : index
    %73 = vector.load %arg9[%c0_114, %c88] : memref<128x128xbf16, #tpu.memory_space<vmem>>, vector<128x4xbf16>
    tpu.vector_store %arg9[%c0_114, %c88], %72 {strides = array<i32>} : memref<128x128xbf16, #tpu.memory_space<vmem>>, vector<128x4xbf16>,
    %c0_115 = arith.constant 0 : index
    %c0_116 = arith.constant 0 : index
    %c18_117 = arith.constant 18 : index
    %c0_118 = arith.constant 0 : index
    %74 = vector.load %arg4[%c0_115, %c0_116, %c18_117, %c0_118] : memref<1x1x168x4xbf16, #tpu.memory_space<vmem>>, vector<1x1x128x4xbf16>
    %75 = vector.shape_cast %74 : vector<1x1x128x4xbf16> to vector<128x4xbf16>
    %c0_119 = arith.constant 0 : index
    %c92 = arith.constant 92 : index
    %76 = vector.load %arg9[%c0_119, %c92] : memref<128x128xbf16, #tpu.memory_space<vmem>>, vector<128x4xbf16>
    tpu.vector_store %arg9[%c0_119, %c92], %75 {strides = array<i32>} : memref<128x128xbf16, #tpu.memory_space<vmem>>, vector<128x4xbf16>,
    %c0_120 = arith.constant 0 : index
    %c0_121 = arith.constant 0 : index
    %c32_122 = arith.constant 32 : index
    %c0_123 = arith.constant 0 : index
    %77 = vector.load %arg4[%c0_120, %c0_121, %c32_122, %c0_123] : memref<1x1x168x4xbf16, #tpu.memory_space<vmem>>, vector<1x1x128x4xbf16>
    %78 = vector.shape_cast %77 : vector<1x1x128x4xbf16> to vector<128x4xbf16>
    %c0_124 = arith.constant 0 : index
    %c96 = arith.constant 96 : index
    %79 = vector.load %arg9[%c0_124, %c96] : memref<128x128xbf16, #tpu.memory_space<vmem>>, vector<128x4xbf16>
    tpu.vector_store %arg9[%c0_124, %c96], %78 {strides = array<i32>} : memref<128x128xbf16, #tpu.memory_space<vmem>>, vector<128x4xbf16>,
    %c0_125 = arith.constant 0 : index
    %c0_126 = arith.constant 0 : index
    %c33_127 = arith.constant 33 : index
    %c0_128 = arith.constant 0 : index
    %80 = vector.load %arg4[%c0_125, %c0_126, %c33_127, %c0_128] : memref<1x1x168x4xbf16, #tpu.memory_space<vmem>>, vector<1x1x128x4xbf16>
    %81 = vector.shape_cast %80 : vector<1x1x128x4xbf16> to vector<128x4xbf16>
    %c0_129 = arith.constant 0 : index
    %c100 = arith.constant 100 : index
    %82 = vector.load %arg9[%c0_129, %c100] : memref<128x128xbf16, #tpu.memory_space<vmem>>, vector<128x4xbf16>
    tpu.vector_store %arg9[%c0_129, %c100], %81 {strides = array<i32>} : memref<128x128xbf16, #tpu.memory_space<vmem>>, vector<128x4xbf16>,
    %c0_130 = arith.constant 0 : index
    %c0_131 = arith.constant 0 : index
    %c34_132 = arith.constant 34 : index
    %c0_133 = arith.constant 0 : index
    %83 = vector.load %arg4[%c0_130, %c0_131, %c34_132, %c0_133] : memref<1x1x168x4xbf16, #tpu.memory_space<vmem>>, vector<1x1x128x4xbf16>
    %84 = vector.shape_cast %83 : vector<1x1x128x4xbf16> to vector<128x4xbf16>
    %c0_134 = arith.constant 0 : index
    %c104 = arith.constant 104 : index
    %85 = vector.load %arg9[%c0_134, %c104] : memref<128x128xbf16, #tpu.memory_space<vmem>>, vector<128x4xbf16>
    tpu.vector_store %arg9[%c0_134, %c104], %84 {strides = array<i32>} : memref<128x128xbf16, #tpu.memory_space<vmem>>, vector<128x4xbf16>,
    %c0_135 = arith.constant 0 : index
    %c0_136 = arith.constant 0 : index
    %c0_137 = arith.constant 0 : index
    %c0_138 = arith.constant 0 : index
    %86 = vector.load %arg2[%c0_135, %c0_136, %c0_137, %c0_138] : memref<1x1x168x4xbf16, #tpu.memory_space<vmem>>, vector<1x1x128x4xbf16>
    %87 = vector.shape_cast %86 : vector<1x1x128x4xbf16> to vector<128x4xbf16>
    %c0_139 = arith.constant 0 : index
    %c108 = arith.constant 108 : index
    %88 = vector.load %arg9[%c0_139, %c108] : memref<128x128xbf16, #tpu.memory_space<vmem>>, vector<128x4xbf16>
    tpu.vector_store %arg9[%c0_139, %c108], %87 {strides = array<i32>} : memref<128x128xbf16, #tpu.memory_space<vmem>>, vector<128x4xbf16>,
    %c0_140 = arith.constant 0 : index
    %c0_141 = arith.constant 0 : index
    %c0_142 = arith.constant 0 : index
    %c0_143 = arith.constant 0 : index
    %89 = vector.load %arg2[%c0_140, %c0_141, %c0_142, %c0_143] : memref<1x1x168x4xbf16, #tpu.memory_space<vmem>>, vector<1x1x128x4xbf16>
    %90 = vector.shape_cast %89 : vector<1x1x128x4xbf16> to vector<128x4xbf16>
    %c0_144 = arith.constant 0 : index
    %c112 = arith.constant 112 : index
    %91 = vector.load %arg9[%c0_144, %c112] : memref<128x128xbf16, #tpu.memory_space<vmem>>, vector<128x4xbf16>
    tpu.vector_store %arg9[%c0_144, %c112], %90 {strides = array<i32>} : memref<128x128xbf16, #tpu.memory_space<vmem>>, vector<128x4xbf16>,
    %c0_145 = arith.constant 0 : index
    %c0_146 = arith.constant 0 : index
    %c0_147 = arith.constant 0 : index
    %c0_148 = arith.constant 0 : index
    %92 = vector.load %arg2[%c0_145, %c0_146, %c0_147, %c0_148] : memref<1x1x168x4xbf16, #tpu.memory_space<vmem>>, vector<1x1x128x4xbf16>
    %93 = vector.shape_cast %92 : vector<1x1x128x4xbf16> to vector<128x4xbf16>
    %c0_149 = arith.constant 0 : index
    %c116 = arith.constant 116 : index
    %94 = vector.load %arg9[%c0_149, %c116] : memref<128x128xbf16, #tpu.memory_space<vmem>>, vector<128x4xbf16>
    tpu.vector_store %arg9[%c0_149, %c116], %93 {strides = array<i32>} : memref<128x128xbf16, #tpu.memory_space<vmem>>, vector<128x4xbf16>,
    %c0_150 = arith.constant 0 : index
    %c0_151 = arith.constant 0 : index
    %c0_152 = arith.constant 0 : index
    %c0_153 = arith.constant 0 : index
    %95 = vector.load %arg2[%c0_150, %c0_151, %c0_152, %c0_153] : memref<1x1x168x4xbf16, #tpu.memory_space<vmem>>, vector<1x1x128x4xbf16>
    %96 = vector.shape_cast %95 : vector<1x1x128x4xbf16> to vector<128x4xbf16>
    %c0_154 = arith.constant 0 : index
    %c120 = arith.constant 120 : index
    %97 = vector.load %arg9[%c0_154, %c120] : memref<128x128xbf16, #tpu.memory_space<vmem>>, vector<128x4xbf16>
    tpu.vector_store %arg9[%c0_154, %c120], %96 {strides = array<i32>} : memref<128x128xbf16, #tpu.memory_space<vmem>>, vector<128x4xbf16>,
    %c0_155 = arith.constant 0 : index
    %c0_156 = arith.constant 0 : index
    %c0_157 = arith.constant 0 : index
    %c0_158 = arith.constant 0 : index
    %98 = vector.load %arg2[%c0_155, %c0_156, %c0_157, %c0_158] : memref<1x1x168x4xbf16, #tpu.memory_space<vmem>>, vector<1x1x128x4xbf16>
    %99 = vector.shape_cast %98 : vector<1x1x128x4xbf16> to vector<128x4xbf16>
    %c0_159 = arith.constant 0 : index
    %c124 = arith.constant 124 : index
    %100 = vector.load %arg9[%c0_159, %c124] : memref<128x128xbf16, #tpu.memory_space<vmem>>, vector<128x4xbf16>
    tpu.vector_store %arg9[%c0_159, %c124], %99 {strides = array<i32>} : memref<128x128xbf16, #tpu.memory_space<vmem>>, vector<128x4xbf16>,
    %c0_160 = arith.constant 0 : index
    %c0_161 = arith.constant 0 : index
    %101 = vector.load %arg9[%c0_160, %c0_161] : memref<128x128xbf16, #tpu.memory_space<vmem>>, vector<128x128xbf16>
    %c0_162 = arith.constant 0 : index
    %c0_163 = arith.constant 0 : index
    %c0_164 = arith.constant 0 : index
    %102 = vector.load %arg5[%c0_162, %c0_163, %c0_164] : memref<1x128x128xbf16, #tpu.memory_space<vmem>>, vector<1x128x128xbf16>
    %103 = vector.shape_cast %102 : vector<1x128x128xbf16> to vector<128x128xbf16>
    %cst_165 = arith.constant dense<0.000000e+00> : vector<128x128xf32>
    %104 = tpu.matmul %101, %103, %cst_165 {dimension_numbers = #tpu.dot_dimension_numbers<[1], [0], [0], [1], [0, 0, 1, 1], [], []>} : vector<128x128xbf16>, vector<128x128xbf16>, vector<128x128xf32> -> vector<128x128xf32>
    %105 = arith.addf %4, %104 : vector<128x128xf32>
    %106 = vector.broadcast %1 : vector<1x128xf32> to vector<128x128xf32>
    %107 = arith.mulf %105, %106 : vector<128x128xf32>
    %108 = vector.broadcast %3 : vector<1x128xf32> to vector<128x128xf32>
    %109 = arith.addf %107, %108 : vector<128x128xf32>
    %110 = arith.negf %109 : vector<128x128xf32>
    %111 = math.exp %110 : vector<128x128xf32>
    %cst_166 = arith.constant 1.000000e+00 : f32
    %112 = vector.broadcast %cst_166 : f32 to vector<128x128xf32>
    %113 = arith.addf %112, %111 : vector<128x128xf32>
    %114 = arith.divf %112, %113 : vector<128x128xf32>
    %115 = arith.mulf %109, %114 : vector<128x128xf32>
    %116 = arith.truncf %115 : vector<128x128xf32> to vector<128x128xbf16>
    %c0_167 = arith.constant 0 : index
    %c0_168 = arith.constant 0 : index
    %c0_169 = arith.constant 0 : index
    %c0_170 = arith.constant 0 : index
    %117 = vector.load %arg8[%c0_167, %c0_168, %c0_169, %c0_170] : memref<1x1x128x128xbf16, #tpu.memory_space<vmem>>, vector<1x1x128x128xbf16>
    %118 = vector.shape_cast %117 : vector<1x1x128x128xbf16> to vector<128x128xbf16>
    %119 = vector.shape_cast %116 : vector<128x128xbf16> to vector<1x1x128x128xbf16>
    tpu.vector_store %arg8[%c0_167, %c0_168, %c0_169, %c0_170], %119 {strides = array<i32>} : memref<1x1x128x128xbf16, #tpu.memory_space<vmem>>, vector<1x1x128x128xbf16>,
    return
  }
  func.func @transform_0(%arg0: i32, %arg1: i32) -> (i32, i32, i32, i32) {
    %c0_i32 = arith.constant 0 : i32
    %c0_i32_0 = arith.constant 0 : i32
    %c0_i32_1 = arith.constant 0 : i32
    return %arg0, %arg1, %c0_i32, %c0_i32_0 : i32, i32, i32, i32
  }
  func.func @transform_1(%arg0: i32, %arg1: i32) -> (i32, i32, i32, i32) {
    %c1_i32 = arith.constant 1 : i32
    %0 = arith.addi %arg1, %c1_i32 : i32
    %c0_i32 = arith.constant 0 : i32
    %c0_i32_0 = arith.constant 0 : i32
    %c0_i32_1 = arith.constant 0 : i32
    return %arg0, %0, %c0_i32, %c0_i32_0 : i32, i32, i32, i32
  }
  func.func @transform_2(%arg0: i32, %arg1: i32) -> (i32, i32, i32, i32) {
    %c2_i32 = arith.constant 2 : i32
    %0 = arith.addi %arg1, %c2_i32 : i32
    %c0_i32 = arith.constant 0 : i32
    %c0_i32_0 = arith.constant 0 : i32
    %c0_i32_1 = arith.constant 0 : i32
    return %arg0, %0, %c0_i32, %c0_i32_0 : i32, i32, i32, i32
  }
  func.func @transform_3(%arg0: i32, %arg1: i32) -> (i32, i32, i32) {
    %c0_i32 = arith.constant 0 : i32
    %c0_i32_0 = arith.constant 0 : i32
    %c0_i32_1 = arith.constant 0 : i32
    %c0_i32_2 = arith.constant 0 : i32
    return %c0_i32, %c0_i32_0, %c0_i32_1 : i32, i32, i32
  }
  func.func @transform_4(%arg0: i32, %arg1: i32) -> (i32, i32, i32) {
    %c0_i32 = arith.constant 0 : i32
    %c0_i32_0 = arith.constant 0 : i32
    %c0_i32_1 = arith.constant 0 : i32
    return %arg0, %c0_i32, %c0_i32_0 : i32, i32, i32
  }
  func.func @transform_5(%arg0: i32, %arg1: i32) -> (i32, i32, i32) {
    %c0_i32 = arith.constant 0 : i32
    %c0_i32_0 = arith.constant 0 : i32
    %c0_i32_1 = arith.constant 0 : i32
    return %arg0, %c0_i32, %c0_i32_0 : i32, i32, i32
  }
  func.func @transform_6(%arg0: i32, %arg1: i32) -> (i32, i32, i32, i32) {
    %c0_i32 = arith.constant 0 : i32
    %c0_i32_0 = arith.constant 0 : i32
    %c0_i32_1 = arith.constant 0 : i32
    return %arg0, %arg1, %c0_i32, %c0_i32_0 : i32, i32, i32, i32
  }
}

</mosaic_0001>

<llo_original>
// kernel: tpu_custom_call.1
$region0: #{tpu_custom_call.1}
  #allocation0 [shape = 'u32[]', space=smem, size = 0x4, offset = 0x4, fixed_abs, tag = 'smem constant byte address 0x4 - core index']
  #allocation1 [shape = 'u32[72,128]{1,0:T(1,128)}', space=vmem, size = 0x9000, scoped, tag = 'internal scratch']
  #allocation2 [shape = 'bf16[128,128]{1,0:T(8,128)(2,1)}', space=vmem, size = 0x8000, scoped, tag = 'scratch operand']
  %s0 = inlined_call_operand.vmem [shape: bf16[2,10,168,4], index: 0, kind: input, shape index: {}]
  %s1 = inlined_call_operand.vmem [shape: bf16[2,10,168,4], index: 1, kind: input, shape index: {}]
  %s2 = inlined_call_operand.vmem [shape: bf16[2,10,168,4], index: 2, kind: input, shape index: {}]
  %s3 = inlined_call_operand.vmem [shape: bf16[1,128,128], index: 3, kind: input, shape index: {}]
  %s4 = inlined_call_operand.vmem [shape: f32[2,1,128], index: 4, kind: input, shape index: {}]
  %s5 = inlined_call_operand.vmem [shape: f32[2,1,128], index: 5, kind: input, shape index: {}]
  %s6 = inlined_call_operand.hbm [shape: bf16[2,8,128,128], index: 6, kind: output, shape index: {}]
  %s7 = sld [smem:[#allocation0]]
  $region57: #{tpu_custom_call.1} parent=0
    _
  %s9 = ssub.s32 1, %s7
  %s10 = scalar_select 0, %s9, %s7
  $region1: #{tpu_custom_call.1} parent=0
    #allocation3 [shape = 'u8[65536]{0}', space=vmem, size = 0x10000, scoped, tag = 'output window, operand 0']
    #allocation4 [shape = 's32[2]{0}', space=sflag, size = 0x8, scoped, tag = 'scoped memory for tpu_custom_call.1']
    %11 = vsyncpa [#allocation4], 0
    %s12 = scalar_lea.sflag [#allocation4], 1
    %13 = vsyncpa %s12, 0
    loop: start=0, step=1, limit=18
    $region2: #{tpu_custom_call.1} parent=1 // loop_pre_header
      _
    $region3: #{tpu_custom_call.1} parent=1 // loop_header
      %s15 = sphi 0, %s19
      %p16 = scmp.ge.s32.totalorder %s15, 18
      %s22 = sphi 0, %s34
      %s23 = sphi 0, %s30
      %s24 = sphi 0, %s22
      %s25 = sphi 0, %s23
      %s26 = sphi 0, %s24
      %s27 = sphi 0, %s25
      %s39 = sphi 0, %s41
      %s42 = sphi 0, %s39
      %s43 = sphi 0, %s42
      %s59 = sphi 0, %s43
      %s69 = sphi 0, %s71
      %s72 = sphi 0, %s69
      %s73 = sphi 0, %s72
      %s89 = sphi 0, %s73
      %s99 = sphi 0, %s101
      %s102 = sphi 0, %s99
      %s103 = sphi 0, %s102
      %s119 = sphi 0, %s103
      %s123 = sphi 0, %s123
      %s125 = sphi 0, %s123
      %s126 = sphi 0, %s125
      %s140 = sphi 0, %s126
      %s146 = sphi 0, %s148
      %s149 = sphi 0, %s146
      %s150 = sphi 0, %s149
      %s166 = sphi 0, %s150
      %s172 = sphi 0, %s174
      %s175 = sphi 0, %s172
      %s176 = sphi 0, %s175
      %s192 = sphi 0, %s176
      %s200 = sphi 0, %s202
      %s203 = sphi 0, %s200
      %s204 = sphi 0, %s203
      %s220 = sphi 0, %s204
    $region4: #{tpu_custom_call.1} parent=1 // loop_header_branch
      %18 = sbr.rel (%p16) target = $region8
    $region5: #{tpu_custom_call.1} parent=1 // loop_body
      %s20 = ssub.s32 %s15, 1
      %s21 = ssub.s32 %s15, 2
      %s28 = sadd.s32 1, %s23
      %p29 = scmp.ge.s32.totalorder %s28, 8
      %s30 = scalar_select %p29, 0, %s28
      %s31 = sadd.s32 1, %s22
      %s32 = scalar_select %p29, %s31, %s22
      %p33 = scmp.ge.s32.totalorder %s32, 2
      %s34 = scalar_select %p33, 0, %s32
      %s35 = ssub.s32 %s22, %s34
      %s36 = ssub.s32 %s23, %s30
      %s37 = sor.u32 %s35, %s36
      %p38 = scmp.eq.s32.totalorder %s37, 0
      %s40 = sadd.s32 %s39, 1
      %s41 = scalar_select %p38, %s39, %s40
      %p44 = pneg %p38
      %p45 = scmp.eq.s32.totalorder %s15, 15
      %p46 = por %p44, %p45
      %p47 = scmp.ne.s32.totalorder %s39, %s42
      %p48 = scmp.eq.s32.totalorder %s15, 0
      %p49 = por %p47, %p48
      %p50 = scmp.ne.s32.totalorder %s39, %s42
      %p51 = scmp.eq.s32.totalorder %s20, 15
      %p52 = por %p50, %p51
      %p53 = scmp.ne.s32.totalorder %s42, %s43
      %p54 = scmp.eq.s32.totalorder %s20, 0
      %p55 = por %p53, %p54
      %p56 = scmp.ne.s32.totalorder %s42, %s43
      %p57 = scmp.eq.s32.totalorder %s21, 15
      %p58 = por %p56, %p57
      %p60 = scmp.ne.s32.totalorder %s43, %s59
      %p61 = scmp.eq.s32.totalorder %s21, 0
      %p62 = por %p60, %p61
      %s63 = sadd.s32 %s23, 1
      %s64 = sadd.s32 %s30, 1
      %s65 = ssub.s32 %s22, %s34
      %s66 = ssub.s32 %s63, %s64
      %s67 = sor.u32 %s65, %s66
      %p68 = scmp.eq.s32.totalorder %s67, 0
      %s70 = sadd.s32 %s69, 1
      %s71 = scalar_select %p68, %s69, %s70
      %p74 = pneg %p68
      %p75 = scmp.eq.s32.totalorder %s15, 15
      %p76 = por %p74, %p75
      %p77 = scmp.ne.s32.totalorder %s69, %s72
      %p78 = scmp.eq.s32.totalorder %s15, 0
      %p79 = por %p77, %p78
      %p80 = scmp.ne.s32.totalorder %s69, %s72
      %p81 = scmp.eq.s32.totalorder %s20, 15
      %p82 = por %p80, %p81
      %p83 = scmp.ne.s32.totalorder %s72, %s73
      %p84 = scmp.eq.s32.totalorder %s20, 0
      %p85 = por %p83, %p84
      %p86 = scmp.ne.s32.totalorder %s72, %s73
      %p87 = scmp.eq.s32.totalorder %s21, 15
      %p88 = por %p86, %p87
      %p90 = scmp.ne.s32.totalorder %s73, %s89
      %p91 = scmp.eq.s32.totalorder %s21, 0
      %p92 = por %p90, %p91
      %s93 = sadd.s32 %s23, 2
      %s94 = sadd.s32 %s30, 2
      %s95 = ssub.s32 %s22, %s34
      %s96 = ssub.s32 %s93, %s94
      %s97 = sor.u32 %s95, %s96
      %p98 = scmp.eq.s32.totalorder %s97, 0
      %s100 = sadd.s32 %s99, 1
      %s101 = scalar_select %p98, %s99, %s100
      %p104 = pneg %p98
      %p105 = scmp.eq.s32.totalorder %s15, 15
      %p106 = por %p104, %p105
      %p107 = scmp.ne.s32.totalorder %s99, %s102
      %p108 = scmp.eq.s32.totalorder %s15, 0
      %p109 = por %p107, %p108
      %p110 = scmp.ne.s32.totalorder %s99, %s102
      %p111 = scmp.eq.s32.totalorder %s20, 15
      %p112 = por %p110, %p111
      %p113 = scmp.ne.s32.totalorder %s102, %s103
      %p114 = scmp.eq.s32.totalorder %s20, 0
      %p115 = por %p113, %p114
      %p116 = scmp.ne.s32.totalorder %s102, %s103
      %p117 = scmp.eq.s32.totalorder %s21, 15
      %p118 = por %p116, %p117
      %p120 = scmp.ne.s32.totalorder %s103, %s119
      %p121 = scmp.eq.s32.totalorder %s21, 0
      %p122 = por %p120, %p121
      %s124 = sadd.s32 %s123, 1
      %p127 = scmp.eq.s32.totalorder %s15, 15
      %p128 = scmp.ne.s32.totalorder %s123, %s125
      %p129 = scmp.eq.s32.totalorder %s15, 0
      %p130 = por %p128, %p129
      %p131 = scmp.ne.s32.totalorder %s123, %s125
      %p132 = scmp.eq.s32.totalorder %s20, 15
      %p133 = por %p131, %p132
      %p134 = scmp.ne.s32.totalorder %s125, %s126
      %p135 = scmp.eq.s32.totalorder %s20, 0
      %p136 = por %p134, %p135
      %p137 = scmp.ne.s32.totalorder %s125, %s126
      %p138 = scmp.eq.s32.totalorder %s21, 15
      %p139 = por %p137, %p138
      %p141 = scmp.ne.s32.totalorder %s126, %s140
      %p142 = scmp.eq.s32.totalorder %s21, 0
      %p143 = por %p141, %p142
      %s144 = ssub.s32 %s22, %s34
      %p145 = scmp.eq.s32.totalorder %s144, 0
      %s147 = sadd.s32 %s146, 1
      %s148 = scalar_select %p145, %s146, %s147
      %p151 = pneg %p145
      %p152 = scmp.eq.s32.totalorder %s15, 15
      %p153 = por %p151, %p152
      %p154 = scmp.ne.s32.totalorder %s146, %s149
      %p155 = scmp.eq.s32.totalorder %s15, 0
      %p156 = por %p154, %p155
      %p157 = scmp.ne.s32.totalorder %s146, %s149
      %p158 = scmp.eq.s32.totalorder %s20, 15
      %p159 = por %p157, %p158
      %p160 = scmp.ne.s32.totalorder %s149, %s150
      %p161 = scmp.eq.s32.totalorder %s20, 0
      %p162 = por %p160, %p161
      %p163 = scmp.ne.s32.totalorder %s149, %s150
      %p164 = scmp.eq.s32.totalorder %s21, 15
      %p165 = por %p163, %p164
      %p167 = scmp.ne.s32.totalorder %s150, %s166
      %p168 = scmp.eq.s32.totalorder %s21, 0
      %p169 = por %p167, %p168
      %s170 = ssub.s32 %s22, %s34
      %p171 = scmp.eq.s32.totalorder %s170, 0
      %s173 = sadd.s32 %s172, 1
      %s174 = scalar_select %p171, %s172, %s173
      %p177 = pneg %p171
      %p178 = scmp.eq.s32.totalorder %s15, 15
      %p179 = por %p177, %p178
      %p180 = scmp.ne.s32.totalorder %s172, %s175
      %p181 = scmp.eq.s32.totalorder %s15, 0
      %p182 = por %p180, %p181
      %p183 = scmp.ne.s32.totalorder %s172, %s175
      %p184 = scmp.eq.s32.totalorder %s20, 15
      %p185 = por %p183, %p184
      %p186 = scmp.ne.s32.totalorder %s175, %s176
      %p187 = scmp.eq.s32.totalorder %s20, 0
      %p188 = por %p186, %p187
      %p189 = scmp.ne.s32.totalorder %s175, %s176
      %p190 = scmp.eq.s32.totalorder %s21, 15
      %p191 = por %p189, %p190
      %p193 = scmp.ne.s32.totalorder %s176, %s192
      %p194 = scmp.eq.s32.totalorder %s21, 0
      %p195 = por %p193, %p194
      %s196 = ssub.s32 %s22, %s34
      %s197 = ssub.s32 %s23, %s30
      %s198 = sor.u32 %s196, %s197
      %p199 = scmp.eq.s32.totalorder %s198, 0
      %s201 = sadd.s32 %s200, 1
      %s202 = scalar_select %p199, %s200, %s201
      %p205 = pneg %p199
      %p206 = scmp.eq.s32.totalorder %s15, 15
      %p207 = por %p205, %p206
      %p208 = scmp.ne.s32.totalorder %s200, %s203
      %p209 = scmp.eq.s32.totalorder %s15, 0
      %p210 = por %p208, %p209
      %p211 = scmp.ne.s32.totalorder %s200, %s203
      %p212 = scmp.eq.s32.totalorder %s20, 15
      %p213 = por %p211, %p212
      %p214 = scmp.ne.s32.totalorder %s203, %s204
      %p215 = scmp.eq.s32.totalorder %s20, 0
      %p216 = por %p214, %p215
      %p217 = scmp.ne.s32.totalorder %s203, %s204
      %p218 = scmp.eq.s32.totalorder %s21, 15
      %p219 = por %p217, %p218
      %p221 = scmp.ne.s32.totalorder %s204, %s220
      %p222 = scmp.eq.s32.totalorder %s21, 0
      %p223 = por %p221, %p222
      %p224 = scmp.le.s32.totalorder 1, %s15
      %p225 = scmp.lt.s32.totalorder %s15, 17
      %p226 = pnand %p224, %p225
      %p227 = pneg %p226
      // Predicated region
      $region9: #{tpu_custom_call.1} parent=5 // pred_check
        _
      $region10: #{tpu_custom_call.1} parent=5 // pred_check_branch
        %229 = sbr.rel (%p226) target = $region12
      $region11: #{tpu_custom_call.1} parent=5 // pred_region
        %s230 = ssub.s32 %s15, 1
        // Predicated region
        $region13: #{tpu_custom_call.1} parent=11 // pred_check
          %p231 = pneg %p136
        $region14: #{tpu_custom_call.1} parent=11 // pred_check_branch
          %233 = sbr.rel (%p231) target = $region16
        $region15: #{tpu_custom_call.1} parent=11 // pred_region
          _
        $region16: #{tpu_custom_call.1} parent=11 // pred_fallthru
          _
      $region12: #{tpu_custom_call.1} parent=5 // pred_fallthru
        _
      %p234 = scmp.lt.s32.totalorder %s15, 16
      // Predicated region
      $region17: #{tpu_custom_call.1} parent=5 // pred_check
        %p235 = pneg %p234
      $region18: #{tpu_custom_call.1} parent=5 // pred_check_branch
        %237 = sbr.rel (%p235) target = $region20
      $region19: #{tpu_custom_call.1} parent=5 // pred_region
        // Predicated region
        $region21: #{tpu_custom_call.1} parent=19 // pred_check
          %p238 = pneg %p49
        $region22: #{tpu_custom_call.1} parent=19 // pred_check_branch
          %240 = sbr.rel (%p238) target = $region24
        $region23: #{tpu_custom_call.1} parent=19 // pred_region
          %p241 = scmp.lt.s32.totalorder %s22, 1
          %s242 = scalar_select %p241, %s22, 1
          %p243 = scmp.lt.s32.totalorder %s23, 9
          %s244 = scalar_select %p243, %s23, 9
          %s245 = smul.addr %s244, 21
          %s246 = smul.addr %s242, 210
          %s247 = sadd.s32 %s245, %s246
          %s248 = smul.addr %s247, 4
          %s249 = scalar_lea.vmem %s0, %s248
        $region24: #{tpu_custom_call.1} parent=19 // pred_fallthru
          _
        // Predicated region
        $region25: #{tpu_custom_call.1} parent=19 // pred_check
          %p250 = pneg %p79
        $region26: #{tpu_custom_call.1} parent=19 // pred_check_branch
          %252 = sbr.rel (%p250) target = $region28
        $region27: #{tpu_custom_call.1} parent=19 // pred_region
          %s253 = sadd.s32 %s23, 1
          %p254 = scmp.lt.s32.totalorder %s22, 1
          %s255 = scalar_select %p254, %s22, 1
          %p256 = scmp.lt.s32.totalorder %s253, 9
          %s257 = scalar_select %p256, %s253, 9
          %s258 = smul.addr %s257, 21
          %s259 = smul.addr %s255, 210
          %s260 = sadd.s32 %s258, %s259
          %s261 = smul.addr %s260, 4
          %s262 = scalar_lea.vmem %s1, %s261
          %s263 = sadd.s32 %s23, 1
        $region28: #{tpu_custom_call.1} parent=19 // pred_fallthru
          _
        // Predicated region
        $region29: #{tpu_custom_call.1} parent=19 // pred_check
          %p264 = pneg %p109
        $region30: #{tpu_custom_call.1} parent=19 // pred_check_branch
          %266 = sbr.rel (%p264) target = $region32
        $region31: #{tpu_custom_call.1} parent=19 // pred_region
          %s267 = sadd.s32 %s23, 2
          %p268 = scmp.lt.s32.totalorder %s22, 1
          %s269 = scalar_select %p268, %s22, 1
          %p270 = scmp.lt.s32.totalorder %s267, 9
          %s271 = scalar_select %p270, %s267, 9
          %s272 = smul.addr %s271, 21
          %s273 = smul.addr %s269, 210
          %s274 = sadd.s32 %s272, %s273
          %s275 = smul.addr %s274, 4
          %s276 = scalar_lea.vmem %s2, %s275
          %s277 = sadd.s32 %s23, 2
        $region32: #{tpu_custom_call.1} parent=19 // pred_fallthru
          _
        // Predicated region
        $region33: #{tpu_custom_call.1} parent=19 // pred_check
          %p278 = pneg %p156
        $region34: #{tpu_custom_call.1} parent=19 // pred_check_branch
          %280 = sbr.rel (%p278) target = $region36
        $region35: #{tpu_custom_call.1} parent=19 // pred_region
          %p281 = scmp.lt.s32.totalorder %s22, 1
          %s282 = scalar_select %p281, %s22, 1
          %s283 = scalar_lea.vmem %s4, %s282
        $region36: #{tpu_custom_call.1} parent=19 // pred_fallthru
          _
        // Predicated region
        $region37: #{tpu_custom_call.1} parent=19 // pred_check
          %p284 = pneg %p182
        $region38: #{tpu_custom_call.1} parent=19 // pred_check_branch
          %286 = sbr.rel (%p284) target = $region40
        $region39: #{tpu_custom_call.1} parent=19 // pred_region
          %p287 = scmp.lt.s32.totalorder %s22, 1
          %s288 = scalar_select %p287, %s22, 1
          %s289 = scalar_lea.vmem %s5, %s288
        $region40: #{tpu_custom_call.1} parent=19 // pred_fallthru
          _
      $region20: #{tpu_custom_call.1} parent=5 // pred_fallthru
        _
      %p290 = scmp.le.s32.totalorder 1, %s15
      %p291 = scmp.lt.s32.totalorder %s15, 17
      %p292 = pnand %p290, %p291
      %p293 = pneg %p292
      // Predicated region
      $region41: #{tpu_custom_call.1} parent=5 // pred_check
        _
      $region42: #{tpu_custom_call.1} parent=5 // pred_check_branch
        %295 = sbr.rel (%p292) target = $region44
      $region43: #{tpu_custom_call.1} parent=5 // pred_region
        %s296 = ssub.s32 %s15, 1
        %p297 = scmp.lt.s32.totalorder %s24, 1
        %s298 = scalar_select %p297, %s24, 1
        %p299 = scmp.lt.s32.totalorder %s25, 9
        %s300 = scalar_select %p299, %s25, 9
        %s301 = smul.addr %s300, 21
        %s302 = smul.addr %s298, 210
        %s303 = sadd.s32 %s301, %s302
        %s304 = smul.addr %s303, 4
        %s305 = scalar_lea.vmem %s0, %s304
        %p306 = pneg %p55
        %p307 = pneg %p52
        %s308 = sadd.s32 %s25, 1
        %p309 = scmp.lt.s32.totalorder %s24, 1
        %s310 = scalar_select %p309, %s24, 1
        %p311 = scmp.lt.s32.totalorder %s308, 9
        %s312 = scalar_select %p311, %s308, 9
        %s313 = smul.addr %s312, 21
        %s314 = smul.addr %s310, 210
        %s315 = sadd.s32 %s313, %s314
        %s316 = smul.addr %s315, 4
        %s317 = scalar_lea.vmem %s1, %s316
        %p318 = pneg %p85
        %p319 = pneg %p82
        %s320 = sadd.s32 %s25, 2
        %p321 = scmp.lt.s32.totalorder %s24, 1
        %s322 = scalar_select %p321, %s24, 1
        %p323 = scmp.lt.s32.totalorder %s320, 9
        %s324 = scalar_select %p323, %s320, 9
        %s325 = smul.addr %s324, 21
        %s326 = smul.addr %s322, 210
        %s327 = sadd.s32 %s325, %s326
        %s328 = smul.addr %s327, 4
        %s329 = scalar_lea.vmem %s2, %s328
        %p330 = pneg %p115
        %p331 = pneg %p112
        %p332 = pneg %p136
        %p333 = pneg %p133
        %p334 = scmp.lt.s32.totalorder %s24, 1
        %s335 = scalar_select %p334, %s24, 1
        %s336 = scalar_lea.vmem %s4, %s335
        %p337 = pneg %p162
        %p338 = pneg %p159
        %p339 = scmp.lt.s32.totalorder %s24, 1
        %s340 = scalar_select %p339, %s24, 1
        %s341 = scalar_lea.vmem %s5, %s340
        %p342 = pneg %p188
        %p343 = pneg %p185
        %p344 = pneg %p216
        %p345 = pneg %p213
        %s346 = sand.u32 %s203, 1
        %s347 = scalar_lea.sflag [#allocation4], %s346
        %s348 = sand.u32 %s203, 1
        %s349 = smul.addr %s348, 64
        %s350 = scalar_lea.vmem [#allocation3], %s349
        %p351 = scmp.lt.s32.totalorder %s24, 1
        %s352 = scalar_select %p351, %s24, 1
        %p353 = scmp.lt.s32.totalorder %s25, 9
        %s354 = scalar_select %p353, %s25, 9
        %s355 = smul.addr %s354, 21
        %s356 = smul.addr %s352, 210
        %s357 = sadd.s32 %s355, %s356
        %s358 = smul.addr %s357, 4
        %s359 = scalar_lea.vmem %s0, %s358
        %s360 = sadd.s32 %s25, 1
        %p361 = scmp.lt.s32.totalorder %s24, 1
        %s362 = scalar_select %p361, %s24, 1
        %p363 = scmp.lt.s32.totalorder %s360, 9
        %s364 = scalar_select %p363, %s360, 9
        %s365 = smul.addr %s364, 21
        %s366 = smul.addr %s362, 210
        %s367 = sadd.s32 %s365, %s366
        %s368 = smul.addr %s367, 4
        %s369 = scalar_lea.vmem %s1, %s368
        %s370 = sadd.s32 %s25, 1
        %s371 = sadd.s32 %s25, 2
        %p372 = scmp.lt.s32.totalorder %s24, 1
        %s373 = scalar_select %p372, %s24, 1
        %p374 = scmp.lt.s32.totalorder %s371, 9
        %s375 = scalar_select %p374, %s371, 9
        %s376 = smul.addr %s375, 21
        %s377 = smul.addr %s373, 210
        %s378 = sadd.s32 %s376, %s377
        %s379 = smul.addr %s378, 4
        %s380 = scalar_lea.vmem %s2, %s379
        %s381 = sadd.s32 %s25, 2
        %p382 = scmp.lt.s32.totalorder %s24, 1
        %s383 = scalar_select %p382, %s24, 1
        %s384 = scalar_lea.vmem %s4, %s383
        %p385 = scmp.lt.s32.totalorder %s24, 1
        %s386 = scalar_select %p385, %s24, 1
        %s387 = scalar_lea.vmem %s5, %s386
        %v388 = vld [vmem:[%s384] sm:$0x1]
        %v389 = vld [vmem:[%s387] sm:$0x1]
        %v390 = vld [vmem:[%s359] sm:$0xf]
        %v391 = vld [vmem:[%s359 + $0x4] sm:$0xf]
        %v392 = vld [vmem:[%s359 + $0x8] sm:$0xf]
        %v393 = vld [vmem:[%s359 + $0xc] sm:$0xf]
        %v394 = vld [vmem:[%s359 + $0x10] sm:$0xf]
        %v395 = vld [vmem:[%s359 + $0x14] sm:$0xf]
        %v396 = vld [vmem:[%s359 + $0x18] sm:$0xf]
        %v397 = vld [vmem:[%s359 + $0x1c] sm:$0xf]
        %v398 = vld [vmem:[%s359 + $0x20] sm:$0xf]
        %v399 = vld [vmem:[%s359 + $0x24] sm:$0xf]
        %v400 = vld [vmem:[%s359 + $0x28] sm:$0xf]
        %v401 = vld [vmem:[%s359 + $0x2c] sm:$0xf]
        %v402 = vld [vmem:[%s359 + $0x30] sm:$0xf]
        %v403 = vld [vmem:[%s359 + $0x34] sm:$0xf]
        %v404 = vld [vmem:[%s359 + $0x38] sm:$0xf]
        %v405 = vld [vmem:[%s359 + $0x3c] sm:$0xf]
        %vm406 = vcmask 27648
        %407 = vst.msk [vmem:[#allocation2] sm:$0xf] %vm406, %v390
        %408 = vst.msk [vmem:[#allocation2 + $0x4] sm:$0xf] %vm406, %v391
        %409 = vst.msk [vmem:[#allocation2 + $0x8] sm:$0xf] %vm406, %v392
        %410 = vst.msk [vmem:[#allocation2 + $0xc] sm:$0xf] %vm406, %v393
        %411 = vst.msk [vmem:[#allocation2 + $0x10] sm:$0xf] %vm406, %v394
        %412 = vst.msk [vmem:[#allocation2 + $0x14] sm:$0xf] %vm406, %v395
        %413 = vst.msk [vmem:[#allocation2 + $0x18] sm:$0xf] %vm406, %v396
        %414 = vst.msk [vmem:[#allocation2 + $0x1c] sm:$0xf] %vm406, %v397
        %415 = vst.msk [vmem:[#allocation2 + $0x20] sm:$0xf] %vm406, %v398
        %416 = vst.msk [vmem:[#allocation2 + $0x24] sm:$0xf] %vm406, %v399
        %417 = vst.msk [vmem:[#allocation2 + $0x28] sm:$0xf] %vm406, %v400
        %418 = vst.msk [vmem:[#allocation2 + $0x2c] sm:$0xf] %vm406, %v401
        %419 = vst.msk [vmem:[#allocation2 + $0x30] sm:$0xf] %vm406, %v402
        %420 = vst.msk [vmem:[#allocation2 + $0x34] sm:$0xf] %vm406, %v403
        %421 = vst.msk [vmem:[#allocation2 + $0x38] sm:$0xf] %vm406, %v404
        %422 = vst.msk [vmem:[#allocation2 + $0x3c] sm:$0xf] %vm406, %v405
        %v423 = vld [vmem:[%s359] sm:$0xf]
        %v424 = vld [vmem:[%s359 + $0x4] sm:$0xf]
        %v425 = vld [vmem:[%s359 + $0x8] sm:$0xf]
        %v426 = vld [vmem:[%s359 + $0xc] sm:$0xf]
        %v427 = vld [vmem:[%s359 + $0x10] sm:$0xf]
        %v428 = vld [vmem:[%s359 + $0x14] sm:$0xf]
        %v429 = vld [vmem:[%s359 + $0x18] sm:$0xf]
        %v430 = vld [vmem:[%s359 + $0x1c] sm:$0xf]
        %v431 = vld [vmem:[%s359 + $0x20] sm:$0xf]
        %v432 = vld [vmem:[%s359 + $0x24] sm:$0xf]
        %v433 = vld [vmem:[%s359 + $0x28] sm:$0xf]
        %v434 = vld [vmem:[%s359 + $0x2c] sm:$0xf]
        %v435 = vld [vmem:[%s359 + $0x30] sm:$0xf]
        %v436 = vld [vmem:[%s359 + $0x34] sm:$0xf]
        %v437 = vld [vmem:[%s359 + $0x38] sm:$0xf]
        %v438 = vld [vmem:[%s359 + $0x3c] sm:$0xf]
        %v439 = vld [vmem:[%s359 + $0x40] sm:$0x1]
        %vm440 = vsmask.f32 3328
        %vm441 = vsmask.f32 7440
        %vm442 = vmor %vm440, %vm441
        %v444 = vshrl.u32 %v423, 16
        %v446 = vrot.slane %v444, 4
        %v447 = vshll.u32 %v423, 16
        %v449 = vrot.slane %v447, 5
        %v450 = vor.u32 %v446, %v449
        %v451 = vrot.slane %v450, 4
        %v453 = vshll.u32 %v424, 16
        %v455 = vrot.slane %v453, 5
        %v456 = vsel %vm442, %v451, %v455
        %v457 = vshrl.u32 %v424, 16
        %v459 = vrot.slane %v457, 4
        %v460 = vor.u32 %v459, %v455
        %v461 = vrot.slane %v460, 4
        %v463 = vshll.u32 %v425, 16
        %v465 = vrot.slane %v463, 5
        %v466 = vsel %vm442, %v461, %v465
        %v467 = vshrl.u32 %v425, 16
        %v469 = vrot.slane %v467, 4
        %v470 = vor.u32 %v469, %v465
        %v471 = vrot.slane %v470, 4
        %v473 = vshll.u32 %v426, 16
        %v475 = vrot.slane %v473, 5
        %v476 = vsel %vm442, %v471, %v475
        %v477 = vshrl.u32 %v426, 16
        %v479 = vrot.slane %v477, 4
        %v480 = vor.u32 %v479, %v475
        %v481 = vrot.slane %v480, 4
        %v483 = vshll.u32 %v427, 16
        %v485 = vrot.slane %v483, 5
        %v486 = vsel %vm442, %v481, %v485
        %v487 = vshrl.u32 %v427, 16
        %v489 = vrot.slane %v487, 4
        %v490 = vor.u32 %v489, %v485
        %v491 = vrot.slane %v490, 4
        %v493 = vshll.u32 %v428, 16
        %v495 = vrot.slane %v493, 5
        %v496 = vsel %vm442, %v491, %v495
        %v497 = vshrl.u32 %v428, 16
        %v499 = vrot.slane %v497, 4
        %v500 = vor.u32 %v499, %v495
        %v501 = vrot.slane %v500, 4
        %v503 = vshll.u32 %v429, 16
        %v505 = vrot.slane %v503, 5
        %v506 = vsel %vm442, %v501, %v505
        %v507 = vshrl.u32 %v429, 16
        %v509 = vrot.slane %v507, 4
        %v510 = vor.u32 %v509, %v505
        %v511 = vrot.slane %v510, 4
        %v513 = vshll.u32 %v430, 16
        %v515 = vrot.slane %v513, 5
        %v516 = vsel %vm442, %v511, %v515
        %v517 = vshrl.u32 %v430, 16
        %v519 = vrot.slane %v517, 4
        %v520 = vor.u32 %v519, %v515
        %v521 = vrot.slane %v520, 4
        %v523 = vshll.u32 %v431, 16
        %v525 = vrot.slane %v523, 5
        %v526 = vsel %vm442, %v521, %v525
        %v527 = vshrl.u32 %v431, 16
        %v529 = vrot.slane %v527, 4
        %v530 = vor.u32 %v529, %v525
        %v531 = vrot.slane %v530, 4
        %v533 = vshll.u32 %v432, 16
        %v535 = vrot.slane %v533, 5
        %v536 = vsel %vm442, %v531, %v535
        %v537 = vshrl.u32 %v432, 16
        %v539 = vrot.slane %v537, 4
        %v540 = vor.u32 %v539, %v535
        %v541 = vrot.slane %v540, 4
        %v543 = vshll.u32 %v433, 16
        %v545 = vrot.slane %v543, 5
        %v546 = vsel %vm442, %v541, %v545
        %v547 = vshrl.u32 %v433, 16
        %v549 = vrot.slane %v547, 4
        %v550 = vor.u32 %v549, %v545
        %v551 = vrot.slane %v550, 4
        %v553 = vshll.u32 %v434, 16
        %v555 = vrot.slane %v553, 5
        %v556 = vsel %vm442, %v551, %v555
        %v557 = vshrl.u32 %v434, 16
        %v559 = vrot.slane %v557, 4
        %v560 = vor.u32 %v559, %v555
        %v561 = vrot.slane %v560, 4
        %v563 = vshll.u32 %v435, 16
        %v565 = vrot.slane %v563, 5
        %v566 = vsel %vm442, %v561, %v565
        %v567 = vshrl.u32 %v435, 16
        %v569 = vrot.slane %v567, 4
        %v570 = vor.u32 %v569, %v565
        %v571 = vrot.slane %v570, 4
        %v573 = vshll.u32 %v436, 16
        %v575 = vrot.slane %v573, 5
        %v576 = vsel %vm442, %v571, %v575
        %v577 = vshrl.u32 %v436, 16
        %v579 = vrot.slane %v577, 4
        %v580 = vor.u32 %v579, %v575
        %v581 = vrot.slane %v580, 4
        %v583 = vshll.u32 %v437, 16
        %v585 = vrot.slane %v583, 5
        %v586 = vsel %vm442, %v581, %v585
        %v587 = vshrl.u32 %v437, 16
        %v589 = vrot.slane %v587, 4
        %v590 = vor.u32 %v589, %v585
        %v591 = vrot.slane %v590, 4
        %v593 = vshll.u32 %v438, 16
        %v595 = vrot.slane %v593, 5
        %v596 = vsel %vm442, %v591, %v595
        %v597 = vshrl.u32 %v438, 16
        %v599 = vrot.slane %v597, 4
        %v600 = vor.u32 %v599, %v595
        %v601 = vrot.slane %v600, 4
        %v603 = vshll.u32 %v439, 16
        %v605 = vrot.slane %v603, 5
        %v606 = vsel %vm442, %v601, %v605
        %607 = vrot.lane.b32.xlu0 %v456, 4
        %v608 = vpop.permute.xlu0 %607
        %609 = vrot.lane.b32.xlu0 %v466, 4
        %v610 = vpop.permute.xlu0 %609
        %611 = vrot.lane.b32.xlu0 %v476, 4
        %v612 = vpop.permute.xlu0 %611
        %613 = vrot.lane.b32.xlu0 %v486, 4
        %v614 = vpop.permute.xlu0 %613
        %615 = vrot.lane.b32.xlu0 %v496, 4
        %v616 = vpop.permute.xlu0 %615
        %617 = vrot.lane.b32.xlu0 %v506, 4
        %v618 = vpop.permute.xlu0 %617
        %619 = vrot.lane.b32.xlu0 %v516, 4
        %v620 = vpop.permute.xlu0 %619
        %621 = vrot.lane.b32.xlu0 %v526, 4
        %v622 = vpop.permute.xlu0 %621
        %623 = vrot.lane.b32.xlu0 %v536, 4
        %v624 = vpop.permute.xlu0 %623
        %625 = vrot.lane.b32.xlu0 %v546, 4
        %v626 = vpop.permute.xlu0 %625
        %627 = vrot.lane.b32.xlu0 %v556, 4
        %v628 = vpop.permute.xlu0 %627
        %629 = vrot.lane.b32.xlu0 %v566, 4
        %v630 = vpop.permute.xlu0 %629
        %631 = vrot.lane.b32.xlu0 %v576, 4
        %v632 = vpop.permute.xlu0 %631
        %633 = vrot.lane.b32.xlu0 %v586, 4
        %v634 = vpop.permute.xlu0 %633
        %635 = vrot.lane.b32.xlu0 %v596, 4
        %v636 = vpop.permute.xlu0 %635
        %637 = vrot.lane.b32.xlu0 %v606, 4
        %v638 = vpop.permute.xlu0 %637
        %vm655 = vcmask 60448
        %656 = vst.msk [vmem:[#allocation2] sm:$0xf] %vm655, %v608
        %657 = vst.msk [vmem:[#allocation2 + $0x4] sm:$0xf] %vm655, %v610
        %658 = vst.msk [vmem:[#allocation2 + $0x8] sm:$0xf] %vm655, %v612
        %659 = vst.msk [vmem:[#allocation2 + $0xc] sm:$0xf] %vm655, %v614
        %660 = vst.msk [vmem:[#allocation2 + $0x10] sm:$0xf] %vm655, %v616
        %661 = vst.msk [vmem:[#allocation2 + $0x14] sm:$0xf] %vm655, %v618
        %662 = vst.msk [vmem:[#allocation2 + $0x18] sm:$0xf] %vm655, %v620
        %663 = vst.msk [vmem:[#allocation2 + $0x1c] sm:$0xf] %vm655, %v622
        %664 = vst.msk [vmem:[#allocation2 + $0x20] sm:$0xf] %vm655, %v624
        %665 = vst.msk [vmem:[#allocation2 + $0x24] sm:$0xf] %vm655, %v626
        %666 = vst.msk [vmem:[#allocation2 + $0x28] sm:$0xf] %vm655, %v628
        %667 = vst.msk [vmem:[#allocation2 + $0x2c] sm:$0xf] %vm655, %v630
        %668 = vst.msk [vmem:[#allocation2 + $0x30] sm:$0xf] %vm655, %v632
        %669 = vst.msk [vmem:[#allocation2 + $0x34] sm:$0xf] %vm655, %v634
        %670 = vst.msk [vmem:[#allocation2 + $0x38] sm:$0xf] %vm655, %v636
        %671 = vst.msk [vmem:[#allocation2 + $0x3c] sm:$0xf] %vm655, %v638
        %v672 = vld [vmem:[%s359] sm:$0xe]
        %v673 = vld [vmem:[%s359 + $0x4] sm:$0xf]
        %v674 = vld [vmem:[%s359 + $0x8] sm:$0xf]
        %v675 = vld [vmem:[%s359 + $0xc] sm:$0xf]
        %v676 = vld [vmem:[%s359 + $0x10] sm:$0xf]
        %v677 = vld [vmem:[%s359 + $0x14] sm:$0xf]
        %v678 = vld [vmem:[%s359 + $0x18] sm:$0xf]
        %v679 = vld [vmem:[%s359 + $0x1c] sm:$0xf]
        %v680 = vld [vmem:[%s359 + $0x20] sm:$0xf]
        %v681 = vld [vmem:[%s359 + $0x24] sm:$0xf]
        %v682 = vld [vmem:[%s359 + $0x28] sm:$0xf]
        %v683 = vld [vmem:[%s359 + $0x2c] sm:$0xf]
        %v684 = vld [vmem:[%s359 + $0x30] sm:$0xf]
        %v685 = vld [vmem:[%s359 + $0x34] sm:$0xf]
        %v686 = vld [vmem:[%s359 + $0x38] sm:$0xf]
        %v687 = vld [vmem:[%s359 + $0x3c] sm:$0xf]
        %v688 = vld [vmem:[%s359 + $0x40] sm:$0x1]
        %vm706 = vcmask 1042432
        %vm707 = vcmask 1046532
        %vm708 = vmor %vm706, %vm707
        %v709 = vrot.slane %v672, 5
        %v710 = vrot.slane %v709, 4
        %v711 = vrot.slane %v673, 5
        %v712 = vsel %vm708, %v710, %v711
        %v713 = vrot.slane %v711, 4
        %v714 = vrot.slane %v674, 5
        %v715 = vsel %vm708, %v713, %v714
        %v716 = vrot.slane %v714, 4
        %v717 = vrot.slane %v675, 5
        %v718 = vsel %vm708, %v716, %v717
        %v719 = vrot.slane %v717, 4
        %v720 = vrot.slane %v676, 5
        %v721 = vsel %vm708, %v719, %v720
        %v722 = vrot.slane %v720, 4
        %v723 = vrot.slane %v677, 5
        %v724 = vsel %vm708, %v722, %v723
        %v725 = vrot.slane %v723, 4
        %v726 = vrot.slane %v678, 5
        %v727 = vsel %vm708, %v725, %v726
        %v728 = vrot.slane %v726, 4
        %v729 = vrot.slane %v679, 5
        %v730 = vsel %vm708, %v728, %v729
        %v731 = vrot.slane %v729, 4
        %v732 = vrot.slane %v680, 5
        %v733 = vsel %vm708, %v731, %v732
        %v734 = vrot.slane %v732, 4
        %v735 = vrot.slane %v681, 5
        %v736 = vsel %vm708, %v734, %v735
        %v737 = vrot.slane %v735, 4
        %v738 = vrot.slane %v682, 5
        %v739 = vsel %vm708, %v737, %v738
        %v740 = vrot.slane %v738, 4
        %v741 = vrot.slane %v683, 5
        %v742 = vsel %vm708, %v740, %v741
        %v743 = vrot.slane %v741, 4
        %v744 = vrot.slane %v684, 5
        %v745 = vsel %vm708, %v743, %v744
        %v746 = vrot.slane %v744, 4
        %v747 = vrot.slane %v685, 5
        %v748 = vsel %vm708, %v746, %v747
        %v749 = vrot.slane %v747, 4
        %v750 = vrot.slane %v686, 5
        %v751 = vsel %vm708, %v749, %v750
        %v752 = vrot.slane %v750, 4
        %v753 = vrot.slane %v687, 5
        %v754 = vsel %vm708, %v752, %v753
        %v755 = vrot.slane %v753, 4
        %v756 = vrot.slane %v688, 5
        %v757 = vsel %vm708, %v755, %v756
        %758 = vrot.lane.b32.xlu0 %v712, 8
        %v759 = vpop.permute.xlu0 %758
        %760 = vrot.lane.b32.xlu0 %v715, 8
        %v761 = vpop.permute.xlu0 %760
        %762 = vrot.lane.b32.xlu0 %v718, 8
        %v763 = vpop.permute.xlu0 %762
        %764 = vrot.lane.b32.xlu0 %v721, 8
        %v765 = vpop.permute.xlu0 %764
        %766 = vrot.lane.b32.xlu0 %v724, 8
        %v767 = vpop.permute.xlu0 %766
        %768 = vrot.lane.b32.xlu0 %v727, 8
        %v769 = vpop.permute.xlu0 %768
        %770 = vrot.lane.b32.xlu0 %v730, 8
        %v771 = vpop.permute.xlu0 %770
        %772 = vrot.lane.b32.xlu0 %v733, 8
        %v773 = vpop.permute.xlu0 %772
        %774 = vrot.lane.b32.xlu0 %v736, 8
        %v775 = vpop.permute.xlu0 %774
        %776 = vrot.lane.b32.xlu0 %v739, 8
        %v777 = vpop.permute.xlu0 %776
        %778 = vrot.lane.b32.xlu0 %v742, 8
        %v779 = vpop.permute.xlu0 %778
        %780 = vrot.lane.b32.xlu0 %v745, 8
        %v781 = vpop.permute.xlu0 %780
        %782 = vrot.lane.b32.xlu0 %v748, 8
        %v783 = vpop.permute.xlu0 %782
        %784 = vrot.lane.b32.xlu0 %v751, 8
        %v785 = vpop.permute.xlu0 %784
        %786 = vrot.lane.b32.xlu0 %v754, 8
        %v787 = vpop.permute.xlu0 %786
        %788 = vrot.lane.b32.xlu0 %v757, 8
        %v789 = vpop.permute.xlu0 %788
        %vm806 = vcmask 93248
        %807 = vst.msk [vmem:[#allocation2] sm:$0xf] %vm806, %v759
        %808 = vst.msk [vmem:[#allocation2 + $0x4] sm:$0xf] %vm806, %v761
        %809 = vst.msk [vmem:[#allocation2 + $0x8] sm:$0xf] %vm806, %v763
        %810 = vst.msk [vmem:[#allocation2 + $0xc] sm:$0xf] %vm806, %v765
        %811 = vst.msk [vmem:[#allocation2 + $0x10] sm:$0xf] %vm806, %v767
        %812 = vst.msk [vmem:[#allocation2 + $0x14] sm:$0xf] %vm806, %v769
        %813 = vst.msk [vmem:[#allocation2 + $0x18] sm:$0xf] %vm806, %v771
        %814 = vst.msk [vmem:[#allocation2 + $0x1c] sm:$0xf] %vm806, %v773
        %815 = vst.msk [vmem:[#allocation2 + $0x20] sm:$0xf] %vm806, %v775
        %816 = vst.msk [vmem:[#allocation2 + $0x24] sm:$0xf] %vm806, %v777
        %817 = vst.msk [vmem:[#allocation2 + $0x28] sm:$0xf] %vm806, %v779
        %818 = vst.msk [vmem:[#allocation2 + $0x2c] sm:$0xf] %vm806, %v781
        %819 = vst.msk [vmem:[#allocation2 + $0x30] sm:$0xf] %vm806, %v783
        %820 = vst.msk [vmem:[#allocation2 + $0x34] sm:$0xf] %vm806, %v785
        %821 = vst.msk [vmem:[#allocation2 + $0x38] sm:$0xf] %vm806, %v787
        %822 = vst.msk [vmem:[#allocation2 + $0x3c] sm:$0xf] %vm806, %v789
        %v823 = vld [vmem:[%s359 + $0x8] sm:$0xf]
        %v824 = vld [vmem:[%s359 + $0xc] sm:$0xf]
        %v825 = vld [vmem:[%s359 + $0x10] sm:$0xf]
        %v826 = vld [vmem:[%s359 + $0x14] sm:$0xf]
        %v827 = vld [vmem:[%s359 + $0x18] sm:$0xf]
        %v828 = vld [vmem:[%s359 + $0x1c] sm:$0xf]
        %v829 = vld [vmem:[%s359 + $0x20] sm:$0xf]
        %v830 = vld [vmem:[%s359 + $0x24] sm:$0xf]
        %v831 = vld [vmem:[%s359 + $0x28] sm:$0xf]
        %v832 = vld [vmem:[%s359 + $0x2c] sm:$0xf]
        %v833 = vld [vmem:[%s359 + $0x30] sm:$0xf]
        %v834 = vld [vmem:[%s359 + $0x34] sm:$0xf]
        %v835 = vld [vmem:[%s359 + $0x38] sm:$0xf]
        %v836 = vld [vmem:[%s359 + $0x3c] sm:$0xf]
        %v837 = vld [vmem:[%s359 + $0x40] sm:$0xf]
        %v838 = vld [vmem:[%s359 + $0x44] sm:$0xf]
        %855 = vrot.lane.b32.xlu0 %v823, 12
        %v856 = vpop.permute.xlu0 %855
        %857 = vrot.lane.b32.xlu0 %v824, 12
        %v858 = vpop.permute.xlu0 %857
        %859 = vrot.lane.b32.xlu0 %v825, 12
        %v860 = vpop.permute.xlu0 %859
        %861 = vrot.lane.b32.xlu0 %v826, 12
        %v862 = vpop.permute.xlu0 %861
        %863 = vrot.lane.b32.xlu0 %v827, 12
        %v864 = vpop.permute.xlu0 %863
        %865 = vrot.lane.b32.xlu0 %v828, 12
        %v866 = vpop.permute.xlu0 %865
        %867 = vrot.lane.b32.xlu0 %v829, 12
        %v868 = vpop.permute.xlu0 %867
        %869 = vrot.lane.b32.xlu0 %v830, 12
        %v870 = vpop.permute.xlu0 %869
        %871 = vrot.lane.b32.xlu0 %v831, 12
        %v872 = vpop.permute.xlu0 %871
        %873 = vrot.lane.b32.xlu0 %v832, 12
        %v874 = vpop.permute.xlu0 %873
        %875 = vrot.lane.b32.xlu0 %v833, 12
        %v876 = vpop.permute.xlu0 %875
        %877 = vrot.lane.b32.xlu0 %v834, 12
        %v878 = vpop.permute.xlu0 %877
        %879 = vrot.lane.b32.xlu0 %v835, 12
        %v880 = vpop.permute.xlu0 %879
        %881 = vrot.lane.b32.xlu0 %v836, 12
        %v882 = vpop.permute.xlu0 %881
        %883 = vrot.lane.b32.xlu0 %v837, 12
        %v884 = vpop.permute.xlu0 %883
        %885 = vrot.lane.b32.xlu0 %v838, 12
        %v886 = vpop.permute.xlu0 %885
        %vm903 = vcmask 126048
        %904 = vst.msk [vmem:[#allocation2] sm:$0xf] %vm903, %v856
        %905 = vst.msk [vmem:[#allocation2 + $0x4] sm:$0xf] %vm903, %v858
        %906 = vst.msk [vmem:[#allocation2 + $0x8] sm:$0xf] %vm903, %v860
        %907 = vst.msk [vmem:[#allocation2 + $0xc] sm:$0xf] %vm903, %v862
        %908 = vst.msk [vmem:[#allocation2 + $0x10] sm:$0xf] %vm903, %v864
        %909 = vst.msk [vmem:[#allocation2 + $0x14] sm:$0xf] %vm903, %v866
        %910 = vst.msk [vmem:[#allocation2 + $0x18] sm:$0xf] %vm903, %v868
        %911 = vst.msk [vmem:[#allocation2 + $0x1c] sm:$0xf] %vm903, %v870
        %912 = vst.msk [vmem:[#allocation2 + $0x20] sm:$0xf] %vm903, %v872
        %913 = vst.msk [vmem:[#allocation2 + $0x24] sm:$0xf] %vm903, %v874
        %914 = vst.msk [vmem:[#allocation2 + $0x28] sm:$0xf] %vm903, %v876
        %915 = vst.msk [vmem:[#allocation2 + $0x2c] sm:$0xf] %vm903, %v878
        %916 = vst.msk [vmem:[#allocation2 + $0x30] sm:$0xf] %vm903, %v880
        %917 = vst.msk [vmem:[#allocation2 + $0x34] sm:$0xf] %vm903, %v882
        %918 = vst.msk [vmem:[#allocation2 + $0x38] sm:$0xf] %vm903, %v884
        %919 = vst.msk [vmem:[#allocation2 + $0x3c] sm:$0xf] %vm903, %v886
        %v920 = vld [vmem:[%s359 + $0x8] sm:$0xf]
        %v921 = vld [vmem:[%s359 + $0xc] sm:$0xf]
        %v922 = vld [vmem:[%s359 + $0x10] sm:$0xf]
        %v923 = vld [vmem:[%s359 + $0x14] sm:$0xf]
        %v924 = vld [vmem:[%s359 + $0x18] sm:$0xf]
        %v925 = vld [vmem:[%s359 + $0x1c] sm:$0xf]
        %v926 = vld [vmem:[%s359 + $0x20] sm:$0xf]
        %v927 = vld [vmem:[%s359 + $0x24] sm:$0xf]
        %v928 = vld [vmem:[%s359 + $0x28] sm:$0xf]
        %v929 = vld [vmem:[%s359 + $0x2c] sm:$0xf]
        %v930 = vld [vmem:[%s359 + $0x30] sm:$0xf]
        %v931 = vld [vmem:[%s359 + $0x34] sm:$0xf]
        %v932 = vld [vmem:[%s359 + $0x38] sm:$0xf]
        %v933 = vld [vmem:[%s359 + $0x3c] sm:$0xf]
        %v934 = vld [vmem:[%s359 + $0x40] sm:$0xf]
        %v935 = vld [vmem:[%s359 + $0x44] sm:$0xf]
        %v936 = vld [vmem:[%s359 + $0x48] sm:$0x1]
        %v938 = vshrl.u32 %v920, 16
        %v940 = vrot.slane %v938, 4
        %v941 = vshll.u32 %v920, 16
        %v943 = vrot.slane %v941, 5
        %v944 = vor.u32 %v940, %v943
        %v945 = vrot.slane %v944, 4
        %v947 = vshll.u32 %v921, 16
        %v949 = vrot.slane %v947, 5
        %v950 = vsel %vm442, %v945, %v949
        %v951 = vshrl.u32 %v921, 16
        %v953 = vrot.slane %v951, 4
        %v954 = vor.u32 %v953, %v949
        %v955 = vrot.slane %v954, 4
        %v957 = vshll.u32 %v922, 16
        %v959 = vrot.slane %v957, 5
        %v960 = vsel %vm442, %v955, %v959
        %v961 = vshrl.u32 %v922, 16
        %v963 = vrot.slane %v961, 4
        %v964 = vor.u32 %v963, %v959
        %v965 = vrot.slane %v964, 4
        %v967 = vshll.u32 %v923, 16
        %v969 = vrot.slane %v967, 5
        %v970 = vsel %vm442, %v965, %v969
        %v971 = vshrl.u32 %v923, 16
        %v973 = vrot.slane %v971, 4
        %v974 = vor.u32 %v973, %v969
        %v975 = vrot.slane %v974, 4
        %v977 = vshll.u32 %v924, 16
        %v979 = vrot.slane %v977, 5
        %v980 = vsel %vm442, %v975, %v979
        %v981 = vshrl.u32 %v924, 16
        %v983 = vrot.slane %v981, 4
        %v984 = vor.u32 %v983, %v979
        %v985 = vrot.slane %v984, 4
        %v987 = vshll.u32 %v925, 16
        %v989 = vrot.slane %v987, 5
        %v990 = vsel %vm442, %v985, %v989
        %v991 = vshrl.u32 %v925, 16
        %v993 = vrot.slane %v991, 4
        %v994 = vor.u32 %v993, %v989
        %v995 = vrot.slane %v994, 4
        %v997 = vshll.u32 %v926, 16
        %v999 = vrot.slane %v997, 5
        %v1000 = vsel %vm442, %v995, %v999
        %v1001 = vshrl.u32 %v926, 16
        %v1003 = vrot.slane %v1001, 4
        %v1004 = vor.u32 %v1003, %v999
        %v1005 = vrot.slane %v1004, 4
        %v1007 = vshll.u32 %v927, 16
        %v1009 = vrot.slane %v1007, 5
        %v1010 = vsel %vm442, %v1005, %v1009
        %v1011 = vshrl.u32 %v927, 16
        %v1013 = vrot.slane %v1011, 4
        %v1014 = vor.u32 %v1013, %v1009
        %v1015 = vrot.slane %v1014, 4
        %v1017 = vshll.u32 %v928, 16
        %v1019 = vrot.slane %v1017, 5
        %v1020 = vsel %vm442, %v1015, %v1019
        %v1021 = vshrl.u32 %v928, 16
        %v1023 = vrot.slane %v1021, 4
        %v1024 = vor.u32 %v1023, %v1019
        %v1025 = vrot.slane %v1024, 4
        %v1027 = vshll.u32 %v929, 16
        %v1029 = vrot.slane %v1027, 5
        %v1030 = vsel %vm442, %v1025, %v1029
        %v1031 = vshrl.u32 %v929, 16
        %v1033 = vrot.slane %v1031, 4
        %v1034 = vor.u32 %v1033, %v1029
        %v1035 = vrot.slane %v1034, 4
        %v1037 = vshll.u32 %v930, 16
        %v1039 = vrot.slane %v1037, 5
        %v1040 = vsel %vm442, %v1035, %v1039
        %v1041 = vshrl.u32 %v930, 16
        %v1043 = vrot.slane %v1041, 4
        %v1044 = vor.u32 %v1043, %v1039
        %v1045 = vrot.slane %v1044, 4
        %v1047 = vshll.u32 %v931, 16
        %v1049 = vrot.slane %v1047, 5
        %v1050 = vsel %vm442, %v1045, %v1049
        %v1051 = vshrl.u32 %v931, 16
        %v1053 = vrot.slane %v1051, 4
        %v1054 = vor.u32 %v1053, %v1049
        %v1055 = vrot.slane %v1054, 4
        %v1057 = vshll.u32 %v932, 16
        %v1059 = vrot.slane %v1057, 5
        %v1060 = vsel %vm442, %v1055, %v1059
        %v1061 = vshrl.u32 %v932, 16
        %v1063 = vrot.slane %v1061, 4
        %v1064 = vor.u32 %v1063, %v1059
        %v1065 = vrot.slane %v1064, 4
        %v1067 = vshll.u32 %v933, 16
        %v1069 = vrot.slane %v1067, 5
        %v1070 = vsel %vm442, %v1065, %v1069
        %v1071 = vshrl.u32 %v933, 16
        %v1073 = vrot.slane %v1071, 4
        %v1074 = vor.u32 %v1073, %v1069
        %v1075 = vrot.slane %v1074, 4
        %v1077 = vshll.u32 %v934, 16
        %v1079 = vrot.slane %v1077, 5
        %v1080 = vsel %vm442, %v1075, %v1079
        %v1081 = vshrl.u32 %v934, 16
        %v1083 = vrot.slane %v1081, 4
        %v1084 = vor.u32 %v1083, %v1079
        %v1085 = vrot.slane %v1084, 4
        %v1087 = vshll.u32 %v935, 16
        %v1089 = vrot.slane %v1087, 5
        %v1090 = vsel %vm442, %v1085, %v1089
        %v1091 = vshrl.u32 %v935, 16
        %v1093 = vrot.slane %v1091, 4
        %v1094 = vor.u32 %v1093, %v1089
        %v1095 = vrot.slane %v1094, 4
        %v1097 = vshll.u32 %v936, 16
        %v1099 = vrot.slane %v1097, 5
        %v1100 = vsel %vm442, %v1095, %v1099
        %1101 = vrot.lane.b32.xlu0 %v950, 16
        %v1102 = vpop.permute.xlu0 %1101
        %1103 = vrot.lane.b32.xlu0 %v960, 16
        %v1104 = vpop.permute.xlu0 %1103
        %1105 = vrot.lane.b32.xlu0 %v970, 16
        %v1106 = vpop.permute.xlu0 %1105
        %1107 = vrot.lane.b32.xlu0 %v980, 16
        %v1108 = vpop.permute.xlu0 %1107
        %1109 = vrot.lane.b32.xlu0 %v990, 16
        %v1110 = vpop.permute.xlu0 %1109
        %1111 = vrot.lane.b32.xlu0 %v1000, 16
        %v1112 = vpop.permute.xlu0 %1111
        %1113 = vrot.lane.b32.xlu0 %v1010, 16
        %v1114 = vpop.permute.xlu0 %1113
        %1115 = vrot.lane.b32.xlu0 %v1020, 16
        %v1116 = vpop.permute.xlu0 %1115
        %1117 = vrot.lane.b32.xlu0 %v1030, 16
        %v1118 = vpop.permute.xlu0 %1117
        %1119 = vrot.lane.b32.xlu0 %v1040, 16
        %v1120 = vpop.permute.xlu0 %1119
        %1121 = vrot.lane.b32.xlu0 %v1050, 16
        %v1122 = vpop.permute.xlu0 %1121
        %1123 = vrot.lane.b32.xlu0 %v1060, 16
        %v1124 = vpop.permute.xlu0 %1123
        %1125 = vrot.lane.b32.xlu0 %v1070, 16
        %v1126 = vpop.permute.xlu0 %1125
        %1127 = vrot.lane.b32.xlu0 %v1080, 16
        %v1128 = vpop.permute.xlu0 %1127
        %1129 = vrot.lane.b32.xlu0 %v1090, 16
        %v1130 = vpop.permute.xlu0 %1129
        %1131 = vrot.lane.b32.xlu0 %v1100, 16
        %v1132 = vpop.permute.xlu0 %1131
        %vm1149 = vcmask 158848
        %1150 = vst.msk [vmem:[#allocation2] sm:$0xf] %vm1149, %v1102
        %1151 = vst.msk [vmem:[#allocation2 + $0x4] sm:$0xf] %vm1149, %v1104
        %1152 = vst.msk [vmem:[#allocation2 + $0x8] sm:$0xf] %vm1149, %v1106
        %1153 = vst.msk [vmem:[#allocation2 + $0xc] sm:$0xf] %vm1149, %v1108
        %1154 = vst.msk [vmem:[#allocation2 + $0x10] sm:$0xf] %vm1149, %v1110
        %1155 = vst.msk [vmem:[#allocation2 + $0x14] sm:$0xf] %vm1149, %v1112
        %1156 = vst.msk [vmem:[#allocation2 + $0x18] sm:$0xf] %vm1149, %v1114
        %1157 = vst.msk [vmem:[#allocation2 + $0x1c] sm:$0xf] %vm1149, %v1116
        %1158 = vst.msk [vmem:[#allocation2 + $0x20] sm:$0xf] %vm1149, %v1118
        %1159 = vst.msk [vmem:[#allocation2 + $0x24] sm:$0xf] %vm1149, %v1120
        %1160 = vst.msk [vmem:[#allocation2 + $0x28] sm:$0xf] %vm1149, %v1122
        %1161 = vst.msk [vmem:[#allocation2 + $0x2c] sm:$0xf] %vm1149, %v1124
        %1162 = vst.msk [vmem:[#allocation2 + $0x30] sm:$0xf] %vm1149, %v1126
        %1163 = vst.msk [vmem:[#allocation2 + $0x34] sm:$0xf] %vm1149, %v1128
        %1164 = vst.msk [vmem:[#allocation2 + $0x38] sm:$0xf] %vm1149, %v1130
        %1165 = vst.msk [vmem:[#allocation2 + $0x3c] sm:$0xf] %vm1149, %v1132
        %v1166 = vld [vmem:[%s359 + $0x8] sm:$0xe]
        %v1167 = vld [vmem:[%s359 + $0xc] sm:$0xf]
        %v1168 = vld [vmem:[%s359 + $0x10] sm:$0xf]
        %v1169 = vld [vmem:[%s359 + $0x14] sm:$0xf]
        %v1170 = vld [vmem:[%s359 + $0x18] sm:$0xf]
        %v1171 = vld [vmem:[%s359 + $0x1c] sm:$0xf]
        %v1172 = vld [vmem:[%s359 + $0x20] sm:$0xf]
        %v1173 = vld [vmem:[%s359 + $0x24] sm:$0xf]
        %v1174 = vld [vmem:[%s359 + $0x28] sm:$0xf]
        %v1175 = vld [vmem:[%s359 + $0x2c] sm:$0xf]
        %v1176 = vld [vmem:[%s359 + $0x30] sm:$0xf]
        %v1177 = vld [vmem:[%s359 + $0x34] sm:$0xf]
        %v1178 = vld [vmem:[%s359 + $0x38] sm:$0xf]
        %v1179 = vld [vmem:[%s359 + $0x3c] sm:$0xf]
        %v1180 = vld [vmem:[%s359 + $0x40] sm:$0xf]
        %v1181 = vld [vmem:[%s359 + $0x44] sm:$0xf]
        %v1182 = vld [vmem:[%s359 + $0x48] sm:$0x1]
        %v1200 = vrot.slane %v1166, 5
        %v1201 = vrot.slane %v1200, 4
        %v1202 = vrot.slane %v1167, 5
        %v1203 = vsel %vm708, %v1201, %v1202
        %v1204 = vrot.slane %v1202, 4
        %v1205 = vrot.slane %v1168, 5
        %v1206 = vsel %vm708, %v1204, %v1205
        %v1207 = vrot.slane %v1205, 4
        %v1208 = vrot.slane %v1169, 5
        %v1209 = vsel %vm708, %v1207, %v1208
        %v1210 = vrot.slane %v1208, 4
        %v1211 = vrot.slane %v1170, 5
        %v1212 = vsel %vm708, %v1210, %v1211
        %v1213 = vrot.slane %v1211, 4
        %v1214 = vrot.slane %v1171, 5
        %v1215 = vsel %vm708, %v1213, %v1214
        %v1216 = vrot.slane %v1214, 4
        %v1217 = vrot.slane %v1172, 5
        %v1218 = vsel %vm708, %v1216, %v1217
        %v1219 = vrot.slane %v1217, 4
        %v1220 = vrot.slane %v1173, 5
        %v1221 = vsel %vm708, %v1219, %v1220
        %v1222 = vrot.slane %v1220, 4
        %v1223 = vrot.slane %v1174, 5
        %v1224 = vsel %vm708, %v1222, %v1223
        %v1225 = vrot.slane %v1223, 4
        %v1226 = vrot.slane %v1175, 5
        %v1227 = vsel %vm708, %v1225, %v1226
        %v1228 = vrot.slane %v1226, 4
        %v1229 = vrot.slane %v1176, 5
        %v1230 = vsel %vm708, %v1228, %v1229
        %v1231 = vrot.slane %v1229, 4
        %v1232 = vrot.slane %v1177, 5
        %v1233 = vsel %vm708, %v1231, %v1232
        %v1234 = vrot.slane %v1232, 4
        %v1235 = vrot.slane %v1178, 5
        %v1236 = vsel %vm708, %v1234, %v1235
        %v1237 = vrot.slane %v1235, 4
        %v1238 = vrot.slane %v1179, 5
        %v1239 = vsel %vm708, %v1237, %v1238
        %v1240 = vrot.slane %v1238, 4
        %v1241 = vrot.slane %v1180, 5
        %v1242 = vsel %vm708, %v1240, %v1241
        %v1243 = vrot.slane %v1241, 4
        %v1244 = vrot.slane %v1181, 5
        %v1245 = vsel %vm708, %v1243, %v1244
        %v1246 = vrot.slane %v1244, 4
        %v1247 = vrot.slane %v1182, 5
        %v1248 = vsel %vm708, %v1246, %v1247
        %1249 = vrot.lane.b32.xlu0 %v1203, 20
        %v1250 = vpop.permute.xlu0 %1249
        %1251 = vrot.lane.b32.xlu0 %v1206, 20
        %v1252 = vpop.permute.xlu0 %1251
        %1253 = vrot.lane.b32.xlu0 %v1209, 20
        %v1254 = vpop.permute.xlu0 %1253
        %1255 = vrot.lane.b32.xlu0 %v1212, 20
        %v1256 = vpop.permute.xlu0 %1255
        %1257 = vrot.lane.b32.xlu0 %v1215, 20
        %v1258 = vpop.permute.xlu0 %1257
        %1259 = vrot.lane.b32.xlu0 %v1218, 20
        %v1260 = vpop.permute.xlu0 %1259
        %1261 = vrot.lane.b32.xlu0 %v1221, 20
        %v1262 = vpop.permute.xlu0 %1261
        %1263 = vrot.lane.b32.xlu0 %v1224, 20
        %v1264 = vpop.permute.xlu0 %1263
        %1265 = vrot.lane.b32.xlu0 %v1227, 20
        %v1266 = vpop.permute.xlu0 %1265
        %1267 = vrot.lane.b32.xlu0 %v1230, 20
        %v1268 = vpop.permute.xlu0 %1267
        %1269 = vrot.lane.b32.xlu0 %v1233, 20
        %v1270 = vpop.permute.xlu0 %1269
        %1271 = vrot.lane.b32.xlu0 %v1236, 20
        %v1272 = vpop.permute.xlu0 %1271
        %1273 = vrot.lane.b32.xlu0 %v1239, 20
        %v1274 = vpop.permute.xlu0 %1273
        %1275 = vrot.lane.b32.xlu0 %v1242, 20
        %v1276 = vpop.permute.xlu0 %1275
        %1277 = vrot.lane.b32.xlu0 %v1245, 20
        %v1278 = vpop.permute.xlu0 %1277
        %1279 = vrot.lane.b32.xlu0 %v1248, 20
        %v1280 = vpop.permute.xlu0 %1279
        %vm1297 = vcmask 191648
        %1298 = vst.msk [vmem:[#allocation2] sm:$0xf] %vm1297, %v1250
        %1299 = vst.msk [vmem:[#allocation2 + $0x4] sm:$0xf] %vm1297, %v1252
        %1300 = vst.msk [vmem:[#allocation2 + $0x8] sm:$0xf] %vm1297, %v1254
        %1301 = vst.msk [vmem:[#allocation2 + $0xc] sm:$0xf] %vm1297, %v1256
        %1302 = vst.msk [vmem:[#allocation2 + $0x10] sm:$0xf] %vm1297, %v1258
        %1303 = vst.msk [vmem:[#allocation2 + $0x14] sm:$0xf] %vm1297, %v1260
        %1304 = vst.msk [vmem:[#allocation2 + $0x18] sm:$0xf] %vm1297, %v1262
        %1305 = vst.msk [vmem:[#allocation2 + $0x1c] sm:$0xf] %vm1297, %v1264
        %1306 = vst.msk [vmem:[#allocation2 + $0x20] sm:$0xf] %vm1297, %v1266
        %1307 = vst.msk [vmem:[#allocation2 + $0x24] sm:$0xf] %vm1297, %v1268
        %1308 = vst.msk [vmem:[#allocation2 + $0x28] sm:$0xf] %vm1297, %v1270
        %1309 = vst.msk [vmem:[#allocation2 + $0x2c] sm:$0xf] %vm1297, %v1272
        %1310 = vst.msk [vmem:[#allocation2 + $0x30] sm:$0xf] %vm1297, %v1274
        %1311 = vst.msk [vmem:[#allocation2 + $0x34] sm:$0xf] %vm1297, %v1276
        %1312 = vst.msk [vmem:[#allocation2 + $0x38] sm:$0xf] %vm1297, %v1278
        %1313 = vst.msk [vmem:[#allocation2 + $0x3c] sm:$0xf] %vm1297, %v1280
        %v1314 = vld [vmem:[%s359 + $0x10] sm:$0xf]
        %v1315 = vld [vmem:[%s359 + $0x14] sm:$0xf]
        %v1316 = vld [vmem:[%s359 + $0x18] sm:$0xf]
        %v1317 = vld [vmem:[%s359 + $0x1c] sm:$0xf]
        %v1318 = vld [vmem:[%s359 + $0x20] sm:$0xf]
        %v1319 = vld [vmem:[%s359 + $0x24] sm:$0xf]
        %v1320 = vld [vmem:[%s359 + $0x28] sm:$0xf]
        %v1321 = vld [vmem:[%s359 + $0x2c] sm:$0xf]
        %v1322 = vld [vmem:[%s359 + $0x30] sm:$0xf]
        %v1323 = vld [vmem:[%s359 + $0x34] sm:$0xf]
        %v1324 = vld [vmem:[%s359 + $0x38] sm:$0xf]
        %v1325 = vld [vmem:[%s359 + $0x3c] sm:$0xf]
        %v1326 = vld [vmem:[%s359 + $0x40] sm:$0xf]
        %v1327 = vld [vmem:[%s359 + $0x44] sm:$0xf]
        %v1328 = vld [vmem:[%s359 + $0x48] sm:$0xf]
        %v1329 = vld [vmem:[%s359 + $0x4c] sm:$0xf]
        %1346 = vrot.lane.b32.xlu0 %v1314, 24
        %v1347 = vpop.permute.xlu0 %1346
        %1348 = vrot.lane.b32.xlu0 %v1315, 24
        %v1349 = vpop.permute.xlu0 %1348
        %1350 = vrot.lane.b32.xlu0 %v1316, 24
        %v1351 = vpop.permute.xlu0 %1350
        %1352 = vrot.lane.b32.xlu0 %v1317, 24
        %v1353 = vpop.permute.xlu0 %1352
        %1354 = vrot.lane.b32.xlu0 %v1318, 24
        %v1355 = vpop.permute.xlu0 %1354
        %1356 = vrot.lane.b32.xlu0 %v1319, 24
        %v1357 = vpop.permute.xlu0 %1356
        %1358 = vrot.lane.b32.xlu0 %v1320, 24
        %v1359 = vpop.permute.xlu0 %1358
        %1360 = vrot.lane.b32.xlu0 %v1321, 24
        %v1361 = vpop.permute.xlu0 %1360
        %1362 = vrot.lane.b32.xlu0 %v1322, 24
        %v1363 = vpop.permute.xlu0 %1362
        %1364 = vrot.lane.b32.xlu0 %v1323, 24
        %v1365 = vpop.permute.xlu0 %1364
        %1366 = vrot.lane.b32.xlu0 %v1324, 24
        %v1367 = vpop.permute.xlu0 %1366
        %1368 = vrot.lane.b32.xlu0 %v1325, 24
        %v1369 = vpop.permute.xlu0 %1368
        %1370 = vrot.lane.b32.xlu0 %v1326, 24
        %v1371 = vpop.permute.xlu0 %1370
        %1372 = vrot.lane.b32.xlu0 %v1327, 24
        %v1373 = vpop.permute.xlu0 %1372
        %1374 = vrot.lane.b32.xlu0 %v1328, 24
        %v1375 = vpop.permute.xlu0 %1374
        %1376 = vrot.lane.b32.xlu0 %v1329, 24
        %v1377 = vpop.permute.xlu0 %1376
        %vm1394 = vcmask 224448
        %1395 = vst.msk [vmem:[#allocation2] sm:$0xf] %vm1394, %v1347
        %1396 = vst.msk [vmem:[#allocation2 + $0x4] sm:$0xf] %vm1394, %v1349
        %1397 = vst.msk [vmem:[#allocation2 + $0x8] sm:$0xf] %vm1394, %v1351
        %1398 = vst.msk [vmem:[#allocation2 + $0xc] sm:$0xf] %vm1394, %v1353
        %1399 = vst.msk [vmem:[#allocation2 + $0x10] sm:$0xf] %vm1394, %v1355
        %1400 = vst.msk [vmem:[#allocation2 + $0x14] sm:$0xf] %vm1394, %v1357
        %1401 = vst.msk [vmem:[#allocation2 + $0x18] sm:$0xf] %vm1394, %v1359
        %1402 = vst.msk [vmem:[#allocation2 + $0x1c] sm:$0xf] %vm1394, %v1361
        %1403 = vst.msk [vmem:[#allocation2 + $0x20] sm:$0xf] %vm1394, %v1363
        %1404 = vst.msk [vmem:[#allocation2 + $0x24] sm:$0xf] %vm1394, %v1365
        %1405 = vst.msk [vmem:[#allocation2 + $0x28] sm:$0xf] %vm1394, %v1367
        %1406 = vst.msk [vmem:[#allocation2 + $0x2c] sm:$0xf] %vm1394, %v1369
        %1407 = vst.msk [vmem:[#allocation2 + $0x30] sm:$0xf] %vm1394, %v1371
        %1408 = vst.msk [vmem:[#allocation2 + $0x34] sm:$0xf] %vm1394, %v1373
        %1409 = vst.msk [vmem:[#allocation2 + $0x38] sm:$0xf] %vm1394, %v1375
        %1410 = vst.msk [vmem:[#allocation2 + $0x3c] sm:$0xf] %vm1394, %v1377
        %v1411 = vld [vmem:[%s359 + $0x10] sm:$0xf]
        %v1412 = vld [vmem:[%s359 + $0x14] sm:$0xf]
        %v1413 = vld [vmem:[%s359 + $0x18] sm:$0xf]
        %v1414 = vld [vmem:[%s359 + $0x1c] sm:$0xf]
        %v1415 = vld [vmem:[%s359 + $0x20] sm:$0xf]
        %v1416 = vld [vmem:[%s359 + $0x24] sm:$0xf]
        %v1417 = vld [vmem:[%s359 + $0x28] sm:$0xf]
        %v1418 = vld [vmem:[%s359 + $0x2c] sm:$0xf]
        %v1419 = vld [vmem:[%s359 + $0x30] sm:$0xf]
        %v1420 = vld [vmem:[%s359 + $0x34] sm:$0xf]
        %v1421 = vld [vmem:[%s359 + $0x38] sm:$0xf]
        %v1422 = vld [vmem:[%s359 + $0x3c] sm:$0xf]
        %v1423 = vld [vmem:[%s359 + $0x40] sm:$0xf]
        %v1424 = vld [vmem:[%s359 + $0x44] sm:$0xf]
        %v1425 = vld [vmem:[%s359 + $0x48] sm:$0xf]
        %v1426 = vld [vmem:[%s359 + $0x4c] sm:$0xf]
        %v1427 = vld [vmem:[%s359 + $0x50] sm:$0x1]
        %v1429 = vshrl.u32 %v1411, 16
        %v1431 = vrot.slane %v1429, 4
        %v1432 = vshll.u32 %v1411, 16
        %v1434 = vrot.slane %v1432, 5
        %v1435 = vor.u32 %v1431, %v1434
        %v1436 = vrot.slane %v1435, 4
        %v1438 = vshll.u32 %v1412, 16
        %v1440 = vrot.slane %v1438, 5
        %v1441 = vsel %vm442, %v1436, %v1440
        %v1442 = vshrl.u32 %v1412, 16
        %v1444 = vrot.slane %v1442, 4
        %v1445 = vor.u32 %v1444, %v1440
        %v1446 = vrot.slane %v1445, 4
        %v1448 = vshll.u32 %v1413, 16
        %v1450 = vrot.slane %v1448, 5
        %v1451 = vsel %vm442, %v1446, %v1450
        %v1452 = vshrl.u32 %v1413, 16
        %v1454 = vrot.slane %v1452, 4
        %v1455 = vor.u32 %v1454, %v1450
        %v1456 = vrot.slane %v1455, 4
        %v1458 = vshll.u32 %v1414, 16
        %v1460 = vrot.slane %v1458, 5
        %v1461 = vsel %vm442, %v1456, %v1460
        %v1462 = vshrl.u32 %v1414, 16
        %v1464 = vrot.slane %v1462, 4
        %v1465 = vor.u32 %v1464, %v1460
        %v1466 = vrot.slane %v1465, 4
        %v1468 = vshll.u32 %v1415, 16
        %v1470 = vrot.slane %v1468, 5
        %v1471 = vsel %vm442, %v1466, %v1470
        %v1472 = vshrl.u32 %v1415, 16
        %v1474 = vrot.slane %v1472, 4
        %v1475 = vor.u32 %v1474, %v1470
        %v1476 = vrot.slane %v1475, 4
        %v1478 = vshll.u32 %v1416, 16
        %v1480 = vrot.slane %v1478, 5
        %v1481 = vsel %vm442, %v1476, %v1480
        %v1482 = vshrl.u32 %v1416, 16
        %v1484 = vrot.slane %v1482, 4
        %v1485 = vor.u32 %v1484, %v1480
        %v1486 = vrot.slane %v1485, 4
        %v1488 = vshll.u32 %v1417, 16
        %v1490 = vrot.slane %v1488, 5
        %v1491 = vsel %vm442, %v1486, %v1490
        %v1492 = vshrl.u32 %v1417, 16
        %v1494 = vrot.slane %v1492, 4
        %v1495 = vor.u32 %v1494, %v1490
        %v1496 = vrot.slane %v1495, 4
        %v1498 = vshll.u32 %v1418, 16
        %v1500 = vrot.slane %v1498, 5
        %v1501 = vsel %vm442, %v1496, %v1500
        %v1502 = vshrl.u32 %v1418, 16
        %v1504 = vrot.slane %v1502, 4
        %v1505 = vor.u32 %v1504, %v1500
        %v1506 = vrot.slane %v1505, 4
        %v1508 = vshll.u32 %v1419, 16
        %v1510 = vrot.slane %v1508, 5
        %v1511 = vsel %vm442, %v1506, %v1510
        %v1512 = vshrl.u32 %v1419, 16
        %v1514 = vrot.slane %v1512, 4
        %v1515 = vor.u32 %v1514, %v1510
        %v1516 = vrot.slane %v1515, 4
        %v1518 = vshll.u32 %v1420, 16
        %v1520 = vrot.slane %v1518, 5
        %v1521 = vsel %vm442, %v1516, %v1520
        %v1522 = vshrl.u32 %v1420, 16
        %v1524 = vrot.slane %v1522, 4
        %v1525 = vor.u32 %v1524, %v1520
        %v1526 = vrot.slane %v1525, 4
        %v1528 = vshll.u32 %v1421, 16
        %v1530 = vrot.slane %v1528, 5
        %v1531 = vsel %vm442, %v1526, %v1530
        %v1532 = vshrl.u32 %v1421, 16
        %v1534 = vrot.slane %v1532, 4
        %v1535 = vor.u32 %v1534, %v1530
        %v1536 = vrot.slane %v1535, 4
        %v1538 = vshll.u32 %v1422, 16
        %v1540 = vrot.slane %v1538, 5
        %v1541 = vsel %vm442, %v1536, %v1540
        %v1542 = vshrl.u32 %v1422, 16
        %v1544 = vrot.slane %v1542, 4
        %v1545 = vor.u32 %v1544, %v1540
        %v1546 = vrot.slane %v1545, 4
        %v1548 = vshll.u32 %v1423, 16
        %v1550 = vrot.slane %v1548, 5
        %v1551 = vsel %vm442, %v1546, %v1550
        %v1552 = vshrl.u32 %v1423, 16
        %v1554 = vrot.slane %v1552, 4
        %v1555 = vor.u32 %v1554, %v1550
        %v1556 = vrot.slane %v1555, 4
        %v1558 = vshll.u32 %v1424, 16
        %v1560 = vrot.slane %v1558, 5
        %v1561 = vsel %vm442, %v1556, %v1560
        %v1562 = vshrl.u32 %v1424, 16
        %v1564 = vrot.slane %v1562, 4
        %v1565 = vor.u32 %v1564, %v1560
        %v1566 = vrot.slane %v1565, 4
        %v1568 = vshll.u32 %v1425, 16
        %v1570 = vrot.slane %v1568, 5
        %v1571 = vsel %vm442, %v1566, %v1570
        %v1572 = vshrl.u32 %v1425, 16
        %v1574 = vrot.slane %v1572, 4
        %v1575 = vor.u32 %v1574, %v1570
        %v1576 = vrot.slane %v1575, 4
        %v1578 = vshll.u32 %v1426, 16
        %v1580 = vrot.slane %v1578, 5
        %v1581 = vsel %vm442, %v1576, %v1580
        %v1582 = vshrl.u32 %v1426, 16
        %v1584 = vrot.slane %v1582, 4
        %v1585 = vor.u32 %v1584, %v1580
        %v1586 = vrot.slane %v1585, 4
        %v1588 = vshll.u32 %v1427, 16
        %v1590 = vrot.slane %v1588, 5
        %v1591 = vsel %vm442, %v1586, %v1590
        %1592 = vrot.lane.b32.xlu0 %v1441, 28
        %v1593 = vpop.permute.xlu0 %1592
        %1594 = vrot.lane.b32.xlu0 %v1451, 28
        %v1595 = vpop.permute.xlu0 %1594
        %1596 = vrot.lane.b32.xlu0 %v1461, 28
        %v1597 = vpop.permute.xlu0 %1596
        %1598 = vrot.lane.b32.xlu0 %v1471, 28
        %v1599 = vpop.permute.xlu0 %1598
        %1600 = vrot.lane.b32.xlu0 %v1481, 28
        %v1601 = vpop.permute.xlu0 %1600
        %1602 = vrot.lane.b32.xlu0 %v1491, 28
        %v1603 = vpop.permute.xlu0 %1602
        %1604 = vrot.lane.b32.xlu0 %v1501, 28
        %v1605 = vpop.permute.xlu0 %1604
        %1606 = vrot.lane.b32.xlu0 %v1511, 28
        %v1607 = vpop.permute.xlu0 %1606
        %1608 = vrot.lane.b32.xlu0 %v1521, 28
        %v1609 = vpop.permute.xlu0 %1608
        %1610 = vrot.lane.b32.xlu0 %v1531, 28
        %v1611 = vpop.permute.xlu0 %1610
        %1612 = vrot.lane.b32.xlu0 %v1541, 28
        %v1613 = vpop.permute.xlu0 %1612
        %1614 = vrot.lane.b32.xlu0 %v1551, 28
        %v1615 = vpop.permute.xlu0 %1614
        %1616 = vrot.lane.b32.xlu0 %v1561, 28
        %v1617 = vpop.permute.xlu0 %1616
        %1618 = vrot.lane.b32.xlu0 %v1571, 28
        %v1619 = vpop.permute.xlu0 %1618
        %1620 = vrot.lane.b32.xlu0 %v1581, 28
        %v1621 = vpop.permute.xlu0 %1620
        %1622 = vrot.lane.b32.xlu0 %v1591, 28
        %v1623 = vpop.permute.xlu0 %1622
        %vm1640 = vcmask 257248
        %1641 = vst.msk [vmem:[#allocation2] sm:$0xf] %vm1640, %v1593
        %1642 = vst.msk [vmem:[#allocation2 + $0x4] sm:$0xf] %vm1640, %v1595
        %1643 = vst.msk [vmem:[#allocation2 + $0x8] sm:$0xf] %vm1640, %v1597
        %1644 = vst.msk [vmem:[#allocation2 + $0xc] sm:$0xf] %vm1640, %v1599
        %1645 = vst.msk [vmem:[#allocation2 + $0x10] sm:$0xf] %vm1640, %v1601
        %1646 = vst.msk [vmem:[#allocation2 + $0x14] sm:$0xf] %vm1640, %v1603
        %1647 = vst.msk [vmem:[#allocation2 + $0x18] sm:$0xf] %vm1640, %v1605
        %1648 = vst.msk [vmem:[#allocation2 + $0x1c] sm:$0xf] %vm1640, %v1607
        %1649 = vst.msk [vmem:[#allocation2 + $0x20] sm:$0xf] %vm1640, %v1609
        %1650 = vst.msk [vmem:[#allocation2 + $0x24] sm:$0xf] %vm1640, %v1611
        %1651 = vst.msk [vmem:[#allocation2 + $0x28] sm:$0xf] %vm1640, %v1613
        %1652 = vst.msk [vmem:[#allocation2 + $0x2c] sm:$0xf] %vm1640, %v1615
        %1653 = vst.msk [vmem:[#allocation2 + $0x30] sm:$0xf] %vm1640, %v1617
        %1654 = vst.msk [vmem:[#allocation2 + $0x34] sm:$0xf] %vm1640, %v1619
        %1655 = vst.msk [vmem:[#allocation2 + $0x38] sm:$0xf] %vm1640, %v1621
        %1656 = vst.msk [vmem:[#allocation2 + $0x3c] sm:$0xf] %vm1640, %v1623
        %v1657 = vld [vmem:[%s359 + $0x10] sm:$0xe]
        %v1658 = vld [vmem:[%s359 + $0x14] sm:$0xf]
        %v1659 = vld [vmem:[%s359 + $0x18] sm:$0xf]
        %v1660 = vld [vmem:[%s359 + $0x1c] sm:$0xf]
        %v1661 = vld [vmem:[%s359 + $0x20] sm:$0xf]
        %v1662 = vld [vmem:[%s359 + $0x24] sm:$0xf]
        %v1663 = vld [vmem:[%s359 + $0x28] sm:$0xf]
        %v1664 = vld [vmem:[%s359 + $0x2c] sm:$0xf]
        %v1665 = vld [vmem:[%s359 + $0x30] sm:$0xf]
        %v1666 = vld [vmem:[%s359 + $0x34] sm:$0xf]
        %v1667 = vld [vmem:[%s359 + $0x38] sm:$0xf]
        %v1668 = vld [vmem:[%s359 + $0x3c] sm:$0xf]
        %v1669 = vld [vmem:[%s359 + $0x40] sm:$0xf]
        %v1670 = vld [vmem:[%s359 + $0x44] sm:$0xf]
        %v1671 = vld [vmem:[%s359 + $0x48] sm:$0xf]
        %v1672 = vld [vmem:[%s359 + $0x4c] sm:$0xf]
        %v1673 = vld [vmem:[%s359 + $0x50] sm:$0x1]
        %v1691 = vrot.slane %v1657, 5
        %v1692 = vrot.slane %v1691, 4
        %v1693 = vrot.slane %v1658, 5
        %v1694 = vsel %vm708, %v1692, %v1693
        %v1695 = vrot.slane %v1693, 4
        %v1696 = vrot.slane %v1659, 5
        %v1697 = vsel %vm708, %v1695, %v1696
        %v1698 = vrot.slane %v1696, 4
        %v1699 = vrot.slane %v1660, 5
        %v1700 = vsel %vm708, %v1698, %v1699
        %v1701 = vrot.slane %v1699, 4
        %v1702 = vrot.slane %v1661, 5
        %v1703 = vsel %vm708, %v1701, %v1702
        %v1704 = vrot.slane %v1702, 4
        %v1705 = vrot.slane %v1662, 5
        %v1706 = vsel %vm708, %v1704, %v1705
        %v1707 = vrot.slane %v1705, 4
        %v1708 = vrot.slane %v1663, 5
        %v1709 = vsel %vm708, %v1707, %v1708
        %v1710 = vrot.slane %v1708, 4
        %v1711 = vrot.slane %v1664, 5
        %v1712 = vsel %vm708, %v1710, %v1711
        %v1713 = vrot.slane %v1711, 4
        %v1714 = vrot.slane %v1665, 5
        %v1715 = vsel %vm708, %v1713, %v1714
        %v1716 = vrot.slane %v1714, 4
        %v1717 = vrot.slane %v1666, 5
        %v1718 = vsel %vm708, %v1716, %v1717
        %v1719 = vrot.slane %v1717, 4
        %v1720 = vrot.slane %v1667, 5
        %v1721 = vsel %vm708, %v1719, %v1720
        %v1722 = vrot.slane %v1720, 4
        %v1723 = vrot.slane %v1668, 5
        %v1724 = vsel %vm708, %v1722, %v1723
        %v1725 = vrot.slane %v1723, 4
        %v1726 = vrot.slane %v1669, 5
        %v1727 = vsel %vm708, %v1725, %v1726
        %v1728 = vrot.slane %v1726, 4
        %v1729 = vrot.slane %v1670, 5
        %v1730 = vsel %vm708, %v1728, %v1729
        %v1731 = vrot.slane %v1729, 4
        %v1732 = vrot.slane %v1671, 5
        %v1733 = vsel %vm708, %v1731, %v1732
        %v1734 = vrot.slane %v1732, 4
        %v1735 = vrot.slane %v1672, 5
        %v1736 = vsel %vm708, %v1734, %v1735
        %v1737 = vrot.slane %v1735, 4
        %v1738 = vrot.slane %v1673, 5
        %v1739 = vsel %vm708, %v1737, %v1738
        %1740 = vrot.lane.b32.xlu0 %v1694, 32
        %v1741 = vpop.permute.xlu0 %1740
        %1742 = vrot.lane.b32.xlu0 %v1697, 32
        %v1743 = vpop.permute.xlu0 %1742
        %1744 = vrot.lane.b32.xlu0 %v1700, 32
        %v1745 = vpop.permute.xlu0 %1744
        %1746 = vrot.lane.b32.xlu0 %v1703, 32
        %v1747 = vpop.permute.xlu0 %1746
        %1748 = vrot.lane.b32.xlu0 %v1706, 32
        %v1749 = vpop.permute.xlu0 %1748
        %1750 = vrot.lane.b32.xlu0 %v1709, 32
        %v1751 = vpop.permute.xlu0 %1750
        %1752 = vrot.lane.b32.xlu0 %v1712, 32
        %v1753 = vpop.permute.xlu0 %1752
        %1754 = vrot.lane.b32.xlu0 %v1715, 32
        %v1755 = vpop.permute.xlu0 %1754
        %1756 = vrot.lane.b32.xlu0 %v1718, 32
        %v1757 = vpop.permute.xlu0 %1756
        %1758 = vrot.lane.b32.xlu0 %v1721, 32
        %v1759 = vpop.permute.xlu0 %1758
        %1760 = vrot.lane.b32.xlu0 %v1724, 32
        %v1761 = vpop.permute.xlu0 %1760
        %1762 = vrot.lane.b32.xlu0 %v1727, 32
        %v1763 = vpop.permute.xlu0 %1762
        %1764 = vrot.lane.b32.xlu0 %v1730, 32
        %v1765 = vpop.permute.xlu0 %1764
        %1766 = vrot.lane.b32.xlu0 %v1733, 32
        %v1767 = vpop.permute.xlu0 %1766
        %1768 = vrot.lane.b32.xlu0 %v1736, 32
        %v1769 = vpop.permute.xlu0 %1768
        %1770 = vrot.lane.b32.xlu0 %v1739, 32
        %v1771 = vpop.permute.xlu0 %1770
        %vm1788 = vcmask 290048
        %1789 = vst.msk [vmem:[#allocation2] sm:$0xf] %vm1788, %v1741
        %1790 = vst.msk [vmem:[#allocation2 + $0x4] sm:$0xf] %vm1788, %v1743
        %1791 = vst.msk [vmem:[#allocation2 + $0x8] sm:$0xf] %vm1788, %v1745
        %1792 = vst.msk [vmem:[#allocation2 + $0xc] sm:$0xf] %vm1788, %v1747
        %1793 = vst.msk [vmem:[#allocation2 + $0x10] sm:$0xf] %vm1788, %v1749
        %1794 = vst.msk [vmem:[#allocation2 + $0x14] sm:$0xf] %vm1788, %v1751
        %1795 = vst.msk [vmem:[#allocation2 + $0x18] sm:$0xf] %vm1788, %v1753
        %1796 = vst.msk [vmem:[#allocation2 + $0x1c] sm:$0xf] %vm1788, %v1755
        %1797 = vst.msk [vmem:[#allocation2 + $0x20] sm:$0xf] %vm1788, %v1757
        %1798 = vst.msk [vmem:[#allocation2 + $0x24] sm:$0xf] %vm1788, %v1759
        %1799 = vst.msk [vmem:[#allocation2 + $0x28] sm:$0xf] %vm1788, %v1761
        %1800 = vst.msk [vmem:[#allocation2 + $0x2c] sm:$0xf] %vm1788, %v1763
        %1801 = vst.msk [vmem:[#allocation2 + $0x30] sm:$0xf] %vm1788, %v1765
        %1802 = vst.msk [vmem:[#allocation2 + $0x34] sm:$0xf] %vm1788, %v1767
        %1803 = vst.msk [vmem:[#allocation2 + $0x38] sm:$0xf] %vm1788, %v1769
        %1804 = vst.msk [vmem:[#allocation2 + $0x3c] sm:$0xf] %vm1788, %v1771
        %v1805 = vld [vmem:[%s369] sm:$0xf]
        %v1806 = vld [vmem:[%s369 + $0x4] sm:$0xf]
        %v1807 = vld [vmem:[%s369 + $0x8] sm:$0xf]
        %v1808 = vld [vmem:[%s369 + $0xc] sm:$0xf]
        %v1809 = vld [vmem:[%s369 + $0x10] sm:$0xf]
        %v1810 = vld [vmem:[%s369 + $0x14] sm:$0xf]
        %v1811 = vld [vmem:[%s369 + $0x18] sm:$0xf]
        %v1812 = vld [vmem:[%s369 + $0x1c] sm:$0xf]
        %v1813 = vld [vmem:[%s369 + $0x20] sm:$0xf]
        %v1814 = vld [vmem:[%s369 + $0x24] sm:$0xf]
        %v1815 = vld [vmem:[%s369 + $0x28] sm:$0xf]
        %v1816 = vld [vmem:[%s369 + $0x2c] sm:$0xf]
        %v1817 = vld [vmem:[%s369 + $0x30] sm:$0xf]
        %v1818 = vld [vmem:[%s369 + $0x34] sm:$0xf]
        %v1819 = vld [vmem:[%s369 + $0x38] sm:$0xf]
        %v1820 = vld [vmem:[%s369 + $0x3c] sm:$0xf]
        %1837 = vrot.lane.b32.xlu0 %v1805, 36
        %v1838 = vpop.permute.xlu0 %1837
        %1839 = vrot.lane.b32.xlu0 %v1806, 36
        %v1840 = vpop.permute.xlu0 %1839
        %1841 = vrot.lane.b32.xlu0 %v1807, 36
        %v1842 = vpop.permute.xlu0 %1841
        %1843 = vrot.lane.b32.xlu0 %v1808, 36
        %v1844 = vpop.permute.xlu0 %1843
        %1845 = vrot.lane.b32.xlu0 %v1809, 36
        %v1846 = vpop.permute.xlu0 %1845
        %1847 = vrot.lane.b32.xlu0 %v1810, 36
        %v1848 = vpop.permute.xlu0 %1847
        %1849 = vrot.lane.b32.xlu0 %v1811, 36
        %v1850 = vpop.permute.xlu0 %1849
        %1851 = vrot.lane.b32.xlu0 %v1812, 36
        %v1852 = vpop.permute.xlu0 %1851
        %1853 = vrot.lane.b32.xlu0 %v1813, 36
        %v1854 = vpop.permute.xlu0 %1853
        %1855 = vrot.lane.b32.xlu0 %v1814, 36
        %v1856 = vpop.permute.xlu0 %1855
        %1857 = vrot.lane.b32.xlu0 %v1815, 36
        %v1858 = vpop.permute.xlu0 %1857
        %1859 = vrot.lane.b32.xlu0 %v1816, 36
        %v1860 = vpop.permute.xlu0 %1859
        %1861 = vrot.lane.b32.xlu0 %v1817, 36
        %v1862 = vpop.permute.xlu0 %1861
        %1863 = vrot.lane.b32.xlu0 %v1818, 36
        %v1864 = vpop.permute.xlu0 %1863
        %1865 = vrot.lane.b32.xlu0 %v1819, 36
        %v1866 = vpop.permute.xlu0 %1865
        %1867 = vrot.lane.b32.xlu0 %v1820, 36
        %v1868 = vpop.permute.xlu0 %1867
        %vm1885 = vcmask 322848
        %1886 = vst.msk [vmem:[#allocation2] sm:$0xf] %vm1885, %v1838
        %1887 = vst.msk [vmem:[#allocation2 + $0x4] sm:$0xf] %vm1885, %v1840
        %1888 = vst.msk [vmem:[#allocation2 + $0x8] sm:$0xf] %vm1885, %v1842
        %1889 = vst.msk [vmem:[#allocation2 + $0xc] sm:$0xf] %vm1885, %v1844
        %1890 = vst.msk [vmem:[#allocation2 + $0x10] sm:$0xf] %vm1885, %v1846
        %1891 = vst.msk [vmem:[#allocation2 + $0x14] sm:$0xf] %vm1885, %v1848
        %1892 = vst.msk [vmem:[#allocation2 + $0x18] sm:$0xf] %vm1885, %v1850
        %1893 = vst.msk [vmem:[#allocation2 + $0x1c] sm:$0xf] %vm1885, %v1852
        %1894 = vst.msk [vmem:[#allocation2 + $0x20] sm:$0xf] %vm1885, %v1854
        %1895 = vst.msk [vmem:[#allocation2 + $0x24] sm:$0xf] %vm1885, %v1856
        %1896 = vst.msk [vmem:[#allocation2 + $0x28] sm:$0xf] %vm1885, %v1858
        %1897 = vst.msk [vmem:[#allocation2 + $0x2c] sm:$0xf] %vm1885, %v1860
        %1898 = vst.msk [vmem:[#allocation2 + $0x30] sm:$0xf] %vm1885, %v1862
        %1899 = vst.msk [vmem:[#allocation2 + $0x34] sm:$0xf] %vm1885, %v1864
        %1900 = vst.msk [vmem:[#allocation2 + $0x38] sm:$0xf] %vm1885, %v1866
        %1901 = vst.msk [vmem:[#allocation2 + $0x3c] sm:$0xf] %vm1885, %v1868
        %v1902 = vld [vmem:[%s369] sm:$0xf]
        %v1903 = vld [vmem:[%s369 + $0x4] sm:$0xf]
        %v1904 = vld [vmem:[%s369 + $0x8] sm:$0xf]
        %v1905 = vld [vmem:[%s369 + $0xc] sm:$0xf]
        %v1906 = vld [vmem:[%s369 + $0x10] sm:$0xf]
        %v1907 = vld [vmem:[%s369 + $0x14] sm:$0xf]
        %v1908 = vld [vmem:[%s369 + $0x18] sm:$0xf]
        %v1909 = vld [vmem:[%s369 + $0x1c] sm:$0xf]
        %v1910 = vld [vmem:[%s369 + $0x20] sm:$0xf]
        %v1911 = vld [vmem:[%s369 + $0x24] sm:$0xf]
        %v1912 = vld [vmem:[%s369 + $0x28] sm:$0xf]
        %v1913 = vld [vmem:[%s369 + $0x2c] sm:$0xf]
        %v1914 = vld [vmem:[%s369 + $0x30] sm:$0xf]
        %v1915 = vld [vmem:[%s369 + $0x34] sm:$0xf]
        %v1916 = vld [vmem:[%s369 + $0x38] sm:$0xf]
        %v1917 = vld [vmem:[%s369 + $0x3c] sm:$0xf]
        %v1918 = vld [vmem:[%s369 + $0x40] sm:$0x1]
        %v1920 = vshrl.u32 %v1902, 16
        %v1922 = vrot.slane %v1920, 4
        %v1923 = vshll.u32 %v1902, 16
        %v1925 = vrot.slane %v1923, 5
        %v1926 = vor.u32 %v1922, %v1925
        %v1927 = vrot.slane %v1926, 4
        %v1929 = vshll.u32 %v1903, 16
        %v1931 = vrot.slane %v1929, 5
        %v1932 = vsel %vm442, %v1927, %v1931
        %v1933 = vshrl.u32 %v1903, 16
        %v1935 = vrot.slane %v1933, 4
        %v1936 = vor.u32 %v1935, %v1931
        %v1937 = vrot.slane %v1936, 4
        %v1939 = vshll.u32 %v1904, 16
        %v1941 = vrot.slane %v1939, 5
        %v1942 = vsel %vm442, %v1937, %v1941
        %v1943 = vshrl.u32 %v1904, 16
        %v1945 = vrot.slane %v1943, 4
        %v1946 = vor.u32 %v1945, %v1941
        %v1947 = vrot.slane %v1946, 4
        %v1949 = vshll.u32 %v1905, 16
        %v1951 = vrot.slane %v1949, 5
        %v1952 = vsel %vm442, %v1947, %v1951
        %v1953 = vshrl.u32 %v1905, 16
        %v1955 = vrot.slane %v1953, 4
        %v1956 = vor.u32 %v1955, %v1951
        %v1957 = vrot.slane %v1956, 4
        %v1959 = vshll.u32 %v1906, 16
        %v1961 = vrot.slane %v1959, 5
        %v1962 = vsel %vm442, %v1957, %v1961
        %v1963 = vshrl.u32 %v1906, 16
        %v1965 = vrot.slane %v1963, 4
        %v1966 = vor.u32 %v1965, %v1961
        %v1967 = vrot.slane %v1966, 4
        %v1969 = vshll.u32 %v1907, 16
        %v1971 = vrot.slane %v1969, 5
        %v1972 = vsel %vm442, %v1967, %v1971
        %v1973 = vshrl.u32 %v1907, 16
        %v1975 = vrot.slane %v1973, 4
        %v1976 = vor.u32 %v1975, %v1971
        %v1977 = vrot.slane %v1976, 4
        %v1979 = vshll.u32 %v1908, 16
        %v1981 = vrot.slane %v1979, 5
        %v1982 = vsel %vm442, %v1977, %v1981
        %v1983 = vshrl.u32 %v1908, 16
        %v1985 = vrot.slane %v1983, 4
        %v1986 = vor.u32 %v1985, %v1981
        %v1987 = vrot.slane %v1986, 4
        %v1989 = vshll.u32 %v1909, 16
        %v1991 = vrot.slane %v1989, 5
        %v1992 = vsel %vm442, %v1987, %v1991
        %v1993 = vshrl.u32 %v1909, 16
        %v1995 = vrot.slane %v1993, 4
        %v1996 = vor.u32 %v1995, %v1991
        %v1997 = vrot.slane %v1996, 4
        %v1999 = vshll.u32 %v1910, 16
        %v2001 = vrot.slane %v1999, 5
        %v2002 = vsel %vm442, %v1997, %v2001
        %v2003 = vshrl.u32 %v1910, 16
        %v2005 = vrot.slane %v2003, 4
        %v2006 = vor.u32 %v2005, %v2001
        %v2007 = vrot.slane %v2006, 4
        %v2009 = vshll.u32 %v1911, 16
        %v2011 = vrot.slane %v2009, 5
        %v2012 = vsel %vm442, %v2007, %v2011
        %v2013 = vshrl.u32 %v1911, 16
        %v2015 = vrot.slane %v2013, 4
        %v2016 = vor.u32 %v2015, %v2011
        %v2017 = vrot.slane %v2016, 4
        %v2019 = vshll.u32 %v1912, 16
        %v2021 = vrot.slane %v2019, 5
        %v2022 = vsel %vm442, %v2017, %v2021
        %v2023 = vshrl.u32 %v1912, 16
        %v2025 = vrot.slane %v2023, 4
        %v2026 = vor.u32 %v2025, %v2021
        %v2027 = vrot.slane %v2026, 4
        %v2029 = vshll.u32 %v1913, 16
        %v2031 = vrot.slane %v2029, 5
        %v2032 = vsel %vm442, %v2027, %v2031
        %v2033 = vshrl.u32 %v1913, 16
        %v2035 = vrot.slane %v2033, 4
        %v2036 = vor.u32 %v2035, %v2031
        %v2037 = vrot.slane %v2036, 4
        %v2039 = vshll.u32 %v1914, 16
        %v2041 = vrot.slane %v2039, 5
        %v2042 = vsel %vm442, %v2037, %v2041
        %v2043 = vshrl.u32 %v1914, 16
        %v2045 = vrot.slane %v2043, 4
        %v2046 = vor.u32 %v2045, %v2041
        %v2047 = vrot.slane %v2046, 4
        %v2049 = vshll.u32 %v1915, 16
        %v2051 = vrot.slane %v2049, 5
        %v2052 = vsel %vm442, %v2047, %v2051
        %v2053 = vshrl.u32 %v1915, 16
        %v2055 = vrot.slane %v2053, 4
        %v2056 = vor.u32 %v2055, %v2051
        %v2057 = vrot.slane %v2056, 4
        %v2059 = vshll.u32 %v1916, 16
        %v2061 = vrot.slane %v2059, 5
        %v2062 = vsel %vm442, %v2057, %v2061
        %v2063 = vshrl.u32 %v1916, 16
        %v2065 = vrot.slane %v2063, 4
        %v2066 = vor.u32 %v2065, %v2061
        %v2067 = vrot.slane %v2066, 4
        %v2069 = vshll.u32 %v1917, 16
        %v2071 = vrot.slane %v2069, 5
        %v2072 = vsel %vm442, %v2067, %v2071
        %v2073 = vshrl.u32 %v1917, 16
        %v2075 = vrot.slane %v2073, 4
        %v2076 = vor.u32 %v2075, %v2071
        %v2077 = vrot.slane %v2076, 4
        %v2079 = vshll.u32 %v1918, 16
        %v2081 = vrot.slane %v2079, 5
        %v2082 = vsel %vm442, %v2077, %v2081
        %2083 = vrot.lane.b32.xlu0 %v1932, 40
        %v2084 = vpop.permute.xlu0 %2083
        %2085 = vrot.lane.b32.xlu0 %v1942, 40
        %v2086 = vpop.permute.xlu0 %2085
        %2087 = vrot.lane.b32.xlu0 %v1952, 40
        %v2088 = vpop.permute.xlu0 %2087
        %2089 = vrot.lane.b32.xlu0 %v1962, 40
        %v2090 = vpop.permute.xlu0 %2089
        %2091 = vrot.lane.b32.xlu0 %v1972, 40
        %v2092 = vpop.permute.xlu0 %2091
        %2093 = vrot.lane.b32.xlu0 %v1982, 40
        %v2094 = vpop.permute.xlu0 %2093
        %2095 = vrot.lane.b32.xlu0 %v1992, 40
        %v2096 = vpop.permute.xlu0 %2095
        %2097 = vrot.lane.b32.xlu0 %v2002, 40
        %v2098 = vpop.permute.xlu0 %2097
        %2099 = vrot.lane.b32.xlu0 %v2012, 40
        %v2100 = vpop.permute.xlu0 %2099
        %2101 = vrot.lane.b32.xlu0 %v2022, 40
        %v2102 = vpop.permute.xlu0 %2101
        %2103 = vrot.lane.b32.xlu0 %v2032, 40
        %v2104 = vpop.permute.xlu0 %2103
        %2105 = vrot.lane.b32.xlu0 %v2042, 40
        %v2106 = vpop.permute.xlu0 %2105
        %2107 = vrot.lane.b32.xlu0 %v2052, 40
        %v2108 = vpop.permute.xlu0 %2107
        %2109 = vrot.lane.b32.xlu0 %v2062, 40
        %v2110 = vpop.permute.xlu0 %2109
        %2111 = vrot.lane.b32.xlu0 %v2072, 40
        %v2112 = vpop.permute.xlu0 %2111
        %2113 = vrot.lane.b32.xlu0 %v2082, 40
        %v2114 = vpop.permute.xlu0 %2113
        %vm2131 = vcmask 355648
        %2132 = vst.msk [vmem:[#allocation2] sm:$0xf] %vm2131, %v2084
        %2133 = vst.msk [vmem:[#allocation2 + $0x4] sm:$0xf] %vm2131, %v2086
        %2134 = vst.msk [vmem:[#allocation2 + $0x8] sm:$0xf] %vm2131, %v2088
        %2135 = vst.msk [vmem:[#allocation2 + $0xc] sm:$0xf] %vm2131, %v2090
        %2136 = vst.msk [vmem:[#allocation2 + $0x10] sm:$0xf] %vm2131, %v2092
        %2137 = vst.msk [vmem:[#allocation2 + $0x14] sm:$0xf] %vm2131, %v2094
        %2138 = vst.msk [vmem:[#allocation2 + $0x18] sm:$0xf] %vm2131, %v2096
        %2139 = vst.msk [vmem:[#allocation2 + $0x1c] sm:$0xf] %vm2131, %v2098
        %2140 = vst.msk [vmem:[#allocation2 + $0x20] sm:$0xf] %vm2131, %v2100
        %2141 = vst.msk [vmem:[#allocation2 + $0x24] sm:$0xf] %vm2131, %v2102
        %2142 = vst.msk [vmem:[#allocation2 + $0x28] sm:$0xf] %vm2131, %v2104
        %2143 = vst.msk [vmem:[#allocation2 + $0x2c] sm:$0xf] %vm2131, %v2106
        %2144 = vst.msk [vmem:[#allocation2 + $0x30] sm:$0xf] %vm2131, %v2108
        %2145 = vst.msk [vmem:[#allocation2 + $0x34] sm:$0xf] %vm2131, %v2110
        %2146 = vst.msk [vmem:[#allocation2 + $0x38] sm:$0xf] %vm2131, %v2112
        %2147 = vst.msk [vmem:[#allocation2 + $0x3c] sm:$0xf] %vm2131, %v2114
        %v2148 = vld [vmem:[%s369] sm:$0xe]
        %v2149 = vld [vmem:[%s369 + $0x4] sm:$0xf]
        %v2150 = vld [vmem:[%s369 + $0x8] sm:$0xf]
        %v2151 = vld [vmem:[%s369 + $0xc] sm:$0xf]
        %v2152 = vld [vmem:[%s369 + $0x10] sm:$0xf]
        %v2153 = vld [vmem:[%s369 + $0x14] sm:$0xf]
        %v2154 = vld [vmem:[%s369 + $0x18] sm:$0xf]
        %v2155 = vld [vmem:[%s369 + $0x1c] sm:$0xf]
        %v2156 = vld [vmem:[%s369 + $0x20] sm:$0xf]
        %v2157 = vld [vmem:[%s369 + $0x24] sm:$0xf]
        %v2158 = vld [vmem:[%s369 + $0x28] sm:$0xf]
        %v2159 = vld [vmem:[%s369 + $0x2c] sm:$0xf]
        %v2160 = vld [vmem:[%s369 + $0x30] sm:$0xf]
        %v2161 = vld [vmem:[%s369 + $0x34] sm:$0xf]
        %v2162 = vld [vmem:[%s369 + $0x38] sm:$0xf]
        %v2163 = vld [vmem:[%s369 + $0x3c] sm:$0xf]
        %v2164 = vld [vmem:[%s369 + $0x40] sm:$0x1]
        %v2182 = vrot.slane %v2148, 5
        %v2183 = vrot.slane %v2182, 4
        %v2184 = vrot.slane %v2149, 5
        %v2185 = vsel %vm708, %v2183, %v2184
        %v2186 = vrot.slane %v2184, 4
        %v2187 = vrot.slane %v2150, 5
        %v2188 = vsel %vm708, %v2186, %v2187
        %v2189 = vrot.slane %v2187, 4
        %v2190 = vrot.slane %v2151, 5
        %v2191 = vsel %vm708, %v2189, %v2190
        %v2192 = vrot.slane %v2190, 4
        %v2193 = vrot.slane %v2152, 5
        %v2194 = vsel %vm708, %v2192, %v2193
        %v2195 = vrot.slane %v2193, 4
        %v2196 = vrot.slane %v2153, 5
        %v2197 = vsel %vm708, %v2195, %v2196
        %v2198 = vrot.slane %v2196, 4
        %v2199 = vrot.slane %v2154, 5
        %v2200 = vsel %vm708, %v2198, %v2199
        %v2201 = vrot.slane %v2199, 4
        %v2202 = vrot.slane %v2155, 5
        %v2203 = vsel %vm708, %v2201, %v2202
        %v2204 = vrot.slane %v2202, 4
        %v2205 = vrot.slane %v2156, 5
        %v2206 = vsel %vm708, %v2204, %v2205
        %v2207 = vrot.slane %v2205, 4
        %v2208 = vrot.slane %v2157, 5
        %v2209 = vsel %vm708, %v2207, %v2208
        %v2210 = vrot.slane %v2208, 4
        %v2211 = vrot.slane %v2158, 5
        %v2212 = vsel %vm708, %v2210, %v2211
        %v2213 = vrot.slane %v2211, 4
        %v2214 = vrot.slane %v2159, 5
        %v2215 = vsel %vm708, %v2213, %v2214
        %v2216 = vrot.slane %v2214, 4
        %v2217 = vrot.slane %v2160, 5
        %v2218 = vsel %vm708, %v2216, %v2217
        %v2219 = vrot.slane %v2217, 4
        %v2220 = vrot.slane %v2161, 5
        %v2221 = vsel %vm708, %v2219, %v2220
        %v2222 = vrot.slane %v2220, 4
        %v2223 = vrot.slane %v2162, 5
        %v2224 = vsel %vm708, %v2222, %v2223
        %v2225 = vrot.slane %v2223, 4
        %v2226 = vrot.slane %v2163, 5
        %v2227 = vsel %vm708, %v2225, %v2226
        %v2228 = vrot.slane %v2226, 4
        %v2229 = vrot.slane %v2164, 5
        %v2230 = vsel %vm708, %v2228, %v2229
        %2231 = vrot.lane.b32.xlu0 %v2185, 44
        %v2232 = vpop.permute.xlu0 %2231
        %2233 = vrot.lane.b32.xlu0 %v2188, 44
        %v2234 = vpop.permute.xlu0 %2233
        %2235 = vrot.lane.b32.xlu0 %v2191, 44
        %v2236 = vpop.permute.xlu0 %2235
        %2237 = vrot.lane.b32.xlu0 %v2194, 44
        %v2238 = vpop.permute.xlu0 %2237
        %2239 = vrot.lane.b32.xlu0 %v2197, 44
        %v2240 = vpop.permute.xlu0 %2239
        %2241 = vrot.lane.b32.xlu0 %v2200, 44
        %v2242 = vpop.permute.xlu0 %2241
        %2243 = vrot.lane.b32.xlu0 %v2203, 44
        %v2244 = vpop.permute.xlu0 %2243
        %2245 = vrot.lane.b32.xlu0 %v2206, 44
        %v2246 = vpop.permute.xlu0 %2245
        %2247 = vrot.lane.b32.xlu0 %v2209, 44
        %v2248 = vpop.permute.xlu0 %2247
        %2249 = vrot.lane.b32.xlu0 %v2212, 44
        %v2250 = vpop.permute.xlu0 %2249
        %2251 = vrot.lane.b32.xlu0 %v2215, 44
        %v2252 = vpop.permute.xlu0 %2251
        %2253 = vrot.lane.b32.xlu0 %v2218, 44
        %v2254 = vpop.permute.xlu0 %2253
        %2255 = vrot.lane.b32.xlu0 %v2221, 44
        %v2256 = vpop.permute.xlu0 %2255
        %2257 = vrot.lane.b32.xlu0 %v2224, 44
        %v2258 = vpop.permute.xlu0 %2257
        %2259 = vrot.lane.b32.xlu0 %v2227, 44
        %v2260 = vpop.permute.xlu0 %2259
        %2261 = vrot.lane.b32.xlu0 %v2230, 44
        %v2262 = vpop.permute.xlu0 %2261
        %vm2279 = vcmask 388448
        %2280 = vst.msk [vmem:[#allocation2] sm:$0xf] %vm2279, %v2232
        %2281 = vst.msk [vmem:[#allocation2 + $0x4] sm:$0xf] %vm2279, %v2234
        %2282 = vst.msk [vmem:[#allocation2 + $0x8] sm:$0xf] %vm2279, %v2236
        %2283 = vst.msk [vmem:[#allocation2 + $0xc] sm:$0xf] %vm2279, %v2238
        %2284 = vst.msk [vmem:[#allocation2 + $0x10] sm:$0xf] %vm2279, %v2240
        %2285 = vst.msk [vmem:[#allocation2 + $0x14] sm:$0xf] %vm2279, %v2242
        %2286 = vst.msk [vmem:[#allocation2 + $0x18] sm:$0xf] %vm2279, %v2244
        %2287 = vst.msk [vmem:[#allocation2 + $0x1c] sm:$0xf] %vm2279, %v2246
        %2288 = vst.msk [vmem:[#allocation2 + $0x20] sm:$0xf] %vm2279, %v2248
        %2289 = vst.msk [vmem:[#allocation2 + $0x24] sm:$0xf] %vm2279, %v2250
        %2290 = vst.msk [vmem:[#allocation2 + $0x28] sm:$0xf] %vm2279, %v2252
        %2291 = vst.msk [vmem:[#allocation2 + $0x2c] sm:$0xf] %vm2279, %v2254
        %2292 = vst.msk [vmem:[#allocation2 + $0x30] sm:$0xf] %vm2279, %v2256
        %2293 = vst.msk [vmem:[#allocation2 + $0x34] sm:$0xf] %vm2279, %v2258
        %2294 = vst.msk [vmem:[#allocation2 + $0x38] sm:$0xf] %vm2279, %v2260
        %2295 = vst.msk [vmem:[#allocation2 + $0x3c] sm:$0xf] %vm2279, %v2262
        %v2296 = vld [vmem:[%s369 + $0x8] sm:$0xf]
        %v2297 = vld [vmem:[%s369 + $0xc] sm:$0xf]
        %v2298 = vld [vmem:[%s369 + $0x10] sm:$0xf]
        %v2299 = vld [vmem:[%s369 + $0x14] sm:$0xf]
        %v2300 = vld [vmem:[%s369 + $0x18] sm:$0xf]
        %v2301 = vld [vmem:[%s369 + $0x1c] sm:$0xf]
        %v2302 = vld [vmem:[%s369 + $0x20] sm:$0xf]
        %v2303 = vld [vmem:[%s369 + $0x24] sm:$0xf]
        %v2304 = vld [vmem:[%s369 + $0x28] sm:$0xf]
        %v2305 = vld [vmem:[%s369 + $0x2c] sm:$0xf]
        %v2306 = vld [vmem:[%s369 + $0x30] sm:$0xf]
        %v2307 = vld [vmem:[%s369 + $0x34] sm:$0xf]
        %v2308 = vld [vmem:[%s369 + $0x38] sm:$0xf]
        %v2309 = vld [vmem:[%s369 + $0x3c] sm:$0xf]
        %v2310 = vld [vmem:[%s369 + $0x40] sm:$0xf]
        %v2311 = vld [vmem:[%s369 + $0x44] sm:$0xf]
        %2328 = vrot.lane.b32.xlu0 %v2296, 48
        %v2329 = vpop.permute.xlu0 %2328
        %2330 = vrot.lane.b32.xlu0 %v2297, 48
        %v2331 = vpop.permute.xlu0 %2330
        %2332 = vrot.lane.b32.xlu0 %v2298, 48
        %v2333 = vpop.permute.xlu0 %2332
        %2334 = vrot.lane.b32.xlu0 %v2299, 48
        %v2335 = vpop.permute.xlu0 %2334
        %2336 = vrot.lane.b32.xlu0 %v2300, 48
        %v2337 = vpop.permute.xlu0 %2336
        %2338 = vrot.lane.b32.xlu0 %v2301, 48
        %v2339 = vpop.permute.xlu0 %2338
        %2340 = vrot.lane.b32.xlu0 %v2302, 48
        %v2341 = vpop.permute.xlu0 %2340
        %2342 = vrot.lane.b32.xlu0 %v2303, 48
        %v2343 = vpop.permute.xlu0 %2342
        %2344 = vrot.lane.b32.xlu0 %v2304, 48
        %v2345 = vpop.permute.xlu0 %2344
        %2346 = vrot.lane.b32.xlu0 %v2305, 48
        %v2347 = vpop.permute.xlu0 %2346
        %2348 = vrot.lane.b32.xlu0 %v2306, 48
        %v2349 = vpop.permute.xlu0 %2348
        %2350 = vrot.lane.b32.xlu0 %v2307, 48
        %v2351 = vpop.permute.xlu0 %2350
        %2352 = vrot.lane.b32.xlu0 %v2308, 48
        %v2353 = vpop.permute.xlu0 %2352
        %2354 = vrot.lane.b32.xlu0 %v2309, 48
        %v2355 = vpop.permute.xlu0 %2354
        %2356 = vrot.lane.b32.xlu0 %v2310, 48
        %v2357 = vpop.permute.xlu0 %2356
        %2358 = vrot.lane.b32.xlu0 %v2311, 48
        %v2359 = vpop.permute.xlu0 %2358
        %vm2376 = vcmask 421248
        %2377 = vst.msk [vmem:[#allocation2] sm:$0xf] %vm2376, %v2329
        %2378 = vst.msk [vmem:[#allocation2 + $0x4] sm:$0xf] %vm2376, %v2331
        %2379 = vst.msk [vmem:[#allocation2 + $0x8] sm:$0xf] %vm2376, %v2333
        %2380 = vst.msk [vmem:[#allocation2 + $0xc] sm:$0xf] %vm2376, %v2335
        %2381 = vst.msk [vmem:[#allocation2 + $0x10] sm:$0xf] %vm2376, %v2337
        %2382 = vst.msk [vmem:[#allocation2 + $0x14] sm:$0xf] %vm2376, %v2339
        %2383 = vst.msk [vmem:[#allocation2 + $0x18] sm:$0xf] %vm2376, %v2341
        %2384 = vst.msk [vmem:[#allocation2 + $0x1c] sm:$0xf] %vm2376, %v2343
        %2385 = vst.msk [vmem:[#allocation2 + $0x20] sm:$0xf] %vm2376, %v2345
        %2386 = vst.msk [vmem:[#allocation2 + $0x24] sm:$0xf] %vm2376, %v2347
        %2387 = vst.msk [vmem:[#allocation2 + $0x28] sm:$0xf] %vm2376, %v2349
        %2388 = vst.msk [vmem:[#allocation2 + $0x2c] sm:$0xf] %vm2376, %v2351
        %2389 = vst.msk [vmem:[#allocation2 + $0x30] sm:$0xf] %vm2376, %v2353
        %2390 = vst.msk [vmem:[#allocation2 + $0x34] sm:$0xf] %vm2376, %v2355
        %2391 = vst.msk [vmem:[#allocation2 + $0x38] sm:$0xf] %vm2376, %v2357
        %2392 = vst.msk [vmem:[#allocation2 + $0x3c] sm:$0xf] %vm2376, %v2359
        %v2393 = vld [vmem:[%s369 + $0x8] sm:$0xf]
        %v2394 = vld [vmem:[%s369 + $0xc] sm:$0xf]
        %v2395 = vld [vmem:[%s369 + $0x10] sm:$0xf]
        %v2396 = vld [vmem:[%s369 + $0x14] sm:$0xf]
        %v2397 = vld [vmem:[%s369 + $0x18] sm:$0xf]
        %v2398 = vld [vmem:[%s369 + $0x1c] sm:$0xf]
        %v2399 = vld [vmem:[%s369 + $0x20] sm:$0xf]
        %v2400 = vld [vmem:[%s369 + $0x24] sm:$0xf]
        %v2401 = vld [vmem:[%s369 + $0x28] sm:$0xf]
        %v2402 = vld [vmem:[%s369 + $0x2c] sm:$0xf]
        %v2403 = vld [vmem:[%s369 + $0x30] sm:$0xf]
        %v2404 = vld [vmem:[%s369 + $0x34] sm:$0xf]
        %v2405 = vld [vmem:[%s369 + $0x38] sm:$0xf]
        %v2406 = vld [vmem:[%s369 + $0x3c] sm:$0xf]
        %v2407 = vld [vmem:[%s369 + $0x40] sm:$0xf]
        %v2408 = vld [vmem:[%s369 + $0x44] sm:$0xf]
        %v2409 = vld [vmem:[%s369 + $0x48] sm:$0x1]
        %v2411 = vshrl.u32 %v2393, 16
        %v2413 = vrot.slane %v2411, 4
        %v2414 = vshll.u32 %v2393, 16
        %v2416 = vrot.slane %v2414, 5
        %v2417 = vor.u32 %v2413, %v2416
        %v2418 = vrot.slane %v2417, 4
        %v2420 = vshll.u32 %v2394, 16
        %v2422 = vrot.slane %v2420, 5
        %v2423 = vsel %vm442, %v2418, %v2422
        %v2424 = vshrl.u32 %v2394, 16
        %v2426 = vrot.slane %v2424, 4
        %v2427 = vor.u32 %v2426, %v2422
        %v2428 = vrot.slane %v2427, 4
        %v2430 = vshll.u32 %v2395, 16
        %v2432 = vrot.slane %v2430, 5
        %v2433 = vsel %vm442, %v2428, %v2432
        %v2434 = vshrl.u32 %v2395, 16
        %v2436 = vrot.slane %v2434, 4
        %v2437 = vor.u32 %v2436, %v2432
        %v2438 = vrot.slane %v2437, 4
        %v2440 = vshll.u32 %v2396, 16
        %v2442 = vrot.slane %v2440, 5
        %v2443 = vsel %vm442, %v2438, %v2442
        %v2444 = vshrl.u32 %v2396, 16
        %v2446 = vrot.slane %v2444, 4
        %v2447 = vor.u32 %v2446, %v2442
        %v2448 = vrot.slane %v2447, 4
        %v2450 = vshll.u32 %v2397, 16
        %v2452 = vrot.slane %v2450, 5
        %v2453 = vsel %vm442, %v2448, %v2452
        %v2454 = vshrl.u32 %v2397, 16
        %v2456 = vrot.slane %v2454, 4
        %v2457 = vor.u32 %v2456, %v2452
        %v2458 = vrot.slane %v2457, 4
        %v2460 = vshll.u32 %v2398, 16
        %v2462 = vrot.slane %v2460, 5
        %v2463 = vsel %vm442, %v2458, %v2462
        %v2464 = vshrl.u32 %v2398, 16
        %v2466 = vrot.slane %v2464, 4
        %v2467 = vor.u32 %v2466, %v2462
        %v2468 = vrot.slane %v2467, 4
        %v2470 = vshll.u32 %v2399, 16
        %v2472 = vrot.slane %v2470, 5
        %v2473 = vsel %vm442, %v2468, %v2472
        %v2474 = vshrl.u32 %v2399, 16
        %v2476 = vrot.slane %v2474, 4
        %v2477 = vor.u32 %v2476, %v2472
        %v2478 = vrot.slane %v2477, 4
        %v2480 = vshll.u32 %v2400, 16
        %v2482 = vrot.slane %v2480, 5
        %v2483 = vsel %vm442, %v2478, %v2482
        %v2484 = vshrl.u32 %v2400, 16
        %v2486 = vrot.slane %v2484, 4
        %v2487 = vor.u32 %v2486, %v2482
        %v2488 = vrot.slane %v2487, 4
        %v2490 = vshll.u32 %v2401, 16
        %v2492 = vrot.slane %v2490, 5
        %v2493 = vsel %vm442, %v2488, %v2492
        %v2494 = vshrl.u32 %v2401, 16
        %v2496 = vrot.slane %v2494, 4
        %v2497 = vor.u32 %v2496, %v2492
        %v2498 = vrot.slane %v2497, 4
        %v2500 = vshll.u32 %v2402, 16
        %v2502 = vrot.slane %v2500, 5
        %v2503 = vsel %vm442, %v2498, %v2502
        %v2504 = vshrl.u32 %v2402, 16
        %v2506 = vrot.slane %v2504, 4
        %v2507 = vor.u32 %v2506, %v2502
        %v2508 = vrot.slane %v2507, 4
        %v2510 = vshll.u32 %v2403, 16
        %v2512 = vrot.slane %v2510, 5
        %v2513 = vsel %vm442, %v2508, %v2512
        %v2514 = vshrl.u32 %v2403, 16
        %v2516 = vrot.slane %v2514, 4
        %v2517 = vor.u32 %v2516, %v2512
        %v2518 = vrot.slane %v2517, 4
        %v2520 = vshll.u32 %v2404, 16
        %v2522 = vrot.slane %v2520, 5
        %v2523 = vsel %vm442, %v2518, %v2522
        %v2524 = vshrl.u32 %v2404, 16
        %v2526 = vrot.slane %v2524, 4
        %v2527 = vor.u32 %v2526, %v2522
        %v2528 = vrot.slane %v2527, 4
        %v2530 = vshll.u32 %v2405, 16
        %v2532 = vrot.slane %v2530, 5
        %v2533 = vsel %vm442, %v2528, %v2532
        %v2534 = vshrl.u32 %v2405, 16
        %v2536 = vrot.slane %v2534, 4
        %v2537 = vor.u32 %v2536, %v2532
        %v2538 = vrot.slane %v2537, 4
        %v2540 = vshll.u32 %v2406, 16
        %v2542 = vrot.slane %v2540, 5
        %v2543 = vsel %vm442, %v2538, %v2542
        %v2544 = vshrl.u32 %v2406, 16
        %v2546 = vrot.slane %v2544, 4
        %v2547 = vor.u32 %v2546, %v2542
        %v2548 = vrot.slane %v2547, 4
        %v2550 = vshll.u32 %v2407, 16
        %v2552 = vrot.slane %v2550, 5
        %v2553 = vsel %vm442, %v2548, %v2552
        %v2554 = vshrl.u32 %v2407, 16
        %v2556 = vrot.slane %v2554, 4
        %v2557 = vor.u32 %v2556, %v2552
        %v2558 = vrot.slane %v2557, 4
        %v2560 = vshll.u32 %v2408, 16
        %v2562 = vrot.slane %v2560, 5
        %v2563 = vsel %vm442, %v2558, %v2562
        %v2564 = vshrl.u32 %v2408, 16
        %v2566 = vrot.slane %v2564, 4
        %v2567 = vor.u32 %v2566, %v2562
        %v2568 = vrot.slane %v2567, 4
        %v2570 = vshll.u32 %v2409, 16
        %v2572 = vrot.slane %v2570, 5
        %v2573 = vsel %vm442, %v2568, %v2572
        %2574 = vrot.lane.b32.xlu0 %v2423, 52
        %v2575 = vpop.permute.xlu0 %2574
        %2576 = vrot.lane.b32.xlu0 %v2433, 52
        %v2577 = vpop.permute.xlu0 %2576
        %2578 = vrot.lane.b32.xlu0 %v2443, 52
        %v2579 = vpop.permute.xlu0 %2578
        %2580 = vrot.lane.b32.xlu0 %v2453, 52
        %v2581 = vpop.permute.xlu0 %2580
        %2582 = vrot.lane.b32.xlu0 %v2463, 52
        %v2583 = vpop.permute.xlu0 %2582
        %2584 = vrot.lane.b32.xlu0 %v2473, 52
        %v2585 = vpop.permute.xlu0 %2584
        %2586 = vrot.lane.b32.xlu0 %v2483, 52
        %v2587 = vpop.permute.xlu0 %2586
        %2588 = vrot.lane.b32.xlu0 %v2493, 52
        %v2589 = vpop.permute.xlu0 %2588
        %2590 = vrot.lane.b32.xlu0 %v2503, 52
        %v2591 = vpop.permute.xlu0 %2590
        %2592 = vrot.lane.b32.xlu0 %v2513, 52
        %v2593 = vpop.permute.xlu0 %2592
        %2594 = vrot.lane.b32.xlu0 %v2523, 52
        %v2595 = vpop.permute.xlu0 %2594
        %2596 = vrot.lane.b32.xlu0 %v2533, 52
        %v2597 = vpop.permute.xlu0 %2596
        %2598 = vrot.lane.b32.xlu0 %v2543, 52
        %v2599 = vpop.permute.xlu0 %2598
        %2600 = vrot.lane.b32.xlu0 %v2553, 52
        %v2601 = vpop.permute.xlu0 %2600
        %2602 = vrot.lane.b32.xlu0 %v2563, 52
        %v2603 = vpop.permute.xlu0 %2602
        %2604 = vrot.lane.b32.xlu0 %v2573, 52
        %v2605 = vpop.permute.xlu0 %2604
        %vm2622 = vcmask 454048
        %2623 = vst.msk [vmem:[#allocation2] sm:$0xf] %vm2622, %v2575
        %2624 = vst.msk [vmem:[#allocation2 + $0x4] sm:$0xf] %vm2622, %v2577
        %2625 = vst.msk [vmem:[#allocation2 + $0x8] sm:$0xf] %vm2622, %v2579
        %2626 = vst.msk [vmem:[#allocation2 + $0xc] sm:$0xf] %vm2622, %v2581
        %2627 = vst.msk [vmem:[#allocation2 + $0x10] sm:$0xf] %vm2622, %v2583
        %2628 = vst.msk [vmem:[#allocation2 + $0x14] sm:$0xf] %vm2622, %v2585
        %2629 = vst.msk [vmem:[#allocation2 + $0x18] sm:$0xf] %vm2622, %v2587
        %2630 = vst.msk [vmem:[#allocation2 + $0x1c] sm:$0xf] %vm2622, %v2589
        %2631 = vst.msk [vmem:[#allocation2 + $0x20] sm:$0xf] %vm2622, %v2591
        %2632 = vst.msk [vmem:[#allocation2 + $0x24] sm:$0xf] %vm2622, %v2593
        %2633 = vst.msk [vmem:[#allocation2 + $0x28] sm:$0xf] %vm2622, %v2595
        %2634 = vst.msk [vmem:[#allocation2 + $0x2c] sm:$0xf] %vm2622, %v2597
        %2635 = vst.msk [vmem:[#allocation2 + $0x30] sm:$0xf] %vm2622, %v2599
        %2636 = vst.msk [vmem:[#allocation2 + $0x34] sm:$0xf] %vm2622, %v2601
        %2637 = vst.msk [vmem:[#allocation2 + $0x38] sm:$0xf] %vm2622, %v2603
        %2638 = vst.msk [vmem:[#allocation2 + $0x3c] sm:$0xf] %vm2622, %v2605
        %v2639 = vld [vmem:[%s369 + $0x8] sm:$0xe]
        %v2640 = vld [vmem:[%s369 + $0xc] sm:$0xf]
        %v2641 = vld [vmem:[%s369 + $0x10] sm:$0xf]
        %v2642 = vld [vmem:[%s369 + $0x14] sm:$0xf]
        %v2643 = vld [vmem:[%s369 + $0x18] sm:$0xf]
        %v2644 = vld [vmem:[%s369 + $0x1c] sm:$0xf]
        %v2645 = vld [vmem:[%s369 + $0x20] sm:$0xf]
        %v2646 = vld [vmem:[%s369 + $0x24] sm:$0xf]
        %v2647 = vld [vmem:[%s369 + $0x28] sm:$0xf]
        %v2648 = vld [vmem:[%s369 + $0x2c] sm:$0xf]
        %v2649 = vld [vmem:[%s369 + $0x30] sm:$0xf]
        %v2650 = vld [vmem:[%s369 + $0x34] sm:$0xf]
        %v2651 = vld [vmem:[%s369 + $0x38] sm:$0xf]
        %v2652 = vld [vmem:[%s369 + $0x3c] sm:$0xf]
        %v2653 = vld [vmem:[%s369 + $0x40] sm:$0xf]
        %v2654 = vld [vmem:[%s369 + $0x44] sm:$0xf]
        %v2655 = vld [vmem:[%s369 + $0x48] sm:$0x1]
        %v2673 = vrot.slane %v2639, 5
        %v2674 = vrot.slane %v2673, 4
        %v2675 = vrot.slane %v2640, 5
        %v2676 = vsel %vm708, %v2674, %v2675
        %v2677 = vrot.slane %v2675, 4
        %v2678 = vrot.slane %v2641, 5
        %v2679 = vsel %vm708, %v2677, %v2678
        %v2680 = vrot.slane %v2678, 4
        %v2681 = vrot.slane %v2642, 5
        %v2682 = vsel %vm708, %v2680, %v2681
        %v2683 = vrot.slane %v2681, 4
        %v2684 = vrot.slane %v2643, 5
        %v2685 = vsel %vm708, %v2683, %v2684
        %v2686 = vrot.slane %v2684, 4
        %v2687 = vrot.slane %v2644, 5
        %v2688 = vsel %vm708, %v2686, %v2687
        %v2689 = vrot.slane %v2687, 4
        %v2690 = vrot.slane %v2645, 5
        %v2691 = vsel %vm708, %v2689, %v2690
        %v2692 = vrot.slane %v2690, 4
        %v2693 = vrot.slane %v2646, 5
        %v2694 = vsel %vm708, %v2692, %v2693
        %v2695 = vrot.slane %v2693, 4
        %v2696 = vrot.slane %v2647, 5
        %v2697 = vsel %vm708, %v2695, %v2696
        %v2698 = vrot.slane %v2696, 4
        %v2699 = vrot.slane %v2648, 5
        %v2700 = vsel %vm708, %v2698, %v2699
        %v2701 = vrot.slane %v2699, 4
        %v2702 = vrot.slane %v2649, 5
        %v2703 = vsel %vm708, %v2701, %v2702
        %v2704 = vrot.slane %v2702, 4
        %v2705 = vrot.slane %v2650, 5
        %v2706 = vsel %vm708, %v2704, %v2705
        %v2707 = vrot.slane %v2705, 4
        %v2708 = vrot.slane %v2651, 5
        %v2709 = vsel %vm708, %v2707, %v2708
        %v2710 = vrot.slane %v2708, 4
        %v2711 = vrot.slane %v2652, 5
        %v2712 = vsel %vm708, %v2710, %v2711
        %v2713 = vrot.slane %v2711, 4
        %v2714 = vrot.slane %v2653, 5
        %v2715 = vsel %vm708, %v2713, %v2714
        %v2716 = vrot.slane %v2714, 4
        %v2717 = vrot.slane %v2654, 5
        %v2718 = vsel %vm708, %v2716, %v2717
        %v2719 = vrot.slane %v2717, 4
        %v2720 = vrot.slane %v2655, 5
        %v2721 = vsel %vm708, %v2719, %v2720
        %2722 = vrot.lane.b32.xlu0 %v2676, 56
        %v2723 = vpop.permute.xlu0 %2722
        %2724 = vrot.lane.b32.xlu0 %v2679, 56
        %v2725 = vpop.permute.xlu0 %2724
        %2726 = vrot.lane.b32.xlu0 %v2682, 56
        %v2727 = vpop.permute.xlu0 %2726
        %2728 = vrot.lane.b32.xlu0 %v2685, 56
        %v2729 = vpop.permute.xlu0 %2728
        %2730 = vrot.lane.b32.xlu0 %v2688, 56
        %v2731 = vpop.permute.xlu0 %2730
        %2732 = vrot.lane.b32.xlu0 %v2691, 56
        %v2733 = vpop.permute.xlu0 %2732
        %2734 = vrot.lane.b32.xlu0 %v2694, 56
        %v2735 = vpop.permute.xlu0 %2734
        %2736 = vrot.lane.b32.xlu0 %v2697, 56
        %v2737 = vpop.permute.xlu0 %2736
        %2738 = vrot.lane.b32.xlu0 %v2700, 56
        %v2739 = vpop.permute.xlu0 %2738
        %2740 = vrot.lane.b32.xlu0 %v2703, 56
        %v2741 = vpop.permute.xlu0 %2740
        %2742 = vrot.lane.b32.xlu0 %v2706, 56
        %v2743 = vpop.permute.xlu0 %2742
        %2744 = vrot.lane.b32.xlu0 %v2709, 56
        %v2745 = vpop.permute.xlu0 %2744
        %2746 = vrot.lane.b32.xlu0 %v2712, 56
        %v2747 = vpop.permute.xlu0 %2746
        %2748 = vrot.lane.b32.xlu0 %v2715, 56
        %v2749 = vpop.permute.xlu0 %2748
        %2750 = vrot.lane.b32.xlu0 %v2718, 56
        %v2751 = vpop.permute.xlu0 %2750
        %2752 = vrot.lane.b32.xlu0 %v2721, 56
        %v2753 = vpop.permute.xlu0 %2752
        %vm2770 = vcmask 486848
        %2771 = vst.msk [vmem:[#allocation2] sm:$0xf] %vm2770, %v2723
        %2772 = vst.msk [vmem:[#allocation2 + $0x4] sm:$0xf] %vm2770, %v2725
        %2773 = vst.msk [vmem:[#allocation2 + $0x8] sm:$0xf] %vm2770, %v2727
        %2774 = vst.msk [vmem:[#allocation2 + $0xc] sm:$0xf] %vm2770, %v2729
        %2775 = vst.msk [vmem:[#allocation2 + $0x10] sm:$0xf] %vm2770, %v2731
        %2776 = vst.msk [vmem:[#allocation2 + $0x14] sm:$0xf] %vm2770, %v2733
        %2777 = vst.msk [vmem:[#allocation2 + $0x18] sm:$0xf] %vm2770, %v2735
        %2778 = vst.msk [vmem:[#allocation2 + $0x1c] sm:$0xf] %vm2770, %v2737
        %2779 = vst.msk [vmem:[#allocation2 + $0x20] sm:$0xf] %vm2770, %v2739
        %2780 = vst.msk [vmem:[#allocation2 + $0x24] sm:$0xf] %vm2770, %v2741
        %2781 = vst.msk [vmem:[#allocation2 + $0x28] sm:$0xf] %vm2770, %v2743
        %2782 = vst.msk [vmem:[#allocation2 + $0x2c] sm:$0xf] %vm2770, %v2745
        %2783 = vst.msk [vmem:[#allocation2 + $0x30] sm:$0xf] %vm2770, %v2747
        %2784 = vst.msk [vmem:[#allocation2 + $0x34] sm:$0xf] %vm2770, %v2749
        %2785 = vst.msk [vmem:[#allocation2 + $0x38] sm:$0xf] %vm2770, %v2751
        %2786 = vst.msk [vmem:[#allocation2 + $0x3c] sm:$0xf] %vm2770, %v2753
        %v2787 = vld [vmem:[%s369 + $0x10] sm:$0xf]
        %v2788 = vld [vmem:[%s369 + $0x14] sm:$0xf]
        %v2789 = vld [vmem:[%s369 + $0x18] sm:$0xf]
        %v2790 = vld [vmem:[%s369 + $0x1c] sm:$0xf]
        %v2791 = vld [vmem:[%s369 + $0x20] sm:$0xf]
        %v2792 = vld [vmem:[%s369 + $0x24] sm:$0xf]
        %v2793 = vld [vmem:[%s369 + $0x28] sm:$0xf]
        %v2794 = vld [vmem:[%s369 + $0x2c] sm:$0xf]
        %v2795 = vld [vmem:[%s369 + $0x30] sm:$0xf]
        %v2796 = vld [vmem:[%s369 + $0x34] sm:$0xf]
        %v2797 = vld [vmem:[%s369 + $0x38] sm:$0xf]
        %v2798 = vld [vmem:[%s369 + $0x3c] sm:$0xf]
        %v2799 = vld [vmem:[%s369 + $0x40] sm:$0xf]
        %v2800 = vld [vmem:[%s369 + $0x44] sm:$0xf]
        %v2801 = vld [vmem:[%s369 + $0x48] sm:$0xf]
        %v2802 = vld [vmem:[%s369 + $0x4c] sm:$0xf]
        %2819 = vrot.lane.b32.xlu0 %v2787, 60
        %v2820 = vpop.permute.xlu0 %2819
        %2821 = vrot.lane.b32.xlu0 %v2788, 60
        %v2822 = vpop.permute.xlu0 %2821
        %2823 = vrot.lane.b32.xlu0 %v2789, 60
        %v2824 = vpop.permute.xlu0 %2823
        %2825 = vrot.lane.b32.xlu0 %v2790, 60
        %v2826 = vpop.permute.xlu0 %2825
        %2827 = vrot.lane.b32.xlu0 %v2791, 60
        %v2828 = vpop.permute.xlu0 %2827
        %2829 = vrot.lane.b32.xlu0 %v2792, 60
        %v2830 = vpop.permute.xlu0 %2829
        %2831 = vrot.lane.b32.xlu0 %v2793, 60
        %v2832 = vpop.permute.xlu0 %2831
        %2833 = vrot.lane.b32.xlu0 %v2794, 60
        %v2834 = vpop.permute.xlu0 %2833
        %2835 = vrot.lane.b32.xlu0 %v2795, 60
        %v2836 = vpop.permute.xlu0 %2835
        %2837 = vrot.lane.b32.xlu0 %v2796, 60
        %v2838 = vpop.permute.xlu0 %2837
        %2839 = vrot.lane.b32.xlu0 %v2797, 60
        %v2840 = vpop.permute.xlu0 %2839
        %2841 = vrot.lane.b32.xlu0 %v2798, 60
        %v2842 = vpop.permute.xlu0 %2841
        %2843 = vrot.lane.b32.xlu0 %v2799, 60
        %v2844 = vpop.permute.xlu0 %2843
        %2845 = vrot.lane.b32.xlu0 %v2800, 60
        %v2846 = vpop.permute.xlu0 %2845
        %2847 = vrot.lane.b32.xlu0 %v2801, 60
        %v2848 = vpop.permute.xlu0 %2847
        %2849 = vrot.lane.b32.xlu0 %v2802, 60
        %v2850 = vpop.permute.xlu0 %2849
        %vm2867 = vcmask 519648
        %2868 = vst.msk [vmem:[#allocation2] sm:$0xf] %vm2867, %v2820
        %2869 = vst.msk [vmem:[#allocation2 + $0x4] sm:$0xf] %vm2867, %v2822
        %2870 = vst.msk [vmem:[#allocation2 + $0x8] sm:$0xf] %vm2867, %v2824
        %2871 = vst.msk [vmem:[#allocation2 + $0xc] sm:$0xf] %vm2867, %v2826
        %2872 = vst.msk [vmem:[#allocation2 + $0x10] sm:$0xf] %vm2867, %v2828
        %2873 = vst.msk [vmem:[#allocation2 + $0x14] sm:$0xf] %vm2867, %v2830
        %2874 = vst.msk [vmem:[#allocation2 + $0x18] sm:$0xf] %vm2867, %v2832
        %2875 = vst.msk [vmem:[#allocation2 + $0x1c] sm:$0xf] %vm2867, %v2834
        %2876 = vst.msk [vmem:[#allocation2 + $0x20] sm:$0xf] %vm2867, %v2836
        %2877 = vst.msk [vmem:[#allocation2 + $0x24] sm:$0xf] %vm2867, %v2838
        %2878 = vst.msk [vmem:[#allocation2 + $0x28] sm:$0xf] %vm2867, %v2840
        %2879 = vst.msk [vmem:[#allocation2 + $0x2c] sm:$0xf] %vm2867, %v2842
        %2880 = vst.msk [vmem:[#allocation2 + $0x30] sm:$0xf] %vm2867, %v2844
        %2881 = vst.msk [vmem:[#allocation2 + $0x34] sm:$0xf] %vm2867, %v2846
        %2882 = vst.msk [vmem:[#allocation2 + $0x38] sm:$0xf] %vm2867, %v2848
        %2883 = vst.msk [vmem:[#allocation2 + $0x3c] sm:$0xf] %vm2867, %v2850
        %v2884 = vld [vmem:[%s369 + $0x10] sm:$0xf]
        %v2885 = vld [vmem:[%s369 + $0x14] sm:$0xf]
        %v2886 = vld [vmem:[%s369 + $0x18] sm:$0xf]
        %v2887 = vld [vmem:[%s369 + $0x1c] sm:$0xf]
        %v2888 = vld [vmem:[%s369 + $0x20] sm:$0xf]
        %v2889 = vld [vmem:[%s369 + $0x24] sm:$0xf]
        %v2890 = vld [vmem:[%s369 + $0x28] sm:$0xf]
        %v2891 = vld [vmem:[%s369 + $0x2c] sm:$0xf]
        %v2892 = vld [vmem:[%s369 + $0x30] sm:$0xf]
        %v2893 = vld [vmem:[%s369 + $0x34] sm:$0xf]
        %v2894 = vld [vmem:[%s369 + $0x38] sm:$0xf]
        %v2895 = vld [vmem:[%s369 + $0x3c] sm:$0xf]
        %v2896 = vld [vmem:[%s369 + $0x40] sm:$0xf]
        %v2897 = vld [vmem:[%s369 + $0x44] sm:$0xf]
        %v2898 = vld [vmem:[%s369 + $0x48] sm:$0xf]
        %v2899 = vld [vmem:[%s369 + $0x4c] sm:$0xf]
        %v2900 = vld [vmem:[%s369 + $0x50] sm:$0x1]
        %v2902 = vshrl.u32 %v2884, 16
        %v2904 = vrot.slane %v2902, 4
        %v2905 = vshll.u32 %v2884, 16
        %v2907 = vrot.slane %v2905, 5
        %v2908 = vor.u32 %v2904, %v2907
        %v2909 = vrot.slane %v2908, 4
        %v2911 = vshll.u32 %v2885, 16
        %v2913 = vrot.slane %v2911, 5
        %v2914 = vsel %vm442, %v2909, %v2913
        %v2915 = vshrl.u32 %v2885, 16
        %v2917 = vrot.slane %v2915, 4
        %v2918 = vor.u32 %v2917, %v2913
        %v2919 = vrot.slane %v2918, 4
        %v2921 = vshll.u32 %v2886, 16
        %v2923 = vrot.slane %v2921, 5
        %v2924 = vsel %vm442, %v2919, %v2923
        %v2925 = vshrl.u32 %v2886, 16
        %v2927 = vrot.slane %v2925, 4
        %v2928 = vor.u32 %v2927, %v2923
        %v2929 = vrot.slane %v2928, 4
        %v2931 = vshll.u32 %v2887, 16
        %v2933 = vrot.slane %v2931, 5
        %v2934 = vsel %vm442, %v2929, %v2933
        %v2935 = vshrl.u32 %v2887, 16
        %v2937 = vrot.slane %v2935, 4
        %v2938 = vor.u32 %v2937, %v2933
        %v2939 = vrot.slane %v2938, 4
        %v2941 = vshll.u32 %v2888, 16
        %v2943 = vrot.slane %v2941, 5
        %v2944 = vsel %vm442, %v2939, %v2943
        %v2945 = vshrl.u32 %v2888, 16
        %v2947 = vrot.slane %v2945, 4
        %v2948 = vor.u32 %v2947, %v2943
        %v2949 = vrot.slane %v2948, 4
        %v2951 = vshll.u32 %v2889, 16
        %v2953 = vrot.slane %v2951, 5
        %v2954 = vsel %vm442, %v2949, %v2953
        %v2955 = vshrl.u32 %v2889, 16
        %v2957 = vrot.slane %v2955, 4
        %v2958 = vor.u32 %v2957, %v2953
        %v2959 = vrot.slane %v2958, 4
        %v2961 = vshll.u32 %v2890, 16
        %v2963 = vrot.slane %v2961, 5
        %v2964 = vsel %vm442, %v2959, %v2963
        %v2965 = vshrl.u32 %v2890, 16
        %v2967 = vrot.slane %v2965, 4
        %v2968 = vor.u32 %v2967, %v2963
        %v2969 = vrot.slane %v2968, 4
        %v2971 = vshll.u32 %v2891, 16
        %v2973 = vrot.slane %v2971, 5
        %v2974 = vsel %vm442, %v2969, %v2973
        %v2975 = vshrl.u32 %v2891, 16
        %v2977 = vrot.slane %v2975, 4
        %v2978 = vor.u32 %v2977, %v2973
        %v2979 = vrot.slane %v2978, 4
        %v2981 = vshll.u32 %v2892, 16
        %v2983 = vrot.slane %v2981, 5
        %v2984 = vsel %vm442, %v2979, %v2983
        %v2985 = vshrl.u32 %v2892, 16
        %v2987 = vrot.slane %v2985, 4
        %v2988 = vor.u32 %v2987, %v2983
        %v2989 = vrot.slane %v2988, 4
        %v2991 = vshll.u32 %v2893, 16
        %v2993 = vrot.slane %v2991, 5
        %v2994 = vsel %vm442, %v2989, %v2993
        %v2995 = vshrl.u32 %v2893, 16
        %v2997 = vrot.slane %v2995, 4
        %v2998 = vor.u32 %v2997, %v2993
        %v2999 = vrot.slane %v2998, 4
        %v3001 = vshll.u32 %v2894, 16
        %v3003 = vrot.slane %v3001, 5
        %v3004 = vsel %vm442, %v2999, %v3003
        %v3005 = vshrl.u32 %v2894, 16
        %v3007 = vrot.slane %v3005, 4
        %v3008 = vor.u32 %v3007, %v3003
        %v3009 = vrot.slane %v3008, 4
        %v3011 = vshll.u32 %v2895, 16
        %v3013 = vrot.slane %v3011, 5
        %v3014 = vsel %vm442, %v3009, %v3013
        %v3015 = vshrl.u32 %v2895, 16
        %v3017 = vrot.slane %v3015, 4
        %v3018 = vor.u32 %v3017, %v3013
        %v3019 = vrot.slane %v3018, 4
        %v3021 = vshll.u32 %v2896, 16
        %v3023 = vrot.slane %v3021, 5
        %v3024 = vsel %vm442, %v3019, %v3023
        %v3025 = vshrl.u32 %v2896, 16
        %v3027 = vrot.slane %v3025, 4
        %v3028 = vor.u32 %v3027, %v3023
        %v3029 = vrot.slane %v3028, 4
        %v3031 = vshll.u32 %v2897, 16
        %v3033 = vrot.slane %v3031, 5
        %v3034 = vsel %vm442, %v3029, %v3033
        %v3035 = vshrl.u32 %v2897, 16
        %v3037 = vrot.slane %v3035, 4
        %v3038 = vor.u32 %v3037, %v3033
        %v3039 = vrot.slane %v3038, 4
        %v3041 = vshll.u32 %v2898, 16
        %v3043 = vrot.slane %v3041, 5
        %v3044 = vsel %vm442, %v3039, %v3043
        %v3045 = vshrl.u32 %v2898, 16
        %v3047 = vrot.slane %v3045, 4
        %v3048 = vor.u32 %v3047, %v3043
        %v3049 = vrot.slane %v3048, 4
        %v3051 = vshll.u32 %v2899, 16
        %v3053 = vrot.slane %v3051, 5
        %v3054 = vsel %vm442, %v3049, %v3053
        %v3055 = vshrl.u32 %v2899, 16
        %v3057 = vrot.slane %v3055, 4
        %v3058 = vor.u32 %v3057, %v3053
        %v3059 = vrot.slane %v3058, 4
        %v3061 = vshll.u32 %v2900, 16
        %v3063 = vrot.slane %v3061, 5
        %v3064 = vsel %vm442, %v3059, %v3063
        %3065 = vrot.lane.b32.xlu0 %v2914, 64
        %v3066 = vpop.permute.xlu0 %3065
        %3067 = vrot.lane.b32.xlu0 %v2924, 64
        %v3068 = vpop.permute.xlu0 %3067
        %3069 = vrot.lane.b32.xlu0 %v2934, 64
        %v3070 = vpop.permute.xlu0 %3069
        %3071 = vrot.lane.b32.xlu0 %v2944, 64
        %v3072 = vpop.permute.xlu0 %3071
        %3073 = vrot.lane.b32.xlu0 %v2954, 64
        %v3074 = vpop.permute.xlu0 %3073
        %3075 = vrot.lane.b32.xlu0 %v2964, 64
        %v3076 = vpop.permute.xlu0 %3075
        %3077 = vrot.lane.b32.xlu0 %v2974, 64
        %v3078 = vpop.permute.xlu0 %3077
        %3079 = vrot.lane.b32.xlu0 %v2984, 64
        %v3080 = vpop.permute.xlu0 %3079
        %3081 = vrot.lane.b32.xlu0 %v2994, 64
        %v3082 = vpop.permute.xlu0 %3081
        %3083 = vrot.lane.b32.xlu0 %v3004, 64
        %v3084 = vpop.permute.xlu0 %3083
        %3085 = vrot.lane.b32.xlu0 %v3014, 64
        %v3086 = vpop.permute.xlu0 %3085
        %3087 = vrot.lane.b32.xlu0 %v3024, 64
        %v3088 = vpop.permute.xlu0 %3087
        %3089 = vrot.lane.b32.xlu0 %v3034, 64
        %v3090 = vpop.permute.xlu0 %3089
        %3091 = vrot.lane.b32.xlu0 %v3044, 64
        %v3092 = vpop.permute.xlu0 %3091
        %3093 = vrot.lane.b32.xlu0 %v3054, 64
        %v3094 = vpop.permute.xlu0 %3093
        %3095 = vrot.lane.b32.xlu0 %v3064, 64
        %v3096 = vpop.permute.xlu0 %3095
        %vm3113 = vcmask 552448
        %3114 = vst.msk [vmem:[#allocation2] sm:$0xf] %vm3113, %v3066
        %3115 = vst.msk [vmem:[#allocation2 + $0x4] sm:$0xf] %vm3113, %v3068
        %3116 = vst.msk [vmem:[#allocation2 + $0x8] sm:$0xf] %vm3113, %v3070
        %3117 = vst.msk [vmem:[#allocation2 + $0xc] sm:$0xf] %vm3113, %v3072
        %3118 = vst.msk [vmem:[#allocation2 + $0x10] sm:$0xf] %vm3113, %v3074
        %3119 = vst.msk [vmem:[#allocation2 + $0x14] sm:$0xf] %vm3113, %v3076
        %3120 = vst.msk [vmem:[#allocation2 + $0x18] sm:$0xf] %vm3113, %v3078
        %3121 = vst.msk [vmem:[#allocation2 + $0x1c] sm:$0xf] %vm3113, %v3080
        %3122 = vst.msk [vmem:[#allocation2 + $0x20] sm:$0xf] %vm3113, %v3082
        %3123 = vst.msk [vmem:[#allocation2 + $0x24] sm:$0xf] %vm3113, %v3084
        %3124 = vst.msk [vmem:[#allocation2 + $0x28] sm:$0xf] %vm3113, %v3086
        %3125 = vst.msk [vmem:[#allocation2 + $0x2c] sm:$0xf] %vm3113, %v3088
        %3126 = vst.msk [vmem:[#allocation2 + $0x30] sm:$0xf] %vm3113, %v3090
        %3127 = vst.msk [vmem:[#allocation2 + $0x34] sm:$0xf] %vm3113, %v3092
        %3128 = vst.msk [vmem:[#allocation2 + $0x38] sm:$0xf] %vm3113, %v3094
        %3129 = vst.msk [vmem:[#allocation2 + $0x3c] sm:$0xf] %vm3113, %v3096
        %v3130 = vld [vmem:[%s369 + $0x10] sm:$0xe]
        %v3131 = vld [vmem:[%s369 + $0x14] sm:$0xf]
        %v3132 = vld [vmem:[%s369 + $0x18] sm:$0xf]
        %v3133 = vld [vmem:[%s369 + $0x1c] sm:$0xf]
        %v3134 = vld [vmem:[%s369 + $0x20] sm:$0xf]
        %v3135 = vld [vmem:[%s369 + $0x24] sm:$0xf]
        %v3136 = vld [vmem:[%s369 + $0x28] sm:$0xf]
        %v3137 = vld [vmem:[%s369 + $0x2c] sm:$0xf]
        %v3138 = vld [vmem:[%s369 + $0x30] sm:$0xf]
        %v3139 = vld [vmem:[%s369 + $0x34] sm:$0xf]
        %v3140 = vld [vmem:[%s369 + $0x38] sm:$0xf]
        %v3141 = vld [vmem:[%s369 + $0x3c] sm:$0xf]
        %v3142 = vld [vmem:[%s369 + $0x40] sm:$0xf]
        %v3143 = vld [vmem:[%s369 + $0x44] sm:$0xf]
        %v3144 = vld [vmem:[%s369 + $0x48] sm:$0xf]
        %v3145 = vld [vmem:[%s369 + $0x4c] sm:$0xf]
        %v3146 = vld [vmem:[%s369 + $0x50] sm:$0x1]
        %v3164 = vrot.slane %v3130, 5
        %v3165 = vrot.slane %v3164, 4
        %v3166 = vrot.slane %v3131, 5
        %v3167 = vsel %vm708, %v3165, %v3166
        %v3168 = vrot.slane %v3166, 4
        %v3169 = vrot.slane %v3132, 5
        %v3170 = vsel %vm708, %v3168, %v3169
        %v3171 = vrot.slane %v3169, 4
        %v3172 = vrot.slane %v3133, 5
        %v3173 = vsel %vm708, %v3171, %v3172
        %v3174 = vrot.slane %v3172, 4
        %v3175 = vrot.slane %v3134, 5
        %v3176 = vsel %vm708, %v3174, %v3175
        %v3177 = vrot.slane %v3175, 4
        %v3178 = vrot.slane %v3135, 5
        %v3179 = vsel %vm708, %v3177, %v3178
        %v3180 = vrot.slane %v3178, 4
        %v3181 = vrot.slane %v3136, 5
        %v3182 = vsel %vm708, %v3180, %v3181
        %v3183 = vrot.slane %v3181, 4
        %v3184 = vrot.slane %v3137, 5
        %v3185 = vsel %vm708, %v3183, %v3184
        %v3186 = vrot.slane %v3184, 4
        %v3187 = vrot.slane %v3138, 5
        %v3188 = vsel %vm708, %v3186, %v3187
        %v3189 = vrot.slane %v3187, 4
        %v3190 = vrot.slane %v3139, 5
        %v3191 = vsel %vm708, %v3189, %v3190
        %v3192 = vrot.slane %v3190, 4
        %v3193 = vrot.slane %v3140, 5
        %v3194 = vsel %vm708, %v3192, %v3193
        %v3195 = vrot.slane %v3193, 4
        %v3196 = vrot.slane %v3141, 5
        %v3197 = vsel %vm708, %v3195, %v3196
        %v3198 = vrot.slane %v3196, 4
        %v3199 = vrot.slane %v3142, 5
        %v3200 = vsel %vm708, %v3198, %v3199
        %v3201 = vrot.slane %v3199, 4
        %v3202 = vrot.slane %v3143, 5
        %v3203 = vsel %vm708, %v3201, %v3202
        %v3204 = vrot.slane %v3202, 4
        %v3205 = vrot.slane %v3144, 5
        %v3206 = vsel %vm708, %v3204, %v3205
        %v3207 = vrot.slane %v3205, 4
        %v3208 = vrot.slane %v3145, 5
        %v3209 = vsel %vm708, %v3207, %v3208
        %v3210 = vrot.slane %v3208, 4
        %v3211 = vrot.slane %v3146, 5
        %v3212 = vsel %vm708, %v3210, %v3211
        %3213 = vrot.lane.b32.xlu0 %v3167, 68
        %v3214 = vpop.permute.xlu0 %3213
        %3215 = vrot.lane.b32.xlu0 %v3170, 68
        %v3216 = vpop.permute.xlu0 %3215
        %3217 = vrot.lane.b32.xlu0 %v3173, 68
        %v3218 = vpop.permute.xlu0 %3217
        %3219 = vrot.lane.b32.xlu0 %v3176, 68
        %v3220 = vpop.permute.xlu0 %3219
        %3221 = vrot.lane.b32.xlu0 %v3179, 68
        %v3222 = vpop.permute.xlu0 %3221
        %3223 = vrot.lane.b32.xlu0 %v3182, 68
        %v3224 = vpop.permute.xlu0 %3223
        %3225 = vrot.lane.b32.xlu0 %v3185, 68
        %v3226 = vpop.permute.xlu0 %3225
        %3227 = vrot.lane.b32.xlu0 %v3188, 68
        %v3228 = vpop.permute.xlu0 %3227
        %3229 = vrot.lane.b32.xlu0 %v3191, 68
        %v3230 = vpop.permute.xlu0 %3229
        %3231 = vrot.lane.b32.xlu0 %v3194, 68
        %v3232 = vpop.permute.xlu0 %3231
        %3233 = vrot.lane.b32.xlu0 %v3197, 68
        %v3234 = vpop.permute.xlu0 %3233
        %3235 = vrot.lane.b32.xlu0 %v3200, 68
        %v3236 = vpop.permute.xlu0 %3235
        %3237 = vrot.lane.b32.xlu0 %v3203, 68
        %v3238 = vpop.permute.xlu0 %3237
        %3239 = vrot.lane.b32.xlu0 %v3206, 68
        %v3240 = vpop.permute.xlu0 %3239
        %3241 = vrot.lane.b32.xlu0 %v3209, 68
        %v3242 = vpop.permute.xlu0 %3241
        %3243 = vrot.lane.b32.xlu0 %v3212, 68
        %v3244 = vpop.permute.xlu0 %3243
        %vm3261 = vcmask 585248
        %3262 = vst.msk [vmem:[#allocation2] sm:$0xf] %vm3261, %v3214
        %3263 = vst.msk [vmem:[#allocation2 + $0x4] sm:$0xf] %vm3261, %v3216
        %3264 = vst.msk [vmem:[#allocation2 + $0x8] sm:$0xf] %vm3261, %v3218
        %3265 = vst.msk [vmem:[#allocation2 + $0xc] sm:$0xf] %vm3261, %v3220
        %3266 = vst.msk [vmem:[#allocation2 + $0x10] sm:$0xf] %vm3261, %v3222
        %3267 = vst.msk [vmem:[#allocation2 + $0x14] sm:$0xf] %vm3261, %v3224
        %3268 = vst.msk [vmem:[#allocation2 + $0x18] sm:$0xf] %vm3261, %v3226
        %3269 = vst.msk [vmem:[#allocation2 + $0x1c] sm:$0xf] %vm3261, %v3228
        %3270 = vst.msk [vmem:[#allocation2 + $0x20] sm:$0xf] %vm3261, %v3230
        %3271 = vst.msk [vmem:[#allocation2 + $0x24] sm:$0xf] %vm3261, %v3232
        %3272 = vst.msk [vmem:[#allocation2 + $0x28] sm:$0xf] %vm3261, %v3234
        %3273 = vst.msk [vmem:[#allocation2 + $0x2c] sm:$0xf] %vm3261, %v3236
        %3274 = vst.msk [vmem:[#allocation2 + $0x30] sm:$0xf] %vm3261, %v3238
        %3275 = vst.msk [vmem:[#allocation2 + $0x34] sm:$0xf] %vm3261, %v3240
        %3276 = vst.msk [vmem:[#allocation2 + $0x38] sm:$0xf] %vm3261, %v3242
        %3277 = vst.msk [vmem:[#allocation2 + $0x3c] sm:$0xf] %vm3261, %v3244
        %v3278 = vld [vmem:[%s380] sm:$0xf]
        %v3279 = vld [vmem:[%s380 + $0x4] sm:$0xf]
        %v3280 = vld [vmem:[%s380 + $0x8] sm:$0xf]
        %v3281 = vld [vmem:[%s380 + $0xc] sm:$0xf]
        %v3282 = vld [vmem:[%s380 + $0x10] sm:$0xf]
        %v3283 = vld [vmem:[%s380 + $0x14] sm:$0xf]
        %v3284 = vld [vmem:[%s380 + $0x18] sm:$0xf]
        %v3285 = vld [vmem:[%s380 + $0x1c] sm:$0xf]
        %v3286 = vld [vmem:[%s380 + $0x20] sm:$0xf]
        %v3287 = vld [vmem:[%s380 + $0x24] sm:$0xf]
        %v3288 = vld [vmem:[%s380 + $0x28] sm:$0xf]
        %v3289 = vld [vmem:[%s380 + $0x2c] sm:$0xf]
        %v3290 = vld [vmem:[%s380 + $0x30] sm:$0xf]
        %v3291 = vld [vmem:[%s380 + $0x34] sm:$0xf]
        %v3292 = vld [vmem:[%s380 + $0x38] sm:$0xf]
        %v3293 = vld [vmem:[%s380 + $0x3c] sm:$0xf]
        %3310 = vrot.lane.b32.xlu0 %v3278, 72
        %v3311 = vpop.permute.xlu0 %3310
        %3312 = vrot.lane.b32.xlu0 %v3279, 72
        %v3313 = vpop.permute.xlu0 %3312
        %3314 = vrot.lane.b32.xlu0 %v3280, 72
        %v3315 = vpop.permute.xlu0 %3314
        %3316 = vrot.lane.b32.xlu0 %v3281, 72
        %v3317 = vpop.permute.xlu0 %3316
        %3318 = vrot.lane.b32.xlu0 %v3282, 72
        %v3319 = vpop.permute.xlu0 %3318
        %3320 = vrot.lane.b32.xlu0 %v3283, 72
        %v3321 = vpop.permute.xlu0 %3320
        %3322 = vrot.lane.b32.xlu0 %v3284, 72
        %v3323 = vpop.permute.xlu0 %3322
        %3324 = vrot.lane.b32.xlu0 %v3285, 72
        %v3325 = vpop.permute.xlu0 %3324
        %3326 = vrot.lane.b32.xlu0 %v3286, 72
        %v3327 = vpop.permute.xlu0 %3326
        %3328 = vrot.lane.b32.xlu0 %v3287, 72
        %v3329 = vpop.permute.xlu0 %3328
        %3330 = vrot.lane.b32.xlu0 %v3288, 72
        %v3331 = vpop.permute.xlu0 %3330
        %3332 = vrot.lane.b32.xlu0 %v3289, 72
        %v3333 = vpop.permute.xlu0 %3332
        %3334 = vrot.lane.b32.xlu0 %v3290, 72
        %v3335 = vpop.permute.xlu0 %3334
        %3336 = vrot.lane.b32.xlu0 %v3291, 72
        %v3337 = vpop.permute.xlu0 %3336
        %3338 = vrot.lane.b32.xlu0 %v3292, 72
        %v3339 = vpop.permute.xlu0 %3338
        %3340 = vrot.lane.b32.xlu0 %v3293, 72
        %v3341 = vpop.permute.xlu0 %3340
        %vm3358 = vcmask 618048
        %3359 = vst.msk [vmem:[#allocation2] sm:$0xf] %vm3358, %v3311
        %3360 = vst.msk [vmem:[#allocation2 + $0x4] sm:$0xf] %vm3358, %v3313
        %3361 = vst.msk [vmem:[#allocation2 + $0x8] sm:$0xf] %vm3358, %v3315
        %3362 = vst.msk [vmem:[#allocation2 + $0xc] sm:$0xf] %vm3358, %v3317
        %3363 = vst.msk [vmem:[#allocation2 + $0x10] sm:$0xf] %vm3358, %v3319
        %3364 = vst.msk [vmem:[#allocation2 + $0x14] sm:$0xf] %vm3358, %v3321
        %3365 = vst.msk [vmem:[#allocation2 + $0x18] sm:$0xf] %vm3358, %v3323
        %3366 = vst.msk [vmem:[#allocation2 + $0x1c] sm:$0xf] %vm3358, %v3325
        %3367 = vst.msk [vmem:[#allocation2 + $0x20] sm:$0xf] %vm3358, %v3327
        %3368 = vst.msk [vmem:[#allocation2 + $0x24] sm:$0xf] %vm3358, %v3329
        %3369 = vst.msk [vmem:[#allocation2 + $0x28] sm:$0xf] %vm3358, %v3331
        %3370 = vst.msk [vmem:[#allocation2 + $0x2c] sm:$0xf] %vm3358, %v3333
        %3371 = vst.msk [vmem:[#allocation2 + $0x30] sm:$0xf] %vm3358, %v3335
        %3372 = vst.msk [vmem:[#allocation2 + $0x34] sm:$0xf] %vm3358, %v3337
        %3373 = vst.msk [vmem:[#allocation2 + $0x38] sm:$0xf] %vm3358, %v3339
        %3374 = vst.msk [vmem:[#allocation2 + $0x3c] sm:$0xf] %vm3358, %v3341
        %v3375 = vld [vmem:[%s380] sm:$0xf]
        %v3376 = vld [vmem:[%s380 + $0x4] sm:$0xf]
        %v3377 = vld [vmem:[%s380 + $0x8] sm:$0xf]
        %v3378 = vld [vmem:[%s380 + $0xc] sm:$0xf]
        %v3379 = vld [vmem:[%s380 + $0x10] sm:$0xf]
        %v3380 = vld [vmem:[%s380 + $0x14] sm:$0xf]
        %v3381 = vld [vmem:[%s380 + $0x18] sm:$0xf]
        %v3382 = vld [vmem:[%s380 + $0x1c] sm:$0xf]
        %v3383 = vld [vmem:[%s380 + $0x20] sm:$0xf]
        %v3384 = vld [vmem:[%s380 + $0x24] sm:$0xf]
        %v3385 = vld [vmem:[%s380 + $0x28] sm:$0xf]
        %v3386 = vld [vmem:[%s380 + $0x2c] sm:$0xf]
        %v3387 = vld [vmem:[%s380 + $0x30] sm:$0xf]
        %v3388 = vld [vmem:[%s380 + $0x34] sm:$0xf]
        %v3389 = vld [vmem:[%s380 + $0x38] sm:$0xf]
        %v3390 = vld [vmem:[%s380 + $0x3c] sm:$0xf]
        %v3391 = vld [vmem:[%s380 + $0x40] sm:$0x1]
        %v3393 = vshrl.u32 %v3375, 16
        %v3395 = vrot.slane %v3393, 4
        %v3396 = vshll.u32 %v3375, 16
        %v3398 = vrot.slane %v3396, 5
        %v3399 = vor.u32 %v3395, %v3398
        %v3400 = vrot.slane %v3399, 4
        %v3402 = vshll.u32 %v3376, 16
        %v3404 = vrot.slane %v3402, 5
        %v3405 = vsel %vm442, %v3400, %v3404
        %v3406 = vshrl.u32 %v3376, 16
        %v3408 = vrot.slane %v3406, 4
        %v3409 = vor.u32 %v3408, %v3404
        %v3410 = vrot.slane %v3409, 4
        %v3412 = vshll.u32 %v3377, 16
        %v3414 = vrot.slane %v3412, 5
        %v3415 = vsel %vm442, %v3410, %v3414
        %v3416 = vshrl.u32 %v3377, 16
        %v3418 = vrot.slane %v3416, 4
        %v3419 = vor.u32 %v3418, %v3414
        %v3420 = vrot.slane %v3419, 4
        %v3422 = vshll.u32 %v3378, 16
        %v3424 = vrot.slane %v3422, 5
        %v3425 = vsel %vm442, %v3420, %v3424
        %v3426 = vshrl.u32 %v3378, 16
        %v3428 = vrot.slane %v3426, 4
        %v3429 = vor.u32 %v3428, %v3424
        %v3430 = vrot.slane %v3429, 4
        %v3432 = vshll.u32 %v3379, 16
        %v3434 = vrot.slane %v3432, 5
        %v3435 = vsel %vm442, %v3430, %v3434
        %v3436 = vshrl.u32 %v3379, 16
        %v3438 = vrot.slane %v3436, 4
        %v3439 = vor.u32 %v3438, %v3434
        %v3440 = vrot.slane %v3439, 4
        %v3442 = vshll.u32 %v3380, 16
        %v3444 = vrot.slane %v3442, 5
        %v3445 = vsel %vm442, %v3440, %v3444
        %v3446 = vshrl.u32 %v3380, 16
        %v3448 = vrot.slane %v3446, 4
        %v3449 = vor.u32 %v3448, %v3444
        %v3450 = vrot.slane %v3449, 4
        %v3452 = vshll.u32 %v3381, 16
        %v3454 = vrot.slane %v3452, 5
        %v3455 = vsel %vm442, %v3450, %v3454
        %v3456 = vshrl.u32 %v3381, 16
        %v3458 = vrot.slane %v3456, 4
        %v3459 = vor.u32 %v3458, %v3454
        %v3460 = vrot.slane %v3459, 4
        %v3462 = vshll.u32 %v3382, 16
        %v3464 = vrot.slane %v3462, 5
        %v3465 = vsel %vm442, %v3460, %v3464
        %v3466 = vshrl.u32 %v3382, 16
        %v3468 = vrot.slane %v3466, 4
        %v3469 = vor.u32 %v3468, %v3464
        %v3470 = vrot.slane %v3469, 4
        %v3472 = vshll.u32 %v3383, 16
        %v3474 = vrot.slane %v3472, 5
        %v3475 = vsel %vm442, %v3470, %v3474
        %v3476 = vshrl.u32 %v3383, 16
        %v3478 = vrot.slane %v3476, 4
        %v3479 = vor.u32 %v3478, %v3474
        %v3480 = vrot.slane %v3479, 4
        %v3482 = vshll.u32 %v3384, 16
        %v3484 = vrot.slane %v3482, 5
        %v3485 = vsel %vm442, %v3480, %v3484
        %v3486 = vshrl.u32 %v3384, 16
        %v3488 = vrot.slane %v3486, 4
        %v3489 = vor.u32 %v3488, %v3484
        %v3490 = vrot.slane %v3489, 4
        %v3492 = vshll.u32 %v3385, 16
        %v3494 = vrot.slane %v3492, 5
        %v3495 = vsel %vm442, %v3490, %v3494
        %v3496 = vshrl.u32 %v3385, 16
        %v3498 = vrot.slane %v3496, 4
        %v3499 = vor.u32 %v3498, %v3494
        %v3500 = vrot.slane %v3499, 4
        %v3502 = vshll.u32 %v3386, 16
        %v3504 = vrot.slane %v3502, 5
        %v3505 = vsel %vm442, %v3500, %v3504
        %v3506 = vshrl.u32 %v3386, 16
        %v3508 = vrot.slane %v3506, 4
        %v3509 = vor.u32 %v3508, %v3504
        %v3510 = vrot.slane %v3509, 4
        %v3512 = vshll.u32 %v3387, 16
        %v3514 = vrot.slane %v3512, 5
        %v3515 = vsel %vm442, %v3510, %v3514
        %v3516 = vshrl.u32 %v3387, 16
        %v3518 = vrot.slane %v3516, 4
        %v3519 = vor.u32 %v3518, %v3514
        %v3520 = vrot.slane %v3519, 4
        %v3522 = vshll.u32 %v3388, 16
        %v3524 = vrot.slane %v3522, 5
        %v3525 = vsel %vm442, %v3520, %v3524
        %v3526 = vshrl.u32 %v3388, 16
        %v3528 = vrot.slane %v3526, 4
        %v3529 = vor.u32 %v3528, %v3524
        %v3530 = vrot.slane %v3529, 4
        %v3532 = vshll.u32 %v3389, 16
        %v3534 = vrot.slane %v3532, 5
        %v3535 = vsel %vm442, %v3530, %v3534
        %v3536 = vshrl.u32 %v3389, 16
        %v3538 = vrot.slane %v3536, 4
        %v3539 = vor.u32 %v3538, %v3534
        %v3540 = vrot.slane %v3539, 4
        %v3542 = vshll.u32 %v3390, 16
        %v3544 = vrot.slane %v3542, 5
        %v3545 = vsel %vm442, %v3540, %v3544
        %v3546 = vshrl.u32 %v3390, 16
        %v3548 = vrot.slane %v3546, 4
        %v3549 = vor.u32 %v3548, %v3544
        %v3550 = vrot.slane %v3549, 4
        %v3552 = vshll.u32 %v3391, 16
        %v3554 = vrot.slane %v3552, 5
        %v3555 = vsel %vm442, %v3550, %v3554
        %3556 = vrot.lane.b32.xlu0 %v3405, 76
        %v3557 = vpop.permute.xlu0 %3556
        %3558 = vrot.lane.b32.xlu0 %v3415, 76
        %v3559 = vpop.permute.xlu0 %3558
        %3560 = vrot.lane.b32.xlu0 %v3425, 76
        %v3561 = vpop.permute.xlu0 %3560
        %3562 = vrot.lane.b32.xlu0 %v3435, 76
        %v3563 = vpop.permute.xlu0 %3562
        %3564 = vrot.lane.b32.xlu0 %v3445, 76
        %v3565 = vpop.permute.xlu0 %3564
        %3566 = vrot.lane.b32.xlu0 %v3455, 76
        %v3567 = vpop.permute.xlu0 %3566
        %3568 = vrot.lane.b32.xlu0 %v3465, 76
        %v3569 = vpop.permute.xlu0 %3568
        %3570 = vrot.lane.b32.xlu0 %v3475, 76
        %v3571 = vpop.permute.xlu0 %3570
        %3572 = vrot.lane.b32.xlu0 %v3485, 76
        %v3573 = vpop.permute.xlu0 %3572
        %3574 = vrot.lane.b32.xlu0 %v3495, 76
        %v3575 = vpop.permute.xlu0 %3574
        %3576 = vrot.lane.b32.xlu0 %v3505, 76
        %v3577 = vpop.permute.xlu0 %3576
        %3578 = vrot.lane.b32.xlu0 %v3515, 76
        %v3579 = vpop.permute.xlu0 %3578
        %3580 = vrot.lane.b32.xlu0 %v3525, 76
        %v3581 = vpop.permute.xlu0 %3580
        %3582 = vrot.lane.b32.xlu0 %v3535, 76
        %v3583 = vpop.permute.xlu0 %3582
        %3584 = vrot.lane.b32.xlu0 %v3545, 76
        %v3585 = vpop.permute.xlu0 %3584
        %3586 = vrot.lane.b32.xlu0 %v3555, 76
        %v3587 = vpop.permute.xlu0 %3586
        %vm3604 = vcmask 650848
        %3605 = vst.msk [vmem:[#allocation2] sm:$0xf] %vm3604, %v3557
        %3606 = vst.msk [vmem:[#allocation2 + $0x4] sm:$0xf] %vm3604, %v3559
        %3607 = vst.msk [vmem:[#allocation2 + $0x8] sm:$0xf] %vm3604, %v3561
        %3608 = vst.msk [vmem:[#allocation2 + $0xc] sm:$0xf] %vm3604, %v3563
        %3609 = vst.msk [vmem:[#allocation2 + $0x10] sm:$0xf] %vm3604, %v3565
        %3610 = vst.msk [vmem:[#allocation2 + $0x14] sm:$0xf] %vm3604, %v3567
        %3611 = vst.msk [vmem:[#allocation2 + $0x18] sm:$0xf] %vm3604, %v3569
        %3612 = vst.msk [vmem:[#allocation2 + $0x1c] sm:$0xf] %vm3604, %v3571
        %3613 = vst.msk [vmem:[#allocation2 + $0x20] sm:$0xf] %vm3604, %v3573
        %3614 = vst.msk [vmem:[#allocation2 + $0x24] sm:$0xf] %vm3604, %v3575
        %3615 = vst.msk [vmem:[#allocation2 + $0x28] sm:$0xf] %vm3604, %v3577
        %3616 = vst.msk [vmem:[#allocation2 + $0x2c] sm:$0xf] %vm3604, %v3579
        %3617 = vst.msk [vmem:[#allocation2 + $0x30] sm:$0xf] %vm3604, %v3581
        %3618 = vst.msk [vmem:[#allocation2 + $0x34] sm:$0xf] %vm3604, %v3583
        %3619 = vst.msk [vmem:[#allocation2 + $0x38] sm:$0xf] %vm3604, %v3585
        %3620 = vst.msk [vmem:[#allocation2 + $0x3c] sm:$0xf] %vm3604, %v3587
        %v3621 = vld [vmem:[%s380] sm:$0xe]
        %v3622 = vld [vmem:[%s380 + $0x4] sm:$0xf]
        %v3623 = vld [vmem:[%s380 + $0x8] sm:$0xf]
        %v3624 = vld [vmem:[%s380 + $0xc] sm:$0xf]
        %v3625 = vld [vmem:[%s380 + $0x10] sm:$0xf]
        %v3626 = vld [vmem:[%s380 + $0x14] sm:$0xf]
        %v3627 = vld [vmem:[%s380 + $0x18] sm:$0xf]
        %v3628 = vld [vmem:[%s380 + $0x1c] sm:$0xf]
        %v3629 = vld [vmem:[%s380 + $0x20] sm:$0xf]
        %v3630 = vld [vmem:[%s380 + $0x24] sm:$0xf]
        %v3631 = vld [vmem:[%s380 + $0x28] sm:$0xf]
        %v3632 = vld [vmem:[%s380 + $0x2c] sm:$0xf]
        %v3633 = vld [vmem:[%s380 + $0x30] sm:$0xf]
        %v3634 = vld [vmem:[%s380 + $0x34] sm:$0xf]
        %v3635 = vld [vmem:[%s380 + $0x38] sm:$0xf]
        %v3636 = vld [vmem:[%s380 + $0x3c] sm:$0xf]
        %v3637 = vld [vmem:[%s380 + $0x40] sm:$0x1]
        %v3655 = vrot.slane %v3621, 5
        %v3656 = vrot.slane %v3655, 4
        %v3657 = vrot.slane %v3622, 5
        %v3658 = vsel %vm708, %v3656, %v3657
        %v3659 = vrot.slane %v3657, 4
        %v3660 = vrot.slane %v3623, 5
        %v3661 = vsel %vm708, %v3659, %v3660
        %v3662 = vrot.slane %v3660, 4
        %v3663 = vrot.slane %v3624, 5
        %v3664 = vsel %vm708, %v3662, %v3663
        %v3665 = vrot.slane %v3663, 4
        %v3666 = vrot.slane %v3625, 5
        %v3667 = vsel %vm708, %v3665, %v3666
        %v3668 = vrot.slane %v3666, 4
        %v3669 = vrot.slane %v3626, 5
        %v3670 = vsel %vm708, %v3668, %v3669
        %v3671 = vrot.slane %v3669, 4
        %v3672 = vrot.slane %v3627, 5
        %v3673 = vsel %vm708, %v3671, %v3672
        %v3674 = vrot.slane %v3672, 4
        %v3675 = vrot.slane %v3628, 5
        %v3676 = vsel %vm708, %v3674, %v3675
        %v3677 = vrot.slane %v3675, 4
        %v3678 = vrot.slane %v3629, 5
        %v3679 = vsel %vm708, %v3677, %v3678
        %v3680 = vrot.slane %v3678, 4
        %v3681 = vrot.slane %v3630, 5
        %v3682 = vsel %vm708, %v3680, %v3681
        %v3683 = vrot.slane %v3681, 4
        %v3684 = vrot.slane %v3631, 5
        %v3685 = vsel %vm708, %v3683, %v3684
        %v3686 = vrot.slane %v3684, 4
        %v3687 = vrot.slane %v3632, 5
        %v3688 = vsel %vm708, %v3686, %v3687
        %v3689 = vrot.slane %v3687, 4
        %v3690 = vrot.slane %v3633, 5
        %v3691 = vsel %vm708, %v3689, %v3690
        %v3692 = vrot.slane %v3690, 4
        %v3693 = vrot.slane %v3634, 5
        %v3694 = vsel %vm708, %v3692, %v3693
        %v3695 = vrot.slane %v3693, 4
        %v3696 = vrot.slane %v3635, 5
        %v3697 = vsel %vm708, %v3695, %v3696
        %v3698 = vrot.slane %v3696, 4
        %v3699 = vrot.slane %v3636, 5
        %v3700 = vsel %vm708, %v3698, %v3699
        %v3701 = vrot.slane %v3699, 4
        %v3702 = vrot.slane %v3637, 5
        %v3703 = vsel %vm708, %v3701, %v3702
        %3704 = vrot.lane.b32.xlu0 %v3658, 80
        %v3705 = vpop.permute.xlu0 %3704
        %3706 = vrot.lane.b32.xlu0 %v3661, 80
        %v3707 = vpop.permute.xlu0 %3706
        %3708 = vrot.lane.b32.xlu0 %v3664, 80
        %v3709 = vpop.permute.xlu0 %3708
        %3710 = vrot.lane.b32.xlu0 %v3667, 80
        %v3711 = vpop.permute.xlu0 %3710
        %3712 = vrot.lane.b32.xlu0 %v3670, 80
        %v3713 = vpop.permute.xlu0 %3712
        %3714 = vrot.lane.b32.xlu0 %v3673, 80
        %v3715 = vpop.permute.xlu0 %3714
        %3716 = vrot.lane.b32.xlu0 %v3676, 80
        %v3717 = vpop.permute.xlu0 %3716
        %3718 = vrot.lane.b32.xlu0 %v3679, 80
        %v3719 = vpop.permute.xlu0 %3718
        %3720 = vrot.lane.b32.xlu0 %v3682, 80
        %v3721 = vpop.permute.xlu0 %3720
        %3722 = vrot.lane.b32.xlu0 %v3685, 80
        %v3723 = vpop.permute.xlu0 %3722
        %3724 = vrot.lane.b32.xlu0 %v3688, 80
        %v3725 = vpop.permute.xlu0 %3724
        %3726 = vrot.lane.b32.xlu0 %v3691, 80
        %v3727 = vpop.permute.xlu0 %3726
        %3728 = vrot.lane.b32.xlu0 %v3694, 80
        %v3729 = vpop.permute.xlu0 %3728
        %3730 = vrot.lane.b32.xlu0 %v3697, 80
        %v3731 = vpop.permute.xlu0 %3730
        %3732 = vrot.lane.b32.xlu0 %v3700, 80
        %v3733 = vpop.permute.xlu0 %3732
        %3734 = vrot.lane.b32.xlu0 %v3703, 80
        %v3735 = vpop.permute.xlu0 %3734
        %vm3752 = vcmask 683648
        %3753 = vst.msk [vmem:[#allocation2] sm:$0xf] %vm3752, %v3705
        %3754 = vst.msk [vmem:[#allocation2 + $0x4] sm:$0xf] %vm3752, %v3707
        %3755 = vst.msk [vmem:[#allocation2 + $0x8] sm:$0xf] %vm3752, %v3709
        %3756 = vst.msk [vmem:[#allocation2 + $0xc] sm:$0xf] %vm3752, %v3711
        %3757 = vst.msk [vmem:[#allocation2 + $0x10] sm:$0xf] %vm3752, %v3713
        %3758 = vst.msk [vmem:[#allocation2 + $0x14] sm:$0xf] %vm3752, %v3715
        %3759 = vst.msk [vmem:[#allocation2 + $0x18] sm:$0xf] %vm3752, %v3717
        %3760 = vst.msk [vmem:[#allocation2 + $0x1c] sm:$0xf] %vm3752, %v3719
        %3761 = vst.msk [vmem:[#allocation2 + $0x20] sm:$0xf] %vm3752, %v3721
        %3762 = vst.msk [vmem:[#allocation2 + $0x24] sm:$0xf] %vm3752, %v3723
        %3763 = vst.msk [vmem:[#allocation2 + $0x28] sm:$0xf] %vm3752, %v3725
        %3764 = vst.msk [vmem:[#allocation2 + $0x2c] sm:$0xf] %vm3752, %v3727
        %3765 = vst.msk [vmem:[#allocation2 + $0x30] sm:$0xf] %vm3752, %v3729
        %3766 = vst.msk [vmem:[#allocation2 + $0x34] sm:$0xf] %vm3752, %v3731
        %3767 = vst.msk [vmem:[#allocation2 + $0x38] sm:$0xf] %vm3752, %v3733
        %3768 = vst.msk [vmem:[#allocation2 + $0x3c] sm:$0xf] %vm3752, %v3735
        %v3769 = vld [vmem:[%s380 + $0x8] sm:$0xf]
        %v3770 = vld [vmem:[%s380 + $0xc] sm:$0xf]
        %v3771 = vld [vmem:[%s380 + $0x10] sm:$0xf]
        %v3772 = vld [vmem:[%s380 + $0x14] sm:$0xf]
        %v3773 = vld [vmem:[%s380 + $0x18] sm:$0xf]
        %v3774 = vld [vmem:[%s380 + $0x1c] sm:$0xf]
        %v3775 = vld [vmem:[%s380 + $0x20] sm:$0xf]
        %v3776 = vld [vmem:[%s380 + $0x24] sm:$0xf]
        %v3777 = vld [vmem:[%s380 + $0x28] sm:$0xf]
        %v3778 = vld [vmem:[%s380 + $0x2c] sm:$0xf]
        %v3779 = vld [vmem:[%s380 + $0x30] sm:$0xf]
        %v3780 = vld [vmem:[%s380 + $0x34] sm:$0xf]
        %v3781 = vld [vmem:[%s380 + $0x38] sm:$0xf]
        %v3782 = vld [vmem:[%s380 + $0x3c] sm:$0xf]
        %v3783 = vld [vmem:[%s380 + $0x40] sm:$0xf]
        %v3784 = vld [vmem:[%s380 + $0x44] sm:$0xf]
        %3801 = vrot.lane.b32.xlu0 %v3769, 84
        %v3802 = vpop.permute.xlu0 %3801
        %3803 = vrot.lane.b32.xlu0 %v3770, 84
        %v3804 = vpop.permute.xlu0 %3803
        %3805 = vrot.lane.b32.xlu0 %v3771, 84
        %v3806 = vpop.permute.xlu0 %3805
        %3807 = vrot.lane.b32.xlu0 %v3772, 84
        %v3808 = vpop.permute.xlu0 %3807
        %3809 = vrot.lane.b32.xlu0 %v3773, 84
        %v3810 = vpop.permute.xlu0 %3809
        %3811 = vrot.lane.b32.xlu0 %v3774, 84
        %v3812 = vpop.permute.xlu0 %3811
        %3813 = vrot.lane.b32.xlu0 %v3775, 84
        %v3814 = vpop.permute.xlu0 %3813
        %3815 = vrot.lane.b32.xlu0 %v3776, 84
        %v3816 = vpop.permute.xlu0 %3815
        %3817 = vrot.lane.b32.xlu0 %v3777, 84
        %v3818 = vpop.permute.xlu0 %3817
        %3819 = vrot.lane.b32.xlu0 %v3778, 84
        %v3820 = vpop.permute.xlu0 %3819
        %3821 = vrot.lane.b32.xlu0 %v3779, 84
        %v3822 = vpop.permute.xlu0 %3821
        %3823 = vrot.lane.b32.xlu0 %v3780, 84
        %v3824 = vpop.permute.xlu0 %3823
        %3825 = vrot.lane.b32.xlu0 %v3781, 84
        %v3826 = vpop.permute.xlu0 %3825
        %3827 = vrot.lane.b32.xlu0 %v3782, 84
        %v3828 = vpop.permute.xlu0 %3827
        %3829 = vrot.lane.b32.xlu0 %v3783, 84
        %v3830 = vpop.permute.xlu0 %3829
        %3831 = vrot.lane.b32.xlu0 %v3784, 84
        %v3832 = vpop.permute.xlu0 %3831
        %vm3849 = vcmask 716448
        %3850 = vst.msk [vmem:[#allocation2] sm:$0xf] %vm3849, %v3802
        %3851 = vst.msk [vmem:[#allocation2 + $0x4] sm:$0xf] %vm3849, %v3804
        %3852 = vst.msk [vmem:[#allocation2 + $0x8] sm:$0xf] %vm3849, %v3806
        %3853 = vst.msk [vmem:[#allocation2 + $0xc] sm:$0xf] %vm3849, %v3808
        %3854 = vst.msk [vmem:[#allocation2 + $0x10] sm:$0xf] %vm3849, %v3810
        %3855 = vst.msk [vmem:[#allocation2 + $0x14] sm:$0xf] %vm3849, %v3812
        %3856 = vst.msk [vmem:[#allocation2 + $0x18] sm:$0xf] %vm3849, %v3814
        %3857 = vst.msk [vmem:[#allocation2 + $0x1c] sm:$0xf] %vm3849, %v3816
        %3858 = vst.msk [vmem:[#allocation2 + $0x20] sm:$0xf] %vm3849, %v3818
        %3859 = vst.msk [vmem:[#allocation2 + $0x24] sm:$0xf] %vm3849, %v3820
        %3860 = vst.msk [vmem:[#allocation2 + $0x28] sm:$0xf] %vm3849, %v3822
        %3861 = vst.msk [vmem:[#allocation2 + $0x2c] sm:$0xf] %vm3849, %v3824
        %3862 = vst.msk [vmem:[#allocation2 + $0x30] sm:$0xf] %vm3849, %v3826
        %3863 = vst.msk [vmem:[#allocation2 + $0x34] sm:$0xf] %vm3849, %v3828
        %3864 = vst.msk [vmem:[#allocation2 + $0x38] sm:$0xf] %vm3849, %v3830
        %3865 = vst.msk [vmem:[#allocation2 + $0x3c] sm:$0xf] %vm3849, %v3832
        %v3866 = vld [vmem:[%s380 + $0x8] sm:$0xf]
        %v3867 = vld [vmem:[%s380 + $0xc] sm:$0xf]
        %v3868 = vld [vmem:[%s380 + $0x10] sm:$0xf]
        %v3869 = vld [vmem:[%s380 + $0x14] sm:$0xf]
        %v3870 = vld [vmem:[%s380 + $0x18] sm:$0xf]
        %v3871 = vld [vmem:[%s380 + $0x1c] sm:$0xf]
        %v3872 = vld [vmem:[%s380 + $0x20] sm:$0xf]
        %v3873 = vld [vmem:[%s380 + $0x24] sm:$0xf]
        %v3874 = vld [vmem:[%s380 + $0x28] sm:$0xf]
        %v3875 = vld [vmem:[%s380 + $0x2c] sm:$0xf]
        %v3876 = vld [vmem:[%s380 + $0x30] sm:$0xf]
        %v3877 = vld [vmem:[%s380 + $0x34] sm:$0xf]
        %v3878 = vld [vmem:[%s380 + $0x38] sm:$0xf]
        %v3879 = vld [vmem:[%s380 + $0x3c] sm:$0xf]
        %v3880 = vld [vmem:[%s380 + $0x40] sm:$0xf]
        %v3881 = vld [vmem:[%s380 + $0x44] sm:$0xf]
        %v3882 = vld [vmem:[%s380 + $0x48] sm:$0x1]
        %v3884 = vshrl.u32 %v3866, 16
        %v3886 = vrot.slane %v3884, 4
        %v3887 = vshll.u32 %v3866, 16
        %v3889 = vrot.slane %v3887, 5
        %v3890 = vor.u32 %v3886, %v3889
        %v3891 = vrot.slane %v3890, 4
        %v3893 = vshll.u32 %v3867, 16
        %v3895 = vrot.slane %v3893, 5
        %v3896 = vsel %vm442, %v3891, %v3895
        %v3897 = vshrl.u32 %v3867, 16
        %v3899 = vrot.slane %v3897, 4
        %v3900 = vor.u32 %v3899, %v3895
        %v3901 = vrot.slane %v3900, 4
        %v3903 = vshll.u32 %v3868, 16
        %v3905 = vrot.slane %v3903, 5
        %v3906 = vsel %vm442, %v3901, %v3905
        %v3907 = vshrl.u32 %v3868, 16
        %v3909 = vrot.slane %v3907, 4
        %v3910 = vor.u32 %v3909, %v3905
        %v3911 = vrot.slane %v3910, 4
        %v3913 = vshll.u32 %v3869, 16
        %v3915 = vrot.slane %v3913, 5
        %v3916 = vsel %vm442, %v3911, %v3915
        %v3917 = vshrl.u32 %v3869, 16
        %v3919 = vrot.slane %v3917, 4
        %v3920 = vor.u32 %v3919, %v3915
        %v3921 = vrot.slane %v3920, 4
        %v3923 = vshll.u32 %v3870, 16
        %v3925 = vrot.slane %v3923, 5
        %v3926 = vsel %vm442, %v3921, %v3925
        %v3927 = vshrl.u32 %v3870, 16
        %v3929 = vrot.slane %v3927, 4
        %v3930 = vor.u32 %v3929, %v3925
        %v3931 = vrot.slane %v3930, 4
        %v3933 = vshll.u32 %v3871, 16
        %v3935 = vrot.slane %v3933, 5
        %v3936 = vsel %vm442, %v3931, %v3935
        %v3937 = vshrl.u32 %v3871, 16
        %v3939 = vrot.slane %v3937, 4
        %v3940 = vor.u32 %v3939, %v3935
        %v3941 = vrot.slane %v3940, 4
        %v3943 = vshll.u32 %v3872, 16
        %v3945 = vrot.slane %v3943, 5
        %v3946 = vsel %vm442, %v3941, %v3945
        %v3947 = vshrl.u32 %v3872, 16
        %v3949 = vrot.slane %v3947, 4
        %v3950 = vor.u32 %v3949, %v3945
        %v3951 = vrot.slane %v3950, 4
        %v3953 = vshll.u32 %v3873, 16
        %v3955 = vrot.slane %v3953, 5
        %v3956 = vsel %vm442, %v3951, %v3955
        %v3957 = vshrl.u32 %v3873, 16
        %v3959 = vrot.slane %v3957, 4
        %v3960 = vor.u32 %v3959, %v3955
        %v3961 = vrot.slane %v3960, 4
        %v3963 = vshll.u32 %v3874, 16
        %v3965 = vrot.slane %v3963, 5
        %v3966 = vsel %vm442, %v3961, %v3965
        %v3967 = vshrl.u32 %v3874, 16
        %v3969 = vrot.slane %v3967, 4
        %v3970 = vor.u32 %v3969, %v3965
        %v3971 = vrot.slane %v3970, 4
        %v3973 = vshll.u32 %v3875, 16
        %v3975 = vrot.slane %v3973, 5
        %v3976 = vsel %vm442, %v3971, %v3975
        %v3977 = vshrl.u32 %v3875, 16
        %v3979 = vrot.slane %v3977, 4
        %v3980 = vor.u32 %v3979, %v3975
        %v3981 = vrot.slane %v3980, 4
        %v3983 = vshll.u32 %v3876, 16
        %v3985 = vrot.slane %v3983, 5
        %v3986 = vsel %vm442, %v3981, %v3985
        %v3987 = vshrl.u32 %v3876, 16
        %v3989 = vrot.slane %v3987, 4
        %v3990 = vor.u32 %v3989, %v3985
        %v3991 = vrot.slane %v3990, 4
        %v3993 = vshll.u32 %v3877, 16
        %v3995 = vrot.slane %v3993, 5
        %v3996 = vsel %vm442, %v3991, %v3995
        %v3997 = vshrl.u32 %v3877, 16
        %v3999 = vrot.slane %v3997, 4
        %v4000 = vor.u32 %v3999, %v3995
        %v4001 = vrot.slane %v4000, 4
        %v4003 = vshll.u32 %v3878, 16
        %v4005 = vrot.slane %v4003, 5
        %v4006 = vsel %vm442, %v4001, %v4005
        %v4007 = vshrl.u32 %v3878, 16
        %v4009 = vrot.slane %v4007, 4
        %v4010 = vor.u32 %v4009, %v4005
        %v4011 = vrot.slane %v4010, 4
        %v4013 = vshll.u32 %v3879, 16
        %v4015 = vrot.slane %v4013, 5
        %v4016 = vsel %vm442, %v4011, %v4015
        %v4017 = vshrl.u32 %v3879, 16
        %v4019 = vrot.slane %v4017, 4
        %v4020 = vor.u32 %v4019, %v4015
        %v4021 = vrot.slane %v4020, 4
        %v4023 = vshll.u32 %v3880, 16
        %v4025 = vrot.slane %v4023, 5
        %v4026 = vsel %vm442, %v4021, %v4025
        %v4027 = vshrl.u32 %v3880, 16
        %v4029 = vrot.slane %v4027, 4
        %v4030 = vor.u32 %v4029, %v4025
        %v4031 = vrot.slane %v4030, 4
        %v4033 = vshll.u32 %v3881, 16
        %v4035 = vrot.slane %v4033, 5
        %v4036 = vsel %vm442, %v4031, %v4035
        %v4037 = vshrl.u32 %v3881, 16
        %v4039 = vrot.slane %v4037, 4
        %v4040 = vor.u32 %v4039, %v4035
        %v4041 = vrot.slane %v4040, 4
        %v4043 = vshll.u32 %v3882, 16
        %v4045 = vrot.slane %v4043, 5
        %v4046 = vsel %vm442, %v4041, %v4045
        %4047 = vrot.lane.b32.xlu0 %v3896, 88
        %v4048 = vpop.permute.xlu0 %4047
        %4049 = vrot.lane.b32.xlu0 %v3906, 88
        %v4050 = vpop.permute.xlu0 %4049
        %4051 = vrot.lane.b32.xlu0 %v3916, 88
        %v4052 = vpop.permute.xlu0 %4051
        %4053 = vrot.lane.b32.xlu0 %v3926, 88
        %v4054 = vpop.permute.xlu0 %4053
        %4055 = vrot.lane.b32.xlu0 %v3936, 88
        %v4056 = vpop.permute.xlu0 %4055
        %4057 = vrot.lane.b32.xlu0 %v3946, 88
        %v4058 = vpop.permute.xlu0 %4057
        %4059 = vrot.lane.b32.xlu0 %v3956, 88
        %v4060 = vpop.permute.xlu0 %4059
        %4061 = vrot.lane.b32.xlu0 %v3966, 88
        %v4062 = vpop.permute.xlu0 %4061
        %4063 = vrot.lane.b32.xlu0 %v3976, 88
        %v4064 = vpop.permute.xlu0 %4063
        %4065 = vrot.lane.b32.xlu0 %v3986, 88
        %v4066 = vpop.permute.xlu0 %4065
        %4067 = vrot.lane.b32.xlu0 %v3996, 88
        %v4068 = vpop.permute.xlu0 %4067
        %4069 = vrot.lane.b32.xlu0 %v4006, 88
        %v4070 = vpop.permute.xlu0 %4069
        %4071 = vrot.lane.b32.xlu0 %v4016, 88
        %v4072 = vpop.permute.xlu0 %4071
        %4073 = vrot.lane.b32.xlu0 %v4026, 88
        %v4074 = vpop.permute.xlu0 %4073
        %4075 = vrot.lane.b32.xlu0 %v4036, 88
        %v4076 = vpop.permute.xlu0 %4075
        %4077 = vrot.lane.b32.xlu0 %v4046, 88
        %v4078 = vpop.permute.xlu0 %4077
        %vm4095 = vcmask 749248
        %4096 = vst.msk [vmem:[#allocation2] sm:$0xf] %vm4095, %v4048
        %4097 = vst.msk [vmem:[#allocation2 + $0x4] sm:$0xf] %vm4095, %v4050
        %4098 = vst.msk [vmem:[#allocation2 + $0x8] sm:$0xf] %vm4095, %v4052
        %4099 = vst.msk [vmem:[#allocation2 + $0xc] sm:$0xf] %vm4095, %v4054
        %4100 = vst.msk [vmem:[#allocation2 + $0x10] sm:$0xf] %vm4095, %v4056
        %4101 = vst.msk [vmem:[#allocation2 + $0x14] sm:$0xf] %vm4095, %v4058
        %4102 = vst.msk [vmem:[#allocation2 + $0x18] sm:$0xf] %vm4095, %v4060
        %4103 = vst.msk [vmem:[#allocation2 + $0x1c] sm:$0xf] %vm4095, %v4062
        %4104 = vst.msk [vmem:[#allocation2 + $0x20] sm:$0xf] %vm4095, %v4064
        %4105 = vst.msk [vmem:[#allocation2 + $0x24] sm:$0xf] %vm4095, %v4066
        %4106 = vst.msk [vmem:[#allocation2 + $0x28] sm:$0xf] %vm4095, %v4068
        %4107 = vst.msk [vmem:[#allocation2 + $0x2c] sm:$0xf] %vm4095, %v4070
        %4108 = vst.msk [vmem:[#allocation2 + $0x30] sm:$0xf] %vm4095, %v4072
        %4109 = vst.msk [vmem:[#allocation2 + $0x34] sm:$0xf] %vm4095, %v4074
        %4110 = vst.msk [vmem:[#allocation2 + $0x38] sm:$0xf] %vm4095, %v4076
        %4111 = vst.msk [vmem:[#allocation2 + $0x3c] sm:$0xf] %vm4095, %v4078
        %v4112 = vld [vmem:[%s380 + $0x8] sm:$0xe]
        %v4113 = vld [vmem:[%s380 + $0xc] sm:$0xf]
        %v4114 = vld [vmem:[%s380 + $0x10] sm:$0xf]
        %v4115 = vld [vmem:[%s380 + $0x14] sm:$0xf]
        %v4116 = vld [vmem:[%s380 + $0x18] sm:$0xf]
        %v4117 = vld [vmem:[%s380 + $0x1c] sm:$0xf]
        %v4118 = vld [vmem:[%s380 + $0x20] sm:$0xf]
        %v4119 = vld [vmem:[%s380 + $0x24] sm:$0xf]
        %v4120 = vld [vmem:[%s380 + $0x28] sm:$0xf]
        %v4121 = vld [vmem:[%s380 + $0x2c] sm:$0xf]
        %v4122 = vld [vmem:[%s380 + $0x30] sm:$0xf]
        %v4123 = vld [vmem:[%s380 + $0x34] sm:$0xf]
        %v4124 = vld [vmem:[%s380 + $0x38] sm:$0xf]
        %v4125 = vld [vmem:[%s380 + $0x3c] sm:$0xf]
        %v4126 = vld [vmem:[%s380 + $0x40] sm:$0xf]
        %v4127 = vld [vmem:[%s380 + $0x44] sm:$0xf]
        %v4128 = vld [vmem:[%s380 + $0x48] sm:$0x1]
        %v4146 = vrot.slane %v4112, 5
        %v4147 = vrot.slane %v4146, 4
        %v4148 = vrot.slane %v4113, 5
        %v4149 = vsel %vm708, %v4147, %v4148
        %v4150 = vrot.slane %v4148, 4
        %v4151 = vrot.slane %v4114, 5
        %v4152 = vsel %vm708, %v4150, %v4151
        %v4153 = vrot.slane %v4151, 4
        %v4154 = vrot.slane %v4115, 5
        %v4155 = vsel %vm708, %v4153, %v4154
        %v4156 = vrot.slane %v4154, 4
        %v4157 = vrot.slane %v4116, 5
        %v4158 = vsel %vm708, %v4156, %v4157
        %v4159 = vrot.slane %v4157, 4
        %v4160 = vrot.slane %v4117, 5
        %v4161 = vsel %vm708, %v4159, %v4160
        %v4162 = vrot.slane %v4160, 4
        %v4163 = vrot.slane %v4118, 5
        %v4164 = vsel %vm708, %v4162, %v4163
        %v4165 = vrot.slane %v4163, 4
        %v4166 = vrot.slane %v4119, 5
        %v4167 = vsel %vm708, %v4165, %v4166
        %v4168 = vrot.slane %v4166, 4
        %v4169 = vrot.slane %v4120, 5
        %v4170 = vsel %vm708, %v4168, %v4169
        %v4171 = vrot.slane %v4169, 4
        %v4172 = vrot.slane %v4121, 5
        %v4173 = vsel %vm708, %v4171, %v4172
        %v4174 = vrot.slane %v4172, 4
        %v4175 = vrot.slane %v4122, 5
        %v4176 = vsel %vm708, %v4174, %v4175
        %v4177 = vrot.slane %v4175, 4
        %v4178 = vrot.slane %v4123, 5
        %v4179 = vsel %vm708, %v4177, %v4178
        %v4180 = vrot.slane %v4178, 4
        %v4181 = vrot.slane %v4124, 5
        %v4182 = vsel %vm708, %v4180, %v4181
        %v4183 = vrot.slane %v4181, 4
        %v4184 = vrot.slane %v4125, 5
        %v4185 = vsel %vm708, %v4183, %v4184
        %v4186 = vrot.slane %v4184, 4
        %v4187 = vrot.slane %v4126, 5
        %v4188 = vsel %vm708, %v4186, %v4187
        %v4189 = vrot.slane %v4187, 4
        %v4190 = vrot.slane %v4127, 5
        %v4191 = vsel %vm708, %v4189, %v4190
        %v4192 = vrot.slane %v4190, 4
        %v4193 = vrot.slane %v4128, 5
        %v4194 = vsel %vm708, %v4192, %v4193
        %4195 = vrot.lane.b32.xlu0 %v4149, 92
        %v4196 = vpop.permute.xlu0 %4195
        %4197 = vrot.lane.b32.xlu0 %v4152, 92
        %v4198 = vpop.permute.xlu0 %4197
        %4199 = vrot.lane.b32.xlu0 %v4155, 92
        %v4200 = vpop.permute.xlu0 %4199
        %4201 = vrot.lane.b32.xlu0 %v4158, 92
        %v4202 = vpop.permute.xlu0 %4201
        %4203 = vrot.lane.b32.xlu0 %v4161, 92
        %v4204 = vpop.permute.xlu0 %4203
        %4205 = vrot.lane.b32.xlu0 %v4164, 92
        %v4206 = vpop.permute.xlu0 %4205
        %4207 = vrot.lane.b32.xlu0 %v4167, 92
        %v4208 = vpop.permute.xlu0 %4207
        %4209 = vrot.lane.b32.xlu0 %v4170, 92
        %v4210 = vpop.permute.xlu0 %4209
        %4211 = vrot.lane.b32.xlu0 %v4173, 92
        %v4212 = vpop.permute.xlu0 %4211
        %4213 = vrot.lane.b32.xlu0 %v4176, 92
        %v4214 = vpop.permute.xlu0 %4213
        %4215 = vrot.lane.b32.xlu0 %v4179, 92
        %v4216 = vpop.permute.xlu0 %4215
        %4217 = vrot.lane.b32.xlu0 %v4182, 92
        %v4218 = vpop.permute.xlu0 %4217
        %4219 = vrot.lane.b32.xlu0 %v4185, 92
        %v4220 = vpop.permute.xlu0 %4219
        %4221 = vrot.lane.b32.xlu0 %v4188, 92
        %v4222 = vpop.permute.xlu0 %4221
        %4223 = vrot.lane.b32.xlu0 %v4191, 92
        %v4224 = vpop.permute.xlu0 %4223
        %4225 = vrot.lane.b32.xlu0 %v4194, 92
        %v4226 = vpop.permute.xlu0 %4225
        %vm4243 = vcmask 782048
        %4244 = vst.msk [vmem:[#allocation2] sm:$0xf] %vm4243, %v4196
        %4245 = vst.msk [vmem:[#allocation2 + $0x4] sm:$0xf] %vm4243, %v4198
        %4246 = vst.msk [vmem:[#allocation2 + $0x8] sm:$0xf] %vm4243, %v4200
        %4247 = vst.msk [vmem:[#allocation2 + $0xc] sm:$0xf] %vm4243, %v4202
        %4248 = vst.msk [vmem:[#allocation2 + $0x10] sm:$0xf] %vm4243, %v4204
        %4249 = vst.msk [vmem:[#allocation2 + $0x14] sm:$0xf] %vm4243, %v4206
        %4250 = vst.msk [vmem:[#allocation2 + $0x18] sm:$0xf] %vm4243, %v4208
        %4251 = vst.msk [vmem:[#allocation2 + $0x1c] sm:$0xf] %vm4243, %v4210
        %4252 = vst.msk [vmem:[#allocation2 + $0x20] sm:$0xf] %vm4243, %v4212
        %4253 = vst.msk [vmem:[#allocation2 + $0x24] sm:$0xf] %vm4243, %v4214
        %4254 = vst.msk [vmem:[#allocation2 + $0x28] sm:$0xf] %vm4243, %v4216
        %4255 = vst.msk [vmem:[#allocation2 + $0x2c] sm:$0xf] %vm4243, %v4218
        %4256 = vst.msk [vmem:[#allocation2 + $0x30] sm:$0xf] %vm4243, %v4220
        %4257 = vst.msk [vmem:[#allocation2 + $0x34] sm:$0xf] %vm4243, %v4222
        %4258 = vst.msk [vmem:[#allocation2 + $0x38] sm:$0xf] %vm4243, %v4224
        %4259 = vst.msk [vmem:[#allocation2 + $0x3c] sm:$0xf] %vm4243, %v4226
        %v4260 = vld [vmem:[%s380 + $0x10] sm:$0xf]
        %v4261 = vld [vmem:[%s380 + $0x14] sm:$0xf]
        %v4262 = vld [vmem:[%s380 + $0x18] sm:$0xf]
        %v4263 = vld [vmem:[%s380 + $0x1c] sm:$0xf]
        %v4264 = vld [vmem:[%s380 + $0x20] sm:$0xf]
        %v4265 = vld [vmem:[%s380 + $0x24] sm:$0xf]
        %v4266 = vld [vmem:[%s380 + $0x28] sm:$0xf]
        %v4267 = vld [vmem:[%s380 + $0x2c] sm:$0xf]
        %v4268 = vld [vmem:[%s380 + $0x30] sm:$0xf]
        %v4269 = vld [vmem:[%s380 + $0x34] sm:$0xf]
        %v4270 = vld [vmem:[%s380 + $0x38] sm:$0xf]
        %v4271 = vld [vmem:[%s380 + $0x3c] sm:$0xf]
        %v4272 = vld [vmem:[%s380 + $0x40] sm:$0xf]
        %v4273 = vld [vmem:[%s380 + $0x44] sm:$0xf]
        %v4274 = vld [vmem:[%s380 + $0x48] sm:$0xf]
        %v4275 = vld [vmem:[%s380 + $0x4c] sm:$0xf]
        %4292 = vrot.lane.b32.xlu0 %v4260, 96
        %v4293 = vpop.permute.xlu0 %4292
        %4294 = vrot.lane.b32.xlu0 %v4261, 96
        %v4295 = vpop.permute.xlu0 %4294
        %4296 = vrot.lane.b32.xlu0 %v4262, 96
        %v4297 = vpop.permute.xlu0 %4296
        %4298 = vrot.lane.b32.xlu0 %v4263, 96
        %v4299 = vpop.permute.xlu0 %4298
        %4300 = vrot.lane.b32.xlu0 %v4264, 96
        %v4301 = vpop.permute.xlu0 %4300
        %4302 = vrot.lane.b32.xlu0 %v4265, 96
        %v4303 = vpop.permute.xlu0 %4302
        %4304 = vrot.lane.b32.xlu0 %v4266, 96
        %v4305 = vpop.permute.xlu0 %4304
        %4306 = vrot.lane.b32.xlu0 %v4267, 96
        %v4307 = vpop.permute.xlu0 %4306
        %4308 = vrot.lane.b32.xlu0 %v4268, 96
        %v4309 = vpop.permute.xlu0 %4308
        %4310 = vrot.lane.b32.xlu0 %v4269, 96
        %v4311 = vpop.permute.xlu0 %4310
        %4312 = vrot.lane.b32.xlu0 %v4270, 96
        %v4313 = vpop.permute.xlu0 %4312
        %4314 = vrot.lane.b32.xlu0 %v4271, 96
        %v4315 = vpop.permute.xlu0 %4314
        %4316 = vrot.lane.b32.xlu0 %v4272, 96
        %v4317 = vpop.permute.xlu0 %4316
        %4318 = vrot.lane.b32.xlu0 %v4273, 96
        %v4319 = vpop.permute.xlu0 %4318
        %4320 = vrot.lane.b32.xlu0 %v4274, 96
        %v4321 = vpop.permute.xlu0 %4320
        %4322 = vrot.lane.b32.xlu0 %v4275, 96
        %v4323 = vpop.permute.xlu0 %4322
        %vm4340 = vcmask 814848
        %4341 = vst.msk [vmem:[#allocation2] sm:$0xf] %vm4340, %v4293
        %4342 = vst.msk [vmem:[#allocation2 + $0x4] sm:$0xf] %vm4340, %v4295
        %4343 = vst.msk [vmem:[#allocation2 + $0x8] sm:$0xf] %vm4340, %v4297
        %4344 = vst.msk [vmem:[#allocation2 + $0xc] sm:$0xf] %vm4340, %v4299
        %4345 = vst.msk [vmem:[#allocation2 + $0x10] sm:$0xf] %vm4340, %v4301
        %4346 = vst.msk [vmem:[#allocation2 + $0x14] sm:$0xf] %vm4340, %v4303
        %4347 = vst.msk [vmem:[#allocation2 + $0x18] sm:$0xf] %vm4340, %v4305
        %4348 = vst.msk [vmem:[#allocation2 + $0x1c] sm:$0xf] %vm4340, %v4307
        %4349 = vst.msk [vmem:[#allocation2 + $0x20] sm:$0xf] %vm4340, %v4309
        %4350 = vst.msk [vmem:[#allocation2 + $0x24] sm:$0xf] %vm4340, %v4311
        %4351 = vst.msk [vmem:[#allocation2 + $0x28] sm:$0xf] %vm4340, %v4313
        %4352 = vst.msk [vmem:[#allocation2 + $0x2c] sm:$0xf] %vm4340, %v4315
        %4353 = vst.msk [vmem:[#allocation2 + $0x30] sm:$0xf] %vm4340, %v4317
        %4354 = vst.msk [vmem:[#allocation2 + $0x34] sm:$0xf] %vm4340, %v4319
        %4355 = vst.msk [vmem:[#allocation2 + $0x38] sm:$0xf] %vm4340, %v4321
        %4356 = vst.msk [vmem:[#allocation2 + $0x3c] sm:$0xf] %vm4340, %v4323
        %v4357 = vld [vmem:[%s380 + $0x10] sm:$0xf]
        %v4358 = vld [vmem:[%s380 + $0x14] sm:$0xf]
        %v4359 = vld [vmem:[%s380 + $0x18] sm:$0xf]
        %v4360 = vld [vmem:[%s380 + $0x1c] sm:$0xf]
        %v4361 = vld [vmem:[%s380 + $0x20] sm:$0xf]
        %v4362 = vld [vmem:[%s380 + $0x24] sm:$0xf]
        %v4363 = vld [vmem:[%s380 + $0x28] sm:$0xf]
        %v4364 = vld [vmem:[%s380 + $0x2c] sm:$0xf]
        %v4365 = vld [vmem:[%s380 + $0x30] sm:$0xf]
        %v4366 = vld [vmem:[%s380 + $0x34] sm:$0xf]
        %v4367 = vld [vmem:[%s380 + $0x38] sm:$0xf]
        %v4368 = vld [vmem:[%s380 + $0x3c] sm:$0xf]
        %v4369 = vld [vmem:[%s380 + $0x40] sm:$0xf]
        %v4370 = vld [vmem:[%s380 + $0x44] sm:$0xf]
        %v4371 = vld [vmem:[%s380 + $0x48] sm:$0xf]
        %v4372 = vld [vmem:[%s380 + $0x4c] sm:$0xf]
        %v4373 = vld [vmem:[%s380 + $0x50] sm:$0x1]
        %v4375 = vshrl.u32 %v4357, 16
        %v4377 = vrot.slane %v4375, 4
        %v4378 = vshll.u32 %v4357, 16
        %v4380 = vrot.slane %v4378, 5
        %v4381 = vor.u32 %v4377, %v4380
        %v4382 = vrot.slane %v4381, 4
        %v4384 = vshll.u32 %v4358, 16
        %v4386 = vrot.slane %v4384, 5
        %v4387 = vsel %vm442, %v4382, %v4386
        %v4388 = vshrl.u32 %v4358, 16
        %v4390 = vrot.slane %v4388, 4
        %v4391 = vor.u32 %v4390, %v4386
        %v4392 = vrot.slane %v4391, 4
        %v4394 = vshll.u32 %v4359, 16
        %v4396 = vrot.slane %v4394, 5
        %v4397 = vsel %vm442, %v4392, %v4396
        %v4398 = vshrl.u32 %v4359, 16
        %v4400 = vrot.slane %v4398, 4
        %v4401 = vor.u32 %v4400, %v4396
        %v4402 = vrot.slane %v4401, 4
        %v4404 = vshll.u32 %v4360, 16
        %v4406 = vrot.slane %v4404, 5
        %v4407 = vsel %vm442, %v4402, %v4406
        %v4408 = vshrl.u32 %v4360, 16
        %v4410 = vrot.slane %v4408, 4
        %v4411 = vor.u32 %v4410, %v4406
        %v4412 = vrot.slane %v4411, 4
        %v4414 = vshll.u32 %v4361, 16
        %v4416 = vrot.slane %v4414, 5
        %v4417 = vsel %vm442, %v4412, %v4416
        %v4418 = vshrl.u32 %v4361, 16
        %v4420 = vrot.slane %v4418, 4
        %v4421 = vor.u32 %v4420, %v4416
        %v4422 = vrot.slane %v4421, 4
        %v4424 = vshll.u32 %v4362, 16
        %v4426 = vrot.slane %v4424, 5
        %v4427 = vsel %vm442, %v4422, %v4426
        %v4428 = vshrl.u32 %v4362, 16
        %v4430 = vrot.slane %v4428, 4
        %v4431 = vor.u32 %v4430, %v4426
        %v4432 = vrot.slane %v4431, 4
        %v4434 = vshll.u32 %v4363, 16
        %v4436 = vrot.slane %v4434, 5
        %v4437 = vsel %vm442, %v4432, %v4436
        %v4438 = vshrl.u32 %v4363, 16
        %v4440 = vrot.slane %v4438, 4
        %v4441 = vor.u32 %v4440, %v4436
        %v4442 = vrot.slane %v4441, 4
        %v4444 = vshll.u32 %v4364, 16
        %v4446 = vrot.slane %v4444, 5
        %v4447 = vsel %vm442, %v4442, %v4446
        %v4448 = vshrl.u32 %v4364, 16
        %v4450 = vrot.slane %v4448, 4
        %v4451 = vor.u32 %v4450, %v4446
        %v4452 = vrot.slane %v4451, 4
        %v4454 = vshll.u32 %v4365, 16
        %v4456 = vrot.slane %v4454, 5
        %v4457 = vsel %vm442, %v4452, %v4456
        %v4458 = vshrl.u32 %v4365, 16
        %v4460 = vrot.slane %v4458, 4
        %v4461 = vor.u32 %v4460, %v4456
        %v4462 = vrot.slane %v4461, 4
        %v4464 = vshll.u32 %v4366, 16
        %v4466 = vrot.slane %v4464, 5
        %v4467 = vsel %vm442, %v4462, %v4466
        %v4468 = vshrl.u32 %v4366, 16
        %v4470 = vrot.slane %v4468, 4
        %v4471 = vor.u32 %v4470, %v4466
        %v4472 = vrot.slane %v4471, 4
        %v4474 = vshll.u32 %v4367, 16
        %v4476 = vrot.slane %v4474, 5
        %v4477 = vsel %vm442, %v4472, %v4476
        %v4478 = vshrl.u32 %v4367, 16
        %v4480 = vrot.slane %v4478, 4
        %v4481 = vor.u32 %v4480, %v4476
        %v4482 = vrot.slane %v4481, 4
        %v4484 = vshll.u32 %v4368, 16
        %v4486 = vrot.slane %v4484, 5
        %v4487 = vsel %vm442, %v4482, %v4486
        %v4488 = vshrl.u32 %v4368, 16
        %v4490 = vrot.slane %v4488, 4
        %v4491 = vor.u32 %v4490, %v4486
        %v4492 = vrot.slane %v4491, 4
        %v4494 = vshll.u32 %v4369, 16
        %v4496 = vrot.slane %v4494, 5
        %v4497 = vsel %vm442, %v4492, %v4496
        %v4498 = vshrl.u32 %v4369, 16
        %v4500 = vrot.slane %v4498, 4
        %v4501 = vor.u32 %v4500, %v4496
        %v4502 = vrot.slane %v4501, 4
        %v4504 = vshll.u32 %v4370, 16
        %v4506 = vrot.slane %v4504, 5
        %v4507 = vsel %vm442, %v4502, %v4506
        %v4508 = vshrl.u32 %v4370, 16
        %v4510 = vrot.slane %v4508, 4
        %v4511 = vor.u32 %v4510, %v4506
        %v4512 = vrot.slane %v4511, 4
        %v4514 = vshll.u32 %v4371, 16
        %v4516 = vrot.slane %v4514, 5
        %v4517 = vsel %vm442, %v4512, %v4516
        %v4518 = vshrl.u32 %v4371, 16
        %v4520 = vrot.slane %v4518, 4
        %v4521 = vor.u32 %v4520, %v4516
        %v4522 = vrot.slane %v4521, 4
        %v4524 = vshll.u32 %v4372, 16
        %v4526 = vrot.slane %v4524, 5
        %v4527 = vsel %vm442, %v4522, %v4526
        %v4528 = vshrl.u32 %v4372, 16
        %v4530 = vrot.slane %v4528, 4
        %v4531 = vor.u32 %v4530, %v4526
        %v4532 = vrot.slane %v4531, 4
        %v4534 = vshll.u32 %v4373, 16
        %v4536 = vrot.slane %v4534, 5
        %v4537 = vsel %vm442, %v4532, %v4536
        %4538 = vrot.lane.b32.xlu0 %v4387, 100
        %v4539 = vpop.permute.xlu0 %4538
        %4540 = vrot.lane.b32.xlu0 %v4397, 100
        %v4541 = vpop.permute.xlu0 %4540
        %4542 = vrot.lane.b32.xlu0 %v4407, 100
        %v4543 = vpop.permute.xlu0 %4542
        %4544 = vrot.lane.b32.xlu0 %v4417, 100
        %v4545 = vpop.permute.xlu0 %4544
        %4546 = vrot.lane.b32.xlu0 %v4427, 100
        %v4547 = vpop.permute.xlu0 %4546
        %4548 = vrot.lane.b32.xlu0 %v4437, 100
        %v4549 = vpop.permute.xlu0 %4548
        %4550 = vrot.lane.b32.xlu0 %v4447, 100
        %v4551 = vpop.permute.xlu0 %4550
        %4552 = vrot.lane.b32.xlu0 %v4457, 100
        %v4553 = vpop.permute.xlu0 %4552
        %4554 = vrot.lane.b32.xlu0 %v4467, 100
        %v4555 = vpop.permute.xlu0 %4554
        %4556 = vrot.lane.b32.xlu0 %v4477, 100
        %v4557 = vpop.permute.xlu0 %4556
        %4558 = vrot.lane.b32.xlu0 %v4487, 100
        %v4559 = vpop.permute.xlu0 %4558
        %4560 = vrot.lane.b32.xlu0 %v4497, 100
        %v4561 = vpop.permute.xlu0 %4560
        %4562 = vrot.lane.b32.xlu0 %v4507, 100
        %v4563 = vpop.permute.xlu0 %4562
        %4564 = vrot.lane.b32.xlu0 %v4517, 100
        %v4565 = vpop.permute.xlu0 %4564
        %4566 = vrot.lane.b32.xlu0 %v4527, 100
        %v4567 = vpop.permute.xlu0 %4566
        %4568 = vrot.lane.b32.xlu0 %v4537, 100
        %v4569 = vpop.permute.xlu0 %4568
        %vm4586 = vcmask 847648
        %4587 = vst.msk [vmem:[#allocation2] sm:$0xf] %vm4586, %v4539
        %4588 = vst.msk [vmem:[#allocation2 + $0x4] sm:$0xf] %vm4586, %v4541
        %4589 = vst.msk [vmem:[#allocation2 + $0x8] sm:$0xf] %vm4586, %v4543
        %4590 = vst.msk [vmem:[#allocation2 + $0xc] sm:$0xf] %vm4586, %v4545
        %4591 = vst.msk [vmem:[#allocation2 + $0x10] sm:$0xf] %vm4586, %v4547
        %4592 = vst.msk [vmem:[#allocation2 + $0x14] sm:$0xf] %vm4586, %v4549
        %4593 = vst.msk [vmem:[#allocation2 + $0x18] sm:$0xf] %vm4586, %v4551
        %4594 = vst.msk [vmem:[#allocation2 + $0x1c] sm:$0xf] %vm4586, %v4553
        %4595 = vst.msk [vmem:[#allocation2 + $0x20] sm:$0xf] %vm4586, %v4555
        %4596 = vst.msk [vmem:[#allocation2 + $0x24] sm:$0xf] %vm4586, %v4557
        %4597 = vst.msk [vmem:[#allocation2 + $0x28] sm:$0xf] %vm4586, %v4559
        %4598 = vst.msk [vmem:[#allocation2 + $0x2c] sm:$0xf] %vm4586, %v4561
        %4599 = vst.msk [vmem:[#allocation2 + $0x30] sm:$0xf] %vm4586, %v4563
        %4600 = vst.msk [vmem:[#allocation2 + $0x34] sm:$0xf] %vm4586, %v4565
        %4601 = vst.msk [vmem:[#allocation2 + $0x38] sm:$0xf] %vm4586, %v4567
        %4602 = vst.msk [vmem:[#allocation2 + $0x3c] sm:$0xf] %vm4586, %v4569
        %v4603 = vld [vmem:[%s380 + $0x10] sm:$0xe]
        %v4604 = vld [vmem:[%s380 + $0x14] sm:$0xf]
        %v4605 = vld [vmem:[%s380 + $0x18] sm:$0xf]
        %v4606 = vld [vmem:[%s380 + $0x1c] sm:$0xf]
        %v4607 = vld [vmem:[%s380 + $0x20] sm:$0xf]
        %v4608 = vld [vmem:[%s380 + $0x24] sm:$0xf]
        %v4609 = vld [vmem:[%s380 + $0x28] sm:$0xf]
        %v4610 = vld [vmem:[%s380 + $0x2c] sm:$0xf]
        %v4611 = vld [vmem:[%s380 + $0x30] sm:$0xf]
        %v4612 = vld [vmem:[%s380 + $0x34] sm:$0xf]
        %v4613 = vld [vmem:[%s380 + $0x38] sm:$0xf]
        %v4614 = vld [vmem:[%s380 + $0x3c] sm:$0xf]
        %v4615 = vld [vmem:[%s380 + $0x40] sm:$0xf]
        %v4616 = vld [vmem:[%s380 + $0x44] sm:$0xf]
        %v4617 = vld [vmem:[%s380 + $0x48] sm:$0xf]
        %v4618 = vld [vmem:[%s380 + $0x4c] sm:$0xf]
        %v4619 = vld [vmem:[%s380 + $0x50] sm:$0x1]
        %v4637 = vrot.slane %v4603, 5
        %v4638 = vrot.slane %v4637, 4
        %v4639 = vrot.slane %v4604, 5
        %v4640 = vsel %vm708, %v4638, %v4639
        %v4641 = vrot.slane %v4639, 4
        %v4642 = vrot.slane %v4605, 5
        %v4643 = vsel %vm708, %v4641, %v4642
        %v4644 = vrot.slane %v4642, 4
        %v4645 = vrot.slane %v4606, 5
        %v4646 = vsel %vm708, %v4644, %v4645
        %v4647 = vrot.slane %v4645, 4
        %v4648 = vrot.slane %v4607, 5
        %v4649 = vsel %vm708, %v4647, %v4648
        %v4650 = vrot.slane %v4648, 4
        %v4651 = vrot.slane %v4608, 5
        %v4652 = vsel %vm708, %v4650, %v4651
        %v4653 = vrot.slane %v4651, 4
        %v4654 = vrot.slane %v4609, 5
        %v4655 = vsel %vm708, %v4653, %v4654
        %v4656 = vrot.slane %v4654, 4
        %v4657 = vrot.slane %v4610, 5
        %v4658 = vsel %vm708, %v4656, %v4657
        %v4659 = vrot.slane %v4657, 4
        %v4660 = vrot.slane %v4611, 5
        %v4661 = vsel %vm708, %v4659, %v4660
        %v4662 = vrot.slane %v4660, 4
        %v4663 = vrot.slane %v4612, 5
        %v4664 = vsel %vm708, %v4662, %v4663
        %v4665 = vrot.slane %v4663, 4
        %v4666 = vrot.slane %v4613, 5
        %v4667 = vsel %vm708, %v4665, %v4666
        %v4668 = vrot.slane %v4666, 4
        %v4669 = vrot.slane %v4614, 5
        %v4670 = vsel %vm708, %v4668, %v4669
        %v4671 = vrot.slane %v4669, 4
        %v4672 = vrot.slane %v4615, 5
        %v4673 = vsel %vm708, %v4671, %v4672
        %v4674 = vrot.slane %v4672, 4
        %v4675 = vrot.slane %v4616, 5
        %v4676 = vsel %vm708, %v4674, %v4675
        %v4677 = vrot.slane %v4675, 4
        %v4678 = vrot.slane %v4617, 5
        %v4679 = vsel %vm708, %v4677, %v4678
        %v4680 = vrot.slane %v4678, 4
        %v4681 = vrot.slane %v4618, 5
        %v4682 = vsel %vm708, %v4680, %v4681
        %v4683 = vrot.slane %v4681, 4
        %v4684 = vrot.slane %v4619, 5
        %v4685 = vsel %vm708, %v4683, %v4684
        %4686 = vrot.lane.b32.xlu0 %v4640, 104
        %v4687 = vpop.permute.xlu0 %4686
        %4688 = vrot.lane.b32.xlu0 %v4643, 104
        %v4689 = vpop.permute.xlu0 %4688
        %4690 = vrot.lane.b32.xlu0 %v4646, 104
        %v4691 = vpop.permute.xlu0 %4690
        %4692 = vrot.lane.b32.xlu0 %v4649, 104
        %v4693 = vpop.permute.xlu0 %4692
        %4694 = vrot.lane.b32.xlu0 %v4652, 104
        %v4695 = vpop.permute.xlu0 %4694
        %4696 = vrot.lane.b32.xlu0 %v4655, 104
        %v4697 = vpop.permute.xlu0 %4696
        %4698 = vrot.lane.b32.xlu0 %v4658, 104
        %v4699 = vpop.permute.xlu0 %4698
        %4700 = vrot.lane.b32.xlu0 %v4661, 104
        %v4701 = vpop.permute.xlu0 %4700
        %4702 = vrot.lane.b32.xlu0 %v4664, 104
        %v4703 = vpop.permute.xlu0 %4702
        %4704 = vrot.lane.b32.xlu0 %v4667, 104
        %v4705 = vpop.permute.xlu0 %4704
        %4706 = vrot.lane.b32.xlu0 %v4670, 104
        %v4707 = vpop.permute.xlu0 %4706
        %4708 = vrot.lane.b32.xlu0 %v4673, 104
        %v4709 = vpop.permute.xlu0 %4708
        %4710 = vrot.lane.b32.xlu0 %v4676, 104
        %v4711 = vpop.permute.xlu0 %4710
        %4712 = vrot.lane.b32.xlu0 %v4679, 104
        %v4713 = vpop.permute.xlu0 %4712
        %4714 = vrot.lane.b32.xlu0 %v4682, 104
        %v4715 = vpop.permute.xlu0 %4714
        %4716 = vrot.lane.b32.xlu0 %v4685, 104
        %v4717 = vpop.permute.xlu0 %4716
        %vm4734 = vcmask 880448
        %4735 = vst.msk [vmem:[#allocation2] sm:$0xf] %vm4734, %v4687
        %4736 = vst.msk [vmem:[#allocation2 + $0x4] sm:$0xf] %vm4734, %v4689
        %4737 = vst.msk [vmem:[#allocation2 + $0x8] sm:$0xf] %vm4734, %v4691
        %4738 = vst.msk [vmem:[#allocation2 + $0xc] sm:$0xf] %vm4734, %v4693
        %4739 = vst.msk [vmem:[#allocation2 + $0x10] sm:$0xf] %vm4734, %v4695
        %4740 = vst.msk [vmem:[#allocation2 + $0x14] sm:$0xf] %vm4734, %v4697
        %4741 = vst.msk [vmem:[#allocation2 + $0x18] sm:$0xf] %vm4734, %v4699
        %4742 = vst.msk [vmem:[#allocation2 + $0x1c] sm:$0xf] %vm4734, %v4701
        %4743 = vst.msk [vmem:[#allocation2 + $0x20] sm:$0xf] %vm4734, %v4703
        %4744 = vst.msk [vmem:[#allocation2 + $0x24] sm:$0xf] %vm4734, %v4705
        %4745 = vst.msk [vmem:[#allocation2 + $0x28] sm:$0xf] %vm4734, %v4707
        %4746 = vst.msk [vmem:[#allocation2 + $0x2c] sm:$0xf] %vm4734, %v4709
        %4747 = vst.msk [vmem:[#allocation2 + $0x30] sm:$0xf] %vm4734, %v4711
        %4748 = vst.msk [vmem:[#allocation2 + $0x34] sm:$0xf] %vm4734, %v4713
        %4749 = vst.msk [vmem:[#allocation2 + $0x38] sm:$0xf] %vm4734, %v4715
        %4750 = vst.msk [vmem:[#allocation2 + $0x3c] sm:$0xf] %vm4734, %v4717
        %v4751 = vld [vmem:[%s359] sm:$0xf]
        %v4752 = vld [vmem:[%s359 + $0x4] sm:$0xf]
        %v4753 = vld [vmem:[%s359 + $0x8] sm:$0xf]
        %v4754 = vld [vmem:[%s359 + $0xc] sm:$0xf]
        %v4755 = vld [vmem:[%s359 + $0x10] sm:$0xf]
        %v4756 = vld [vmem:[%s359 + $0x14] sm:$0xf]
        %v4757 = vld [vmem:[%s359 + $0x18] sm:$0xf]
        %v4758 = vld [vmem:[%s359 + $0x1c] sm:$0xf]
        %v4759 = vld [vmem:[%s359 + $0x20] sm:$0xf]
        %v4760 = vld [vmem:[%s359 + $0x24] sm:$0xf]
        %v4761 = vld [vmem:[%s359 + $0x28] sm:$0xf]
        %v4762 = vld [vmem:[%s359 + $0x2c] sm:$0xf]
        %v4763 = vld [vmem:[%s359 + $0x30] sm:$0xf]
        %v4764 = vld [vmem:[%s359 + $0x34] sm:$0xf]
        %v4765 = vld [vmem:[%s359 + $0x38] sm:$0xf]
        %v4766 = vld [vmem:[%s359 + $0x3c] sm:$0xf]
        %4783 = vrot.lane.b32.xlu0 %v4751, 108
        %v4784 = vpop.permute.xlu0 %4783
        %4785 = vrot.lane.b32.xlu0 %v4752, 108
        %v4786 = vpop.permute.xlu0 %4785
        %4787 = vrot.lane.b32.xlu0 %v4753, 108
        %v4788 = vpop.permute.xlu0 %4787
        %4789 = vrot.lane.b32.xlu0 %v4754, 108
        %v4790 = vpop.permute.xlu0 %4789
        %4791 = vrot.lane.b32.xlu0 %v4755, 108
        %v4792 = vpop.permute.xlu0 %4791
        %4793 = vrot.lane.b32.xlu0 %v4756, 108
        %v4794 = vpop.permute.xlu0 %4793
        %4795 = vrot.lane.b32.xlu0 %v4757, 108
        %v4796 = vpop.permute.xlu0 %4795
        %4797 = vrot.lane.b32.xlu0 %v4758, 108
        %v4798 = vpop.permute.xlu0 %4797
        %4799 = vrot.lane.b32.xlu0 %v4759, 108
        %v4800 = vpop.permute.xlu0 %4799
        %4801 = vrot.lane.b32.xlu0 %v4760, 108
        %v4802 = vpop.permute.xlu0 %4801
        %4803 = vrot.lane.b32.xlu0 %v4761, 108
        %v4804 = vpop.permute.xlu0 %4803
        %4805 = vrot.lane.b32.xlu0 %v4762, 108
        %v4806 = vpop.permute.xlu0 %4805
        %4807 = vrot.lane.b32.xlu0 %v4763, 108
        %v4808 = vpop.permute.xlu0 %4807
        %4809 = vrot.lane.b32.xlu0 %v4764, 108
        %v4810 = vpop.permute.xlu0 %4809
        %4811 = vrot.lane.b32.xlu0 %v4765, 108
        %v4812 = vpop.permute.xlu0 %4811
        %4813 = vrot.lane.b32.xlu0 %v4766, 108
        %v4814 = vpop.permute.xlu0 %4813
        %vm4831 = vcmask 913248
        %4832 = vst.msk [vmem:[#allocation2] sm:$0xf] %vm4831, %v4784
        %4833 = vst.msk [vmem:[#allocation2 + $0x4] sm:$0xf] %vm4831, %v4786
        %4834 = vst.msk [vmem:[#allocation2 + $0x8] sm:$0xf] %vm4831, %v4788
        %4835 = vst.msk [vmem:[#allocation2 + $0xc] sm:$0xf] %vm4831, %v4790
        %4836 = vst.msk [vmem:[#allocation2 + $0x10] sm:$0xf] %vm4831, %v4792
        %4837 = vst.msk [vmem:[#allocation2 + $0x14] sm:$0xf] %vm4831, %v4794
        %4838 = vst.msk [vmem:[#allocation2 + $0x18] sm:$0xf] %vm4831, %v4796
        %4839 = vst.msk [vmem:[#allocation2 + $0x1c] sm:$0xf] %vm4831, %v4798
        %4840 = vst.msk [vmem:[#allocation2 + $0x20] sm:$0xf] %vm4831, %v4800
        %4841 = vst.msk [vmem:[#allocation2 + $0x24] sm:$0xf] %vm4831, %v4802
        %4842 = vst.msk [vmem:[#allocation2 + $0x28] sm:$0xf] %vm4831, %v4804
        %4843 = vst.msk [vmem:[#allocation2 + $0x2c] sm:$0xf] %vm4831, %v4806
        %4844 = vst.msk [vmem:[#allocation2 + $0x30] sm:$0xf] %vm4831, %v4808
        %4845 = vst.msk [vmem:[#allocation2 + $0x34] sm:$0xf] %vm4831, %v4810
        %4846 = vst.msk [vmem:[#allocation2 + $0x38] sm:$0xf] %vm4831, %v4812
        %4847 = vst.msk [vmem:[#allocation2 + $0x3c] sm:$0xf] %vm4831, %v4814
        %v4848 = vld [vmem:[%s359] sm:$0xf]
        %v4849 = vld [vmem:[%s359 + $0x4] sm:$0xf]
        %v4850 = vld [vmem:[%s359 + $0x8] sm:$0xf]
        %v4851 = vld [vmem:[%s359 + $0xc] sm:$0xf]
        %v4852 = vld [vmem:[%s359 + $0x10] sm:$0xf]
        %v4853 = vld [vmem:[%s359 + $0x14] sm:$0xf]
        %v4854 = vld [vmem:[%s359 + $0x18] sm:$0xf]
        %v4855 = vld [vmem:[%s359 + $0x1c] sm:$0xf]
        %v4856 = vld [vmem:[%s359 + $0x20] sm:$0xf]
        %v4857 = vld [vmem:[%s359 + $0x24] sm:$0xf]
        %v4858 = vld [vmem:[%s359 + $0x28] sm:$0xf]
        %v4859 = vld [vmem:[%s359 + $0x2c] sm:$0xf]
        %v4860 = vld [vmem:[%s359 + $0x30] sm:$0xf]
        %v4861 = vld [vmem:[%s359 + $0x34] sm:$0xf]
        %v4862 = vld [vmem:[%s359 + $0x38] sm:$0xf]
        %v4863 = vld [vmem:[%s359 + $0x3c] sm:$0xf]
        %4880 = vrot.lane.b32.xlu0 %v4848, 112
        %v4881 = vpop.permute.xlu0 %4880
        %4882 = vrot.lane.b32.xlu0 %v4849, 112
        %v4883 = vpop.permute.xlu0 %4882
        %4884 = vrot.lane.b32.xlu0 %v4850, 112
        %v4885 = vpop.permute.xlu0 %4884
        %4886 = vrot.lane.b32.xlu0 %v4851, 112
        %v4887 = vpop.permute.xlu0 %4886
        %4888 = vrot.lane.b32.xlu0 %v4852, 112
        %v4889 = vpop.permute.xlu0 %4888
        %4890 = vrot.lane.b32.xlu0 %v4853, 112
        %v4891 = vpop.permute.xlu0 %4890
        %4892 = vrot.lane.b32.xlu0 %v4854, 112
        %v4893 = vpop.permute.xlu0 %4892
        %4894 = vrot.lane.b32.xlu0 %v4855, 112
        %v4895 = vpop.permute.xlu0 %4894
        %4896 = vrot.lane.b32.xlu0 %v4856, 112
        %v4897 = vpop.permute.xlu0 %4896
        %4898 = vrot.lane.b32.xlu0 %v4857, 112
        %v4899 = vpop.permute.xlu0 %4898
        %4900 = vrot.lane.b32.xlu0 %v4858, 112
        %v4901 = vpop.permute.xlu0 %4900
        %4902 = vrot.lane.b32.xlu0 %v4859, 112
        %v4903 = vpop.permute.xlu0 %4902
        %4904 = vrot.lane.b32.xlu0 %v4860, 112
        %v4905 = vpop.permute.xlu0 %4904
        %4906 = vrot.lane.b32.xlu0 %v4861, 112
        %v4907 = vpop.permute.xlu0 %4906
        %4908 = vrot.lane.b32.xlu0 %v4862, 112
        %v4909 = vpop.permute.xlu0 %4908
        %4910 = vrot.lane.b32.xlu0 %v4863, 112
        %v4911 = vpop.permute.xlu0 %4910
        %vm4928 = vcmask 946048
        %4929 = vst.msk [vmem:[#allocation2] sm:$0xf] %vm4928, %v4881
        %4930 = vst.msk [vmem:[#allocation2 + $0x4] sm:$0xf] %vm4928, %v4883
        %4931 = vst.msk [vmem:[#allocation2 + $0x8] sm:$0xf] %vm4928, %v4885
        %4932 = vst.msk [vmem:[#allocation2 + $0xc] sm:$0xf] %vm4928, %v4887
        %4933 = vst.msk [vmem:[#allocation2 + $0x10] sm:$0xf] %vm4928, %v4889
        %4934 = vst.msk [vmem:[#allocation2 + $0x14] sm:$0xf] %vm4928, %v4891
        %4935 = vst.msk [vmem:[#allocation2 + $0x18] sm:$0xf] %vm4928, %v4893
        %4936 = vst.msk [vmem:[#allocation2 + $0x1c] sm:$0xf] %vm4928, %v4895
        %4937 = vst.msk [vmem:[#allocation2 + $0x20] sm:$0xf] %vm4928, %v4897
        %4938 = vst.msk [vmem:[#allocation2 + $0x24] sm:$0xf] %vm4928, %v4899
        %4939 = vst.msk [vmem:[#allocation2 + $0x28] sm:$0xf] %vm4928, %v4901
        %4940 = vst.msk [vmem:[#allocation2 + $0x2c] sm:$0xf] %vm4928, %v4903
        %4941 = vst.msk [vmem:[#allocation2 + $0x30] sm:$0xf] %vm4928, %v4905
        %4942 = vst.msk [vmem:[#allocation2 + $0x34] sm:$0xf] %vm4928, %v4907
        %4943 = vst.msk [vmem:[#allocation2 + $0x38] sm:$0xf] %vm4928, %v4909
        %4944 = vst.msk [vmem:[#allocation2 + $0x3c] sm:$0xf] %vm4928, %v4911
        %v4945 = vld [vmem:[%s359] sm:$0xf]
        %v4946 = vld [vmem:[%s359 + $0x4] sm:$0xf]
        %v4947 = vld [vmem:[%s359 + $0x8] sm:$0xf]
        %v4948 = vld [vmem:[%s359 + $0xc] sm:$0xf]
        %v4949 = vld [vmem:[%s359 + $0x10] sm:$0xf]
        %v4950 = vld [vmem:[%s359 + $0x14] sm:$0xf]
        %v4951 = vld [vmem:[%s359 + $0x18] sm:$0xf]
        %v4952 = vld [vmem:[%s359 + $0x1c] sm:$0xf]
        %v4953 = vld [vmem:[%s359 + $0x20] sm:$0xf]
        %v4954 = vld [vmem:[%s359 + $0x24] sm:$0xf]
        %v4955 = vld [vmem:[%s359 + $0x28] sm:$0xf]
        %v4956 = vld [vmem:[%s359 + $0x2c] sm:$0xf]
        %v4957 = vld [vmem:[%s359 + $0x30] sm:$0xf]
        %v4958 = vld [vmem:[%s359 + $0x34] sm:$0xf]
        %v4959 = vld [vmem:[%s359 + $0x38] sm:$0xf]
        %v4960 = vld [vmem:[%s359 + $0x3c] sm:$0xf]
        %4977 = vrot.lane.b32.xlu0 %v4945, 116
        %v4978 = vpop.permute.xlu0 %4977
        %4979 = vrot.lane.b32.xlu0 %v4946, 116
        %v4980 = vpop.permute.xlu0 %4979
        %4981 = vrot.lane.b32.xlu0 %v4947, 116
        %v4982 = vpop.permute.xlu0 %4981
        %4983 = vrot.lane.b32.xlu0 %v4948, 116
        %v4984 = vpop.permute.xlu0 %4983
        %4985 = vrot.lane.b32.xlu0 %v4949, 116
        %v4986 = vpop.permute.xlu0 %4985
        %4987 = vrot.lane.b32.xlu0 %v4950, 116
        %v4988 = vpop.permute.xlu0 %4987
        %4989 = vrot.lane.b32.xlu0 %v4951, 116
        %v4990 = vpop.permute.xlu0 %4989
        %4991 = vrot.lane.b32.xlu0 %v4952, 116
        %v4992 = vpop.permute.xlu0 %4991
        %4993 = vrot.lane.b32.xlu0 %v4953, 116
        %v4994 = vpop.permute.xlu0 %4993
        %4995 = vrot.lane.b32.xlu0 %v4954, 116
        %v4996 = vpop.permute.xlu0 %4995
        %4997 = vrot.lane.b32.xlu0 %v4955, 116
        %v4998 = vpop.permute.xlu0 %4997
        %4999 = vrot.lane.b32.xlu0 %v4956, 116
        %v5000 = vpop.permute.xlu0 %4999
        %5001 = vrot.lane.b32.xlu0 %v4957, 116
        %v5002 = vpop.permute.xlu0 %5001
        %5003 = vrot.lane.b32.xlu0 %v4958, 116
        %v5004 = vpop.permute.xlu0 %5003
        %5005 = vrot.lane.b32.xlu0 %v4959, 116
        %v5006 = vpop.permute.xlu0 %5005
        %5007 = vrot.lane.b32.xlu0 %v4960, 116
        %v5008 = vpop.permute.xlu0 %5007
        %vm5025 = vcmask 978848
        %5026 = vst.msk [vmem:[#allocation2] sm:$0xf] %vm5025, %v4978
        %5027 = vst.msk [vmem:[#allocation2 + $0x4] sm:$0xf] %vm5025, %v4980
        %5028 = vst.msk [vmem:[#allocation2 + $0x8] sm:$0xf] %vm5025, %v4982
        %5029 = vst.msk [vmem:[#allocation2 + $0xc] sm:$0xf] %vm5025, %v4984
        %5030 = vst.msk [vmem:[#allocation2 + $0x10] sm:$0xf] %vm5025, %v4986
        %5031 = vst.msk [vmem:[#allocation2 + $0x14] sm:$0xf] %vm5025, %v4988
        %5032 = vst.msk [vmem:[#allocation2 + $0x18] sm:$0xf] %vm5025, %v4990
        %5033 = vst.msk [vmem:[#allocation2 + $0x1c] sm:$0xf] %vm5025, %v4992
        %5034 = vst.msk [vmem:[#allocation2 + $0x20] sm:$0xf] %vm5025, %v4994
        %5035 = vst.msk [vmem:[#allocation2 + $0x24] sm:$0xf] %vm5025, %v4996
        %5036 = vst.msk [vmem:[#allocation2 + $0x28] sm:$0xf] %vm5025, %v4998
        %5037 = vst.msk [vmem:[#allocation2 + $0x2c] sm:$0xf] %vm5025, %v5000
        %5038 = vst.msk [vmem:[#allocation2 + $0x30] sm:$0xf] %vm5025, %v5002
        %5039 = vst.msk [vmem:[#allocation2 + $0x34] sm:$0xf] %vm5025, %v5004
        %5040 = vst.msk [vmem:[#allocation2 + $0x38] sm:$0xf] %vm5025, %v5006
        %5041 = vst.msk [vmem:[#allocation2 + $0x3c] sm:$0xf] %vm5025, %v5008
        %v5042 = vld [vmem:[%s359] sm:$0xf]
        %v5043 = vld [vmem:[%s359 + $0x4] sm:$0xf]
        %v5044 = vld [vmem:[%s359 + $0x8] sm:$0xf]
        %v5045 = vld [vmem:[%s359 + $0xc] sm:$0xf]
        %v5046 = vld [vmem:[%s359 + $0x10] sm:$0xf]
        %v5047 = vld [vmem:[%s359 + $0x14] sm:$0xf]
        %v5048 = vld [vmem:[%s359 + $0x18] sm:$0xf]
        %v5049 = vld [vmem:[%s359 + $0x1c] sm:$0xf]
        %v5050 = vld [vmem:[%s359 + $0x20] sm:$0xf]
        %v5051 = vld [vmem:[%s359 + $0x24] sm:$0xf]
        %v5052 = vld [vmem:[%s359 + $0x28] sm:$0xf]
        %v5053 = vld [vmem:[%s359 + $0x2c] sm:$0xf]
        %v5054 = vld [vmem:[%s359 + $0x30] sm:$0xf]
        %v5055 = vld [vmem:[%s359 + $0x34] sm:$0xf]
        %v5056 = vld [vmem:[%s359 + $0x38] sm:$0xf]
        %v5057 = vld [vmem:[%s359 + $0x3c] sm:$0xf]
        %5074 = vrot.lane.b32.xlu0 %v5042, 120
        %v5075 = vpop.permute.xlu0 %5074
        %5076 = vrot.lane.b32.xlu0 %v5043, 120
        %v5077 = vpop.permute.xlu0 %5076
        %5078 = vrot.lane.b32.xlu0 %v5044, 120
        %v5079 = vpop.permute.xlu0 %5078
        %5080 = vrot.lane.b32.xlu0 %v5045, 120
        %v5081 = vpop.permute.xlu0 %5080
        %5082 = vrot.lane.b32.xlu0 %v5046, 120
        %v5083 = vpop.permute.xlu0 %5082
        %5084 = vrot.lane.b32.xlu0 %v5047, 120
        %v5085 = vpop.permute.xlu0 %5084
        %5086 = vrot.lane.b32.xlu0 %v5048, 120
        %v5087 = vpop.permute.xlu0 %5086
        %5088 = vrot.lane.b32.xlu0 %v5049, 120
        %v5089 = vpop.permute.xlu0 %5088
        %5090 = vrot.lane.b32.xlu0 %v5050, 120
        %v5091 = vpop.permute.xlu0 %5090
        %5092 = vrot.lane.b32.xlu0 %v5051, 120
        %v5093 = vpop.permute.xlu0 %5092
        %5094 = vrot.lane.b32.xlu0 %v5052, 120
        %v5095 = vpop.permute.xlu0 %5094
        %5096 = vrot.lane.b32.xlu0 %v5053, 120
        %v5097 = vpop.permute.xlu0 %5096
        %5098 = vrot.lane.b32.xlu0 %v5054, 120
        %v5099 = vpop.permute.xlu0 %5098
        %5100 = vrot.lane.b32.xlu0 %v5055, 120
        %v5101 = vpop.permute.xlu0 %5100
        %5102 = vrot.lane.b32.xlu0 %v5056, 120
        %v5103 = vpop.permute.xlu0 %5102
        %5104 = vrot.lane.b32.xlu0 %v5057, 120
        %v5105 = vpop.permute.xlu0 %5104
        %vm5122 = vcmask 1011648
        %5123 = vst.msk [vmem:[#allocation2] sm:$0xf] %vm5122, %v5075
        %5124 = vst.msk [vmem:[#allocation2 + $0x4] sm:$0xf] %vm5122, %v5077
        %5125 = vst.msk [vmem:[#allocation2 + $0x8] sm:$0xf] %vm5122, %v5079
        %5126 = vst.msk [vmem:[#allocation2 + $0xc] sm:$0xf] %vm5122, %v5081
        %5127 = vst.msk [vmem:[#allocation2 + $0x10] sm:$0xf] %vm5122, %v5083
        %5128 = vst.msk [vmem:[#allocation2 + $0x14] sm:$0xf] %vm5122, %v5085
        %5129 = vst.msk [vmem:[#allocation2 + $0x18] sm:$0xf] %vm5122, %v5087
        %5130 = vst.msk [vmem:[#allocation2 + $0x1c] sm:$0xf] %vm5122, %v5089
        %5131 = vst.msk [vmem:[#allocation2 + $0x20] sm:$0xf] %vm5122, %v5091
        %5132 = vst.msk [vmem:[#allocation2 + $0x24] sm:$0xf] %vm5122, %v5093
        %5133 = vst.msk [vmem:[#allocation2 + $0x28] sm:$0xf] %vm5122, %v5095
        %5134 = vst.msk [vmem:[#allocation2 + $0x2c] sm:$0xf] %vm5122, %v5097
        %5135 = vst.msk [vmem:[#allocation2 + $0x30] sm:$0xf] %vm5122, %v5099
        %5136 = vst.msk [vmem:[#allocation2 + $0x34] sm:$0xf] %vm5122, %v5101
        %5137 = vst.msk [vmem:[#allocation2 + $0x38] sm:$0xf] %vm5122, %v5103
        %5138 = vst.msk [vmem:[#allocation2 + $0x3c] sm:$0xf] %vm5122, %v5105
        %v5139 = vld [vmem:[%s359] sm:$0xf]
        %v5140 = vld [vmem:[%s359 + $0x4] sm:$0xf]
        %v5141 = vld [vmem:[%s359 + $0x8] sm:$0xf]
        %v5142 = vld [vmem:[%s359 + $0xc] sm:$0xf]
        %v5143 = vld [vmem:[%s359 + $0x10] sm:$0xf]
        %v5144 = vld [vmem:[%s359 + $0x14] sm:$0xf]
        %v5145 = vld [vmem:[%s359 + $0x18] sm:$0xf]
        %v5146 = vld [vmem:[%s359 + $0x1c] sm:$0xf]
        %v5147 = vld [vmem:[%s359 + $0x20] sm:$0xf]
        %v5148 = vld [vmem:[%s359 + $0x24] sm:$0xf]
        %v5149 = vld [vmem:[%s359 + $0x28] sm:$0xf]
        %v5150 = vld [vmem:[%s359 + $0x2c] sm:$0xf]
        %v5151 = vld [vmem:[%s359 + $0x30] sm:$0xf]
        %v5152 = vld [vmem:[%s359 + $0x34] sm:$0xf]
        %v5153 = vld [vmem:[%s359 + $0x38] sm:$0xf]
        %v5154 = vld [vmem:[%s359 + $0x3c] sm:$0xf]
        %5171 = vrot.lane.b32.xlu0 %v5139, 124
        %v5172 = vpop.permute.xlu0 %5171
        %5173 = vrot.lane.b32.xlu0 %v5140, 124
        %v5174 = vpop.permute.xlu0 %5173
        %5175 = vrot.lane.b32.xlu0 %v5141, 124
        %v5176 = vpop.permute.xlu0 %5175
        %5177 = vrot.lane.b32.xlu0 %v5142, 124
        %v5178 = vpop.permute.xlu0 %5177
        %5179 = vrot.lane.b32.xlu0 %v5143, 124
        %v5180 = vpop.permute.xlu0 %5179
        %5181 = vrot.lane.b32.xlu0 %v5144, 124
        %v5182 = vpop.permute.xlu0 %5181
        %5183 = vrot.lane.b32.xlu0 %v5145, 124
        %v5184 = vpop.permute.xlu0 %5183
        %5185 = vrot.lane.b32.xlu0 %v5146, 124
        %v5186 = vpop.permute.xlu0 %5185
        %5187 = vrot.lane.b32.xlu0 %v5147, 124
        %v5188 = vpop.permute.xlu0 %5187
        %5189 = vrot.lane.b32.xlu0 %v5148, 124
        %v5190 = vpop.permute.xlu0 %5189
        %5191 = vrot.lane.b32.xlu0 %v5149, 124
        %v5192 = vpop.permute.xlu0 %5191
        %5193 = vrot.lane.b32.xlu0 %v5150, 124
        %v5194 = vpop.permute.xlu0 %5193
        %5195 = vrot.lane.b32.xlu0 %v5151, 124
        %v5196 = vpop.permute.xlu0 %5195
        %5197 = vrot.lane.b32.xlu0 %v5152, 124
        %v5198 = vpop.permute.xlu0 %5197
        %5199 = vrot.lane.b32.xlu0 %v5153, 124
        %v5200 = vpop.permute.xlu0 %5199
        %5201 = vrot.lane.b32.xlu0 %v5154, 124
        %v5202 = vpop.permute.xlu0 %5201
        %vm5219 = vcmask 1044448
        %5220 = vst.msk [vmem:[#allocation2] sm:$0xf] %vm5219, %v5172
        %5221 = vst.msk [vmem:[#allocation2 + $0x4] sm:$0xf] %vm5219, %v5174
        %5222 = vst.msk [vmem:[#allocation2 + $0x8] sm:$0xf] %vm5219, %v5176
        %5223 = vst.msk [vmem:[#allocation2 + $0xc] sm:$0xf] %vm5219, %v5178
        %5224 = vst.msk [vmem:[#allocation2 + $0x10] sm:$0xf] %vm5219, %v5180
        %5225 = vst.msk [vmem:[#allocation2 + $0x14] sm:$0xf] %vm5219, %v5182
        %5226 = vst.msk [vmem:[#allocation2 + $0x18] sm:$0xf] %vm5219, %v5184
        %5227 = vst.msk [vmem:[#allocation2 + $0x1c] sm:$0xf] %vm5219, %v5186
        %5228 = vst.msk [vmem:[#allocation2 + $0x20] sm:$0xf] %vm5219, %v5188
        %5229 = vst.msk [vmem:[#allocation2 + $0x24] sm:$0xf] %vm5219, %v5190
        %5230 = vst.msk [vmem:[#allocation2 + $0x28] sm:$0xf] %vm5219, %v5192
        %5231 = vst.msk [vmem:[#allocation2 + $0x2c] sm:$0xf] %vm5219, %v5194
        %5232 = vst.msk [vmem:[#allocation2 + $0x30] sm:$0xf] %vm5219, %v5196
        %5233 = vst.msk [vmem:[#allocation2 + $0x34] sm:$0xf] %vm5219, %v5198
        %5234 = vst.msk [vmem:[#allocation2 + $0x38] sm:$0xf] %vm5219, %v5200
        %5235 = vst.msk [vmem:[#allocation2 + $0x3c] sm:$0xf] %vm5219, %v5202
        %v5236 = vld [vmem:[#allocation2] sm:$0xf]
        %v5237 = vld [vmem:[#allocation2 + $0x4] sm:$0xf]
        %v5238 = vld [vmem:[#allocation2 + $0x8] sm:$0xf]
        %v5239 = vld [vmem:[#allocation2 + $0xc] sm:$0xf]
        %v5240 = vld [vmem:[#allocation2 + $0x10] sm:$0xf]
        %v5241 = vld [vmem:[#allocation2 + $0x14] sm:$0xf]
        %v5242 = vld [vmem:[#allocation2 + $0x18] sm:$0xf]
        %v5243 = vld [vmem:[#allocation2 + $0x1c] sm:$0xf]
        %v5244 = vld [vmem:[#allocation2 + $0x20] sm:$0xf]
        %v5245 = vld [vmem:[#allocation2 + $0x24] sm:$0xf]
        %v5246 = vld [vmem:[#allocation2 + $0x28] sm:$0xf]
        %v5247 = vld [vmem:[#allocation2 + $0x2c] sm:$0xf]
        %v5248 = vld [vmem:[#allocation2 + $0x30] sm:$0xf]
        %v5249 = vld [vmem:[#allocation2 + $0x34] sm:$0xf]
        %v5250 = vld [vmem:[#allocation2 + $0x38] sm:$0xf]
        %v5251 = vld [vmem:[#allocation2 + $0x3c] sm:$0xf]
        %v5252 = vld [vmem:[%s3] sm:$0xf]
        %v5253 = vld [vmem:[%s3 + $0x4] sm:$0xf]
        %v5254 = vld [vmem:[%s3 + $0x8] sm:$0xf]
        %v5255 = vld [vmem:[%s3 + $0xc] sm:$0xf]
        %v5256 = vld [vmem:[%s3 + $0x10] sm:$0xf]
        %v5257 = vld [vmem:[%s3 + $0x14] sm:$0xf]
        %v5258 = vld [vmem:[%s3 + $0x18] sm:$0xf]
        %v5259 = vld [vmem:[%s3 + $0x1c] sm:$0xf]
        %v5260 = vld [vmem:[%s3 + $0x20] sm:$0xf]
        %v5261 = vld [vmem:[%s3 + $0x24] sm:$0xf]
        %v5262 = vld [vmem:[%s3 + $0x28] sm:$0xf]
        %v5263 = vld [vmem:[%s3 + $0x2c] sm:$0xf]
        %v5264 = vld [vmem:[%s3 + $0x30] sm:$0xf]
        %v5265 = vld [vmem:[%s3 + $0x34] sm:$0xf]
        %v5266 = vld [vmem:[%s3 + $0x38] sm:$0xf]
        %v5267 = vld [vmem:[%s3 + $0x3c] sm:$0xf]
        %v5284 = vunpack.c.l.b16 %v5236
        %v5285 = vunpack.c.l.b16 %v5237
        %v5286 = vunpack.c.l.b16 %v5238
        %v5287 = vunpack.c.l.b16 %v5239
        %v5288 = vunpack.c.l.b16 %v5240
        %v5289 = vunpack.c.l.b16 %v5241
        %v5290 = vunpack.c.l.b16 %v5242
        %v5291 = vunpack.c.l.b16 %v5243
        %v5292 = vunpack.c.l.b16 %v5244
        %v5293 = vunpack.c.l.b16 %v5245
        %v5294 = vunpack.c.l.b16 %v5246
        %v5295 = vunpack.c.l.b16 %v5247
        %v5296 = vunpack.c.l.b16 %v5248
        %v5297 = vunpack.c.l.b16 %v5249
        %v5298 = vunpack.c.l.b16 %v5250
        %v5299 = vunpack.c.l.b16 %v5251
        %v5300 = vpack.c.b16 %v5285, %v5284
        %v5301 = vpack.c.b16 %v5287, %v5286
        %v5302 = vpack.c.b16 %v5289, %v5288
        %v5303 = vpack.c.b16 %v5291, %v5290
        %v5304 = vpack.c.b16 %v5293, %v5292
        %v5305 = vpack.c.b16 %v5295, %v5294
        %v5306 = vpack.c.b16 %v5297, %v5296
        %v5307 = vpack.c.b16 %v5299, %v5298
        %v5332 = vunpack.c.l.b16 %v5252
        %v5333 = vunpack.c.l.b16 %v5253
        %v5334 = vunpack.c.l.b16 %v5254
        %v5335 = vunpack.c.l.b16 %v5255
        %v5336 = vunpack.c.l.b16 %v5256
        %v5337 = vunpack.c.l.b16 %v5257
        %v5338 = vunpack.c.l.b16 %v5258
        %v5339 = vunpack.c.l.b16 %v5259
        %v5340 = vunpack.c.l.b16 %v5260
        %v5341 = vunpack.c.l.b16 %v5261
        %v5342 = vunpack.c.l.b16 %v5262
        %v5343 = vunpack.c.l.b16 %v5263
        %v5344 = vunpack.c.l.b16 %v5264
        %v5345 = vunpack.c.l.b16 %v5265
        %v5346 = vunpack.c.l.b16 %v5266
        %v5347 = vunpack.c.l.b16 %v5267
        %v5348 = vpack.c.b16 %v5333, %v5332
        %v5349 = vpack.c.b16 %v5335, %v5334
        %v5350 = vpack.c.b16 %v5337, %v5336
        %v5351 = vpack.c.b16 %v5339, %v5338
        %v5352 = vpack.c.b16 %v5341, %v5340
        %v5353 = vpack.c.b16 %v5343, %v5342
        %v5354 = vpack.c.b16 %v5345, %v5344
        %v5355 = vpack.c.b16 %v5347, %v5346
        %5364 = vmatpush.bf16.msra.mxu0 %v5355
        %5365 = vmatpush.bf16.msra.mxu0 %v5354
        %5366 = vmatpush.bf16.msra.mxu0 %v5353
        %5367 = vmatpush.bf16.msra.mxu0 %v5352
        %5368 = vmatpush.bf16.msra.mxu0 %v5351
        %5369 = vmatpush.bf16.msra.mxu0 %v5350
        %5370 = vmatpush.bf16.msra.mxu0 %v5349
        %5371 = vmatpush.bf16.msra.mxu0 %v5348
        %5372 = vmatmul.bf16.gmra.mxu0 %v5300
        %v5373 = vpop.f32.mrf.mxu0
        %v5374 = vadd.f32 0.0, %v5373
        %v5375 = vpop.f32.mrf.mxu0
        %v5376 = vadd.f32 0.0, %v5375
        %5377 = vmatmul.bf16.gmra.mxu0 %v5301
        %v5378 = vpop.f32.mrf.mxu0
        %v5379 = vadd.f32 0.0, %v5378
        %v5380 = vpop.f32.mrf.mxu0
        %v5381 = vadd.f32 0.0, %v5380
        %5382 = vmatmul.bf16.gmra.mxu0 %v5302
        %v5383 = vpop.f32.mrf.mxu0
        %v5384 = vadd.f32 0.0, %v5383
        %v5385 = vpop.f32.mrf.mxu0
        %v5386 = vadd.f32 0.0, %v5385
        %5387 = vmatmul.bf16.gmra.mxu0 %v5303
        %v5388 = vpop.f32.mrf.mxu0
        %v5389 = vadd.f32 0.0, %v5388
        %v5390 = vpop.f32.mrf.mxu0
        %v5391 = vadd.f32 0.0, %v5390
        %5392 = vmatmul.bf16.gmra.mxu0 %v5304
        %v5393 = vpop.f32.mrf.mxu0
        %v5394 = vadd.f32 0.0, %v5393
        %v5395 = vpop.f32.mrf.mxu0
        %v5396 = vadd.f32 0.0, %v5395
        %5397 = vmatmul.bf16.gmra.mxu0 %v5305
        %v5398 = vpop.f32.mrf.mxu0
        %v5399 = vadd.f32 0.0, %v5398
        %v5400 = vpop.f32.mrf.mxu0
        %v5401 = vadd.f32 0.0, %v5400
        %5402 = vmatmul.bf16.gmra.mxu0 %v5306
        %v5403 = vpop.f32.mrf.mxu0
        %v5404 = vadd.f32 0.0, %v5403
        %v5405 = vpop.f32.mrf.mxu0
        %v5406 = vadd.f32 0.0, %v5405
        %5407 = vmatmul.bf16.gmra.mxu0 %v5307
        %v5408 = vpop.f32.mrf.mxu0
        %v5409 = vadd.f32 0.0, %v5408
        %v5410 = vpop.f32.mrf.mxu0
        %v5411 = vadd.f32 0.0, %v5410
        %5412 = vdwg.mxu0
        %v5414 = vperm.slane %v388, 0
        %v5416 = vmul.f32 %v5374, %v5414
        %v5417 = vmul.f32 %v5376, %v5414
        %v5418 = vmul.f32 %v5379, %v5414
        %v5419 = vmul.f32 %v5381, %v5414
        %v5420 = vmul.f32 %v5384, %v5414
        %v5421 = vmul.f32 %v5386, %v5414
        %v5422 = vmul.f32 %v5389, %v5414
        %v5423 = vmul.f32 %v5391, %v5414
        %v5424 = vmul.f32 %v5394, %v5414
        %v5425 = vmul.f32 %v5396, %v5414
        %v5426 = vmul.f32 %v5399, %v5414
        %v5427 = vmul.f32 %v5401, %v5414
        %v5428 = vmul.f32 %v5404, %v5414
        %v5429 = vmul.f32 %v5406, %v5414
        %v5430 = vmul.f32 %v5409, %v5414
        %v5431 = vmul.f32 %v5411, %v5414
        %v5433 = vperm.slane %v389, 0
        %v5435 = vadd.f32 %v5416, %v5433
        %v5436 = vadd.f32 %v5417, %v5433
        %v5437 = vadd.f32 %v5418, %v5433
        %v5438 = vadd.f32 %v5419, %v5433
        %v5439 = vadd.f32 %v5420, %v5433
        %v5440 = vadd.f32 %v5421, %v5433
        %v5441 = vadd.f32 %v5422, %v5433
        %v5442 = vadd.f32 %v5423, %v5433
        %v5443 = vadd.f32 %v5424, %v5433
        %v5444 = vadd.f32 %v5425, %v5433
        %v5445 = vadd.f32 %v5426, %v5433
        %v5446 = vadd.f32 %v5427, %v5433
        %v5447 = vadd.f32 %v5428, %v5433
        %v5448 = vadd.f32 %v5429, %v5433
        %v5449 = vadd.f32 %v5430, %v5433
        %v5450 = vadd.f32 %v5431, %v5433
        %v5451 = vxor.u32 %v5435, 2147483648
        %v5452 = vxor.u32 %v5436, 2147483648
        %v5453 = vxor.u32 %v5437, 2147483648
        %v5454 = vxor.u32 %v5438, 2147483648
        %v5455 = vxor.u32 %v5439, 2147483648
        %v5456 = vxor.u32 %v5440, 2147483648
        %v5457 = vxor.u32 %v5441, 2147483648
        %v5458 = vxor.u32 %v5442, 2147483648
        %v5459 = vxor.u32 %v5443, 2147483648
        %v5460 = vxor.u32 %v5444, 2147483648
        %v5461 = vxor.u32 %v5445, 2147483648
        %v5462 = vxor.u32 %v5446, 2147483648
        %v5463 = vxor.u32 %v5447, 2147483648
        %v5464 = vxor.u32 %v5448, 2147483648
        %v5465 = vxor.u32 %v5449, 2147483648
        %v5466 = vxor.u32 %v5450, 2147483648
        %v5467 = vmul.f32 %v5451, 1.442695
        %v5468 = vpow.pop %v5467
        %v5469 = vmul.f32 %v5452, 1.442695
        %v5470 = vpow.pop %v5469
        %v5471 = vmul.f32 %v5453, 1.442695
        %v5472 = vpow.pop %v5471
        %v5473 = vmul.f32 %v5454, 1.442695
        %v5474 = vpow.pop %v5473
        %v5475 = vmul.f32 %v5455, 1.442695
        %v5476 = vpow.pop %v5475
        %v5477 = vmul.f32 %v5456, 1.442695
        %v5478 = vpow.pop %v5477
        %v5479 = vmul.f32 %v5457, 1.442695
        %v5480 = vpow.pop %v5479
        %v5481 = vmul.f32 %v5458, 1.442695
        %v5482 = vpow.pop %v5481
        %v5483 = vmul.f32 %v5459, 1.442695
        %v5484 = vpow.pop %v5483
        %v5485 = vmul.f32 %v5460, 1.442695
        %v5486 = vpow.pop %v5485
        %v5487 = vmul.f32 %v5461, 1.442695
        %v5488 = vpow.pop %v5487
        %v5489 = vmul.f32 %v5462, 1.442695
        %v5490 = vpow.pop %v5489
        %v5491 = vmul.f32 %v5463, 1.442695
        %v5492 = vpow.pop %v5491
        %v5493 = vmul.f32 %v5464, 1.442695
        %v5494 = vpow.pop %v5493
        %v5495 = vmul.f32 %v5465, 1.442695
        %v5496 = vpow.pop %v5495
        %v5497 = vmul.f32 %v5466, 1.442695
        %v5498 = vpow.pop %v5497
        %v5499 = vadd.f32 %v5468, 1.0
        %v5500 = vadd.f32 %v5470, 1.0
        %v5501 = vadd.f32 %v5472, 1.0
        %v5502 = vadd.f32 %v5474, 1.0
        %v5503 = vadd.f32 %v5476, 1.0
        %v5504 = vadd.f32 %v5478, 1.0
        %v5505 = vadd.f32 %v5480, 1.0
        %v5506 = vadd.f32 %v5482, 1.0
        %v5507 = vadd.f32 %v5484, 1.0
        %v5508 = vadd.f32 %v5486, 1.0
        %v5509 = vadd.f32 %v5488, 1.0
        %v5510 = vadd.f32 %v5490, 1.0
        %v5511 = vadd.f32 %v5492, 1.0
        %v5512 = vadd.f32 %v5494, 1.0
        %v5513 = vadd.f32 %v5496, 1.0
        %v5514 = vadd.f32 %v5498, 1.0
        %v5515 = vrcp.pop %v5499
        %v5516 = vmul.f32 %v5499, %v5515
        %v5517 = vsub.f32 1.0, %v5516
        %v5518 = vmul.f32 %v5515, %v5517
        %v5519 = vadd.f32 %v5515, %v5518
        %vm5520 = vweird.f32 %v5499
        %vm5521 = vweird.f32 %v5515
        %vm5522 = vmor %vm5520, %vm5521
        %v5523 = vsel %vm5522, %v5515, %v5519
        %v5524 = vand.u32 2147483647, %v5499
        %vm5525 = vcmp.eq.f32.partialorder %v5524, 8.507059e+37
        %v5526 = vand.u32 %v5499, 2147483648
        %v5527 = vor.u32 1.1754944e-38, %v5526
        %v5528 = vsel %vm5525, %v5527, %v5523
        %v5529 = vmul.f32 1.0, %v5528
        %v5530 = vrcp.pop %v5500
        %v5531 = vmul.f32 %v5500, %v5530
        %v5532 = vsub.f32 1.0, %v5531
        %v5533 = vmul.f32 %v5530, %v5532
        %v5534 = vadd.f32 %v5530, %v5533
        %vm5535 = vweird.f32 %v5500
        %vm5536 = vweird.f32 %v5530
        %vm5537 = vmor %vm5535, %vm5536
        %v5538 = vsel %vm5537, %v5530, %v5534
        %v5539 = vand.u32 2147483647, %v5500
        %vm5540 = vcmp.eq.f32.partialorder %v5539, 8.507059e+37
        %v5541 = vand.u32 %v5500, 2147483648
        %v5542 = vor.u32 1.1754944e-38, %v5541
        %v5543 = vsel %vm5540, %v5542, %v5538
        %v5544 = vmul.f32 1.0, %v5543
        %v5545 = vrcp.pop %v5501
        %v5546 = vmul.f32 %v5501, %v5545
        %v5547 = vsub.f32 1.0, %v5546
        %v5548 = vmul.f32 %v5545, %v5547
        %v5549 = vadd.f32 %v5545, %v5548
        %vm5550 = vweird.f32 %v5501
        %vm5551 = vweird.f32 %v5545
        %vm5552 = vmor %vm5550, %vm5551
        %v5553 = vsel %vm5552, %v5545, %v5549
        %v5554 = vand.u32 2147483647, %v5501
        %vm5555 = vcmp.eq.f32.partialorder %v5554, 8.507059e+37
        %v5556 = vand.u32 %v5501, 2147483648
        %v5557 = vor.u32 1.1754944e-38, %v5556
        %v5558 = vsel %vm5555, %v5557, %v5553
        %v5559 = vmul.f32 1.0, %v5558
        %v5560 = vrcp.pop %v5502
        %v5561 = vmul.f32 %v5502, %v5560
        %v5562 = vsub.f32 1.0, %v5561
        %v5563 = vmul.f32 %v5560, %v5562
        %v5564 = vadd.f32 %v5560, %v5563
        %vm5565 = vweird.f32 %v5502
        %vm5566 = vweird.f32 %v5560
        %vm5567 = vmor %vm5565, %vm5566
        %v5568 = vsel %vm5567, %v5560, %v5564
        %v5569 = vand.u32 2147483647, %v5502
        %vm5570 = vcmp.eq.f32.partialorder %v5569, 8.507059e+37
        %v5571 = vand.u32 %v5502, 2147483648
        %v5572 = vor.u32 1.1754944e-38, %v5571
        %v5573 = vsel %vm5570, %v5572, %v5568
        %v5574 = vmul.f32 1.0, %v5573
        %v5575 = vrcp.pop %v5503
        %v5576 = vmul.f32 %v5503, %v5575
        %v5577 = vsub.f32 1.0, %v5576
        %v5578 = vmul.f32 %v5575, %v5577
        %v5579 = vadd.f32 %v5575, %v5578
        %vm5580 = vweird.f32 %v5503
        %vm5581 = vweird.f32 %v5575
        %vm5582 = vmor %vm5580, %vm5581
        %v5583 = vsel %vm5582, %v5575, %v5579
        %v5584 = vand.u32 2147483647, %v5503
        %vm5585 = vcmp.eq.f32.partialorder %v5584, 8.507059e+37
        %v5586 = vand.u32 %v5503, 2147483648
        %v5587 = vor.u32 1.1754944e-38, %v5586
        %v5588 = vsel %vm5585, %v5587, %v5583
        %v5589 = vmul.f32 1.0, %v5588
        %v5590 = vrcp.pop %v5504
        %v5591 = vmul.f32 %v5504, %v5590
        %v5592 = vsub.f32 1.0, %v5591
        %v5593 = vmul.f32 %v5590, %v5592
        %v5594 = vadd.f32 %v5590, %v5593
        %vm5595 = vweird.f32 %v5504
        %vm5596 = vweird.f32 %v5590
        %vm5597 = vmor %vm5595, %vm5596
        %v5598 = vsel %vm5597, %v5590, %v5594
        %v5599 = vand.u32 2147483647, %v5504
        %vm5600 = vcmp.eq.f32.partialorder %v5599, 8.507059e+37
        %v5601 = vand.u32 %v5504, 2147483648
        %v5602 = vor.u32 1.1754944e-38, %v5601
        %v5603 = vsel %vm5600, %v5602, %v5598
        %v5604 = vmul.f32 1.0, %v5603
        %v5605 = vrcp.pop %v5505
        %v5606 = vmul.f32 %v5505, %v5605
        %v5607 = vsub.f32 1.0, %v5606
        %v5608 = vmul.f32 %v5605, %v5607
        %v5609 = vadd.f32 %v5605, %v5608
        %vm5610 = vweird.f32 %v5505
        %vm5611 = vweird.f32 %v5605
        %vm5612 = vmor %vm5610, %vm5611
        %v5613 = vsel %vm5612, %v5605, %v5609
        %v5614 = vand.u32 2147483647, %v5505
        %vm5615 = vcmp.eq.f32.partialorder %v5614, 8.507059e+37
        %v5616 = vand.u32 %v5505, 2147483648
        %v5617 = vor.u32 1.1754944e-38, %v5616
        %v5618 = vsel %vm5615, %v5617, %v5613
        %v5619 = vmul.f32 1.0, %v5618
        %v5620 = vrcp.pop %v5506
        %v5621 = vmul.f32 %v5506, %v5620
        %v5622 = vsub.f32 1.0, %v5621
        %v5623 = vmul.f32 %v5620, %v5622
        %v5624 = vadd.f32 %v5620, %v5623
        %vm5625 = vweird.f32 %v5506
        %vm5626 = vweird.f32 %v5620
        %vm5627 = vmor %vm5625, %vm5626
        %v5628 = vsel %vm5627, %v5620, %v5624
        %v5629 = vand.u32 2147483647, %v5506
        %vm5630 = vcmp.eq.f32.partialorder %v5629, 8.507059e+37
        %v5631 = vand.u32 %v5506, 2147483648
        %v5632 = vor.u32 1.1754944e-38, %v5631
        %v5633 = vsel %vm5630, %v5632, %v5628
        %v5634 = vmul.f32 1.0, %v5633
        %v5635 = vrcp.pop %v5507
        %v5636 = vmul.f32 %v5507, %v5635
        %v5637 = vsub.f32 1.0, %v5636
        %v5638 = vmul.f32 %v5635, %v5637
        %v5639 = vadd.f32 %v5635, %v5638
        %vm5640 = vweird.f32 %v5507
        %vm5641 = vweird.f32 %v5635
        %vm5642 = vmor %vm5640, %vm5641
        %v5643 = vsel %vm5642, %v5635, %v5639
        %v5644 = vand.u32 2147483647, %v5507
        %vm5645 = vcmp.eq.f32.partialorder %v5644, 8.507059e+37
        %v5646 = vand.u32 %v5507, 2147483648
        %v5647 = vor.u32 1.1754944e-38, %v5646
        %v5648 = vsel %vm5645, %v5647, %v5643
        %v5649 = vmul.f32 1.0, %v5648
        %v5650 = vrcp.pop %v5508
        %v5651 = vmul.f32 %v5508, %v5650
        %v5652 = vsub.f32 1.0, %v5651
        %v5653 = vmul.f32 %v5650, %v5652
        %v5654 = vadd.f32 %v5650, %v5653
        %vm5655 = vweird.f32 %v5508
        %vm5656 = vweird.f32 %v5650
        %vm5657 = vmor %vm5655, %vm5656
        %v5658 = vsel %vm5657, %v5650, %v5654
        %v5659 = vand.u32 2147483647, %v5508
        %vm5660 = vcmp.eq.f32.partialorder %v5659, 8.507059e+37
        %v5661 = vand.u32 %v5508, 2147483648
        %v5662 = vor.u32 1.1754944e-38, %v5661
        %v5663 = vsel %vm5660, %v5662, %v5658
        %v5664 = vmul.f32 1.0, %v5663
        %v5665 = vrcp.pop %v5509
        %v5666 = vmul.f32 %v5509, %v5665
        %v5667 = vsub.f32 1.0, %v5666
        %v5668 = vmul.f32 %v5665, %v5667
        %v5669 = vadd.f32 %v5665, %v5668
        %vm5670 = vweird.f32 %v5509
        %vm5671 = vweird.f32 %v5665
        %vm5672 = vmor %vm5670, %vm5671
        %v5673 = vsel %vm5672, %v5665, %v5669
        %v5674 = vand.u32 2147483647, %v5509
        %vm5675 = vcmp.eq.f32.partialorder %v5674, 8.507059e+37
        %v5676 = vand.u32 %v5509, 2147483648
        %v5677 = vor.u32 1.1754944e-38, %v5676
        %v5678 = vsel %vm5675, %v5677, %v5673
        %v5679 = vmul.f32 1.0, %v5678
        %v5680 = vrcp.pop %v5510
        %v5681 = vmul.f32 %v5510, %v5680
        %v5682 = vsub.f32 1.0, %v5681
        %v5683 = vmul.f32 %v5680, %v5682
        %v5684 = vadd.f32 %v5680, %v5683
        %vm5685 = vweird.f32 %v5510
        %vm5686 = vweird.f32 %v5680
        %vm5687 = vmor %vm5685, %vm5686
        %v5688 = vsel %vm5687, %v5680, %v5684
        %v5689 = vand.u32 2147483647, %v5510
        %vm5690 = vcmp.eq.f32.partialorder %v5689, 8.507059e+37
        %v5691 = vand.u32 %v5510, 2147483648
        %v5692 = vor.u32 1.1754944e-38, %v5691
        %v5693 = vsel %vm5690, %v5692, %v5688
        %v5694 = vmul.f32 1.0, %v5693
        %v5695 = vrcp.pop %v5511
        %v5696 = vmul.f32 %v5511, %v5695
        %v5697 = vsub.f32 1.0, %v5696
        %v5698 = vmul.f32 %v5695, %v5697
        %v5699 = vadd.f32 %v5695, %v5698
        %vm5700 = vweird.f32 %v5511
        %vm5701 = vweird.f32 %v5695
        %vm5702 = vmor %vm5700, %vm5701
        %v5703 = vsel %vm5702, %v5695, %v5699
        %v5704 = vand.u32 2147483647, %v5511
        %vm5705 = vcmp.eq.f32.partialorder %v5704, 8.507059e+37
        %v5706 = vand.u32 %v5511, 2147483648
        %v5707 = vor.u32 1.1754944e-38, %v5706
        %v5708 = vsel %vm5705, %v5707, %v5703
        %v5709 = vmul.f32 1.0, %v5708
        %v5710 = vrcp.pop %v5512
        %v5711 = vmul.f32 %v5512, %v5710
        %v5712 = vsub.f32 1.0, %v5711
        %v5713 = vmul.f32 %v5710, %v5712
        %v5714 = vadd.f32 %v5710, %v5713
        %vm5715 = vweird.f32 %v5512
        %vm5716 = vweird.f32 %v5710
        %vm5717 = vmor %vm5715, %vm5716
        %v5718 = vsel %vm5717, %v5710, %v5714
        %v5719 = vand.u32 2147483647, %v5512
        %vm5720 = vcmp.eq.f32.partialorder %v5719, 8.507059e+37
        %v5721 = vand.u32 %v5512, 2147483648
        %v5722 = vor.u32 1.1754944e-38, %v5721
        %v5723 = vsel %vm5720, %v5722, %v5718
        %v5724 = vmul.f32 1.0, %v5723
        %v5725 = vrcp.pop %v5513
        %v5726 = vmul.f32 %v5513, %v5725
        %v5727 = vsub.f32 1.0, %v5726
        %v5728 = vmul.f32 %v5725, %v5727
        %v5729 = vadd.f32 %v5725, %v5728
        %vm5730 = vweird.f32 %v5513
        %vm5731 = vweird.f32 %v5725
        %vm5732 = vmor %vm5730, %vm5731
        %v5733 = vsel %vm5732, %v5725, %v5729
        %v5734 = vand.u32 2147483647, %v5513
        %vm5735 = vcmp.eq.f32.partialorder %v5734, 8.507059e+37
        %v5736 = vand.u32 %v5513, 2147483648
        %v5737 = vor.u32 1.1754944e-38, %v5736
        %v5738 = vsel %vm5735, %v5737, %v5733
        %v5739 = vmul.f32 1.0, %v5738
        %v5740 = vrcp.pop %v5514
        %v5741 = vmul.f32 %v5514, %v5740
        %v5742 = vsub.f32 1.0, %v5741
        %v5743 = vmul.f32 %v5740, %v5742
        %v5744 = vadd.f32 %v5740, %v5743
        %vm5745 = vweird.f32 %v5514
        %vm5746 = vweird.f32 %v5740
        %vm5747 = vmor %vm5745, %vm5746
        %v5748 = vsel %vm5747, %v5740, %v5744
        %v5749 = vand.u32 2147483647, %v5514
        %vm5750 = vcmp.eq.f32.partialorder %v5749, 8.507059e+37
        %v5751 = vand.u32 %v5514, 2147483648
        %v5752 = vor.u32 1.1754944e-38, %v5751
        %v5753 = vsel %vm5750, %v5752, %v5748
        %v5754 = vmul.f32 1.0, %v5753
        %v5755 = vmul.f32 %v5435, %v5529
        %v5756 = vmul.f32 %v5436, %v5544
        %v5757 = vmul.f32 %v5437, %v5559
        %v5758 = vmul.f32 %v5438, %v5574
        %v5759 = vmul.f32 %v5439, %v5589
        %v5760 = vmul.f32 %v5440, %v5604
        %v5761 = vmul.f32 %v5441, %v5619
        %v5762 = vmul.f32 %v5442, %v5634
        %v5763 = vmul.f32 %v5443, %v5649
        %v5764 = vmul.f32 %v5444, %v5664
        %v5765 = vmul.f32 %v5445, %v5679
        %v5766 = vmul.f32 %v5446, %v5694
        %v5767 = vmul.f32 %v5447, %v5709
        %v5768 = vmul.f32 %v5448, %v5724
        %v5769 = vmul.f32 %v5449, %v5739
        %v5770 = vmul.f32 %v5450, %v5754
        %v5771 = vpack.c.bf16 %v5755, %v5755
        %v5772 = vpack.c.bf16 %v5756, %v5756
        %v5773 = vpack.c.bf16 %v5757, %v5757
        %v5774 = vpack.c.bf16 %v5758, %v5758
        %v5775 = vpack.c.bf16 %v5759, %v5759
        %v5776 = vpack.c.bf16 %v5760, %v5760
        %v5777 = vpack.c.bf16 %v5761, %v5761
        %v5778 = vpack.c.bf16 %v5762, %v5762
        %v5779 = vpack.c.bf16 %v5763, %v5763
        %v5780 = vpack.c.bf16 %v5764, %v5764
        %v5781 = vpack.c.bf16 %v5765, %v5765
        %v5782 = vpack.c.bf16 %v5766, %v5766
        %v5783 = vpack.c.bf16 %v5767, %v5767
        %v5784 = vpack.c.bf16 %v5768, %v5768
        %v5785 = vpack.c.bf16 %v5769, %v5769
        %v5786 = vpack.c.bf16 %v5770, %v5770
        %5787 = vst [vmem:[%s350] sm:$0xf] %v5771
        %5788 = vst [vmem:[%s350 + $0x4] sm:$0xf] %v5772
        %5789 = vst [vmem:[%s350 + $0x8] sm:$0xf] %v5773
        %5790 = vst [vmem:[%s350 + $0xc] sm:$0xf] %v5774
        %5791 = vst [vmem:[%s350 + $0x10] sm:$0xf] %v5775
        %5792 = vst [vmem:[%s350 + $0x14] sm:$0xf] %v5776
        %5793 = vst [vmem:[%s350 + $0x18] sm:$0xf] %v5777
        %5794 = vst [vmem:[%s350 + $0x1c] sm:$0xf] %v5778
        %5795 = vst [vmem:[%s350 + $0x20] sm:$0xf] %v5779
        %5796 = vst [vmem:[%s350 + $0x24] sm:$0xf] %v5780
        %5797 = vst [vmem:[%s350 + $0x28] sm:$0xf] %v5781
        %5798 = vst [vmem:[%s350 + $0x2c] sm:$0xf] %v5782
        %5799 = vst [vmem:[%s350 + $0x30] sm:$0xf] %v5783
        %5800 = vst [vmem:[%s350 + $0x34] sm:$0xf] %v5784
        %5801 = vst [vmem:[%s350 + $0x38] sm:$0xf] %v5785
        %5802 = vst [vmem:[%s350 + $0x3c] sm:$0xf] %v5786
        %s5803 = sand.u32 %s203, 1
        %s5804 = scalar_lea.sflag [#allocation4], %s5803
        %s5805 = sand.u32 %s203, 1
        %s5806 = smul.addr %s5805, 64
        %s5807 = scalar_lea.vmem [#allocation3], %s5806
        // Predicated region
        $region45: #{tpu_custom_call.1} parent=43 // pred_check
          %p5808 = pneg %p213
        $region46: #{tpu_custom_call.1} parent=43 // pred_check_branch
          %5810 = sbr.rel (%p5808) target = $region48
        $region47: #{tpu_custom_call.1} parent=43 // pred_region
          %5812 = vsyncadd %s5804, 0
          %s5813 = smul.addr %s25, 16
          %s5814 = smul.addr %s24, 128
          %s5815 = sadd.s32 %s5813, %s5814
          %s5816 = smul.addr %s5815, 4
          %s5817 = scalar_lea.hbm %s6, %s5816
          %s5818 = sshll.u32 %s5807, 4
          %s5819 = int_to_ptr.vmem [resolvable:$true] %s5818
          %s5820 = sshll.u32 %s5817, 4
          %s5821 = int_to_ptr.hbm [resolvable:$true] %s5820
          %5826 = dma.vmem_to_hbm [thread:$0]  %s5819, 1024, %s5821, %s5804, 64, 64, 4
        $region48: #{tpu_custom_call.1} parent=43 // pred_fallthru
          _
      $region44: #{tpu_custom_call.1} parent=5 // pred_fallthru
        _
      %p5827 = scmp.le.s32.totalorder 2, %s15
      // Predicated region
      $region49: #{tpu_custom_call.1} parent=5 // pred_check
        %p5828 = pneg %p5827
      $region50: #{tpu_custom_call.1} parent=5 // pred_check_branch
        %5830 = sbr.rel (%p5828) target = $region52
      $region51: #{tpu_custom_call.1} parent=5 // pred_region
        %s5831 = ssub.s32 %s15, 2
        // Predicated region
        $region53: #{tpu_custom_call.1} parent=51 // pred_check
          %p5832 = pneg %p219
        $region54: #{tpu_custom_call.1} parent=51 // pred_check_branch
          %5834 = sbr.rel (%p5832) target = $region56
        $region55: #{tpu_custom_call.1} parent=51 // pred_region
          %s5835 = sand.u32 %s204, 1
          %s5836 = scalar_lea.sflag [#allocation4], %s5835
          %s5837 = sand.u32 %s204, 1
          %s5838 = smul.addr %s5837, 64
          %s5839 = scalar_lea.vmem [#allocation3], %s5838
          %5841 = dma.done %s5836, 1024
        $region56: #{tpu_custom_call.1} parent=51 // pred_fallthru
          _
      $region52: #{tpu_custom_call.1} parent=5 // pred_fallthru
        _
    $region6: #{tpu_custom_call.1} parent=1 // loop_footer
      %s19 = sadd.s32 1, %s15
    $region7: #{tpu_custom_call.1} parent=1 // loop_footer_branch
      %14 = sbr.rel target = $region3
    $region8: #{tpu_custom_call.1} parent=1 // loop_exit
      _
    %5842 = vsyncpa [#allocation4], 1
    %s5843 = scalar_lea.sflag [#allocation4], 1
    %5844 = vsyncpa %s5843, 1

</llo_original>
